<compile_context>
chip_gen: v5e
topology: v5e:2x2
jax: 0.10.0
libtpu: 0.0.40
codegen_flags: <defaults>
</compile_context>

<pallas_src>
import math

import jax
import jax.numpy as jnp
from jax import lax
from jax.experimental import pallas as pl
from jax.experimental.pallas import tpu as pltpu

# --------------------------- model configuration ----------------------------
HIDDEN = 32
NUM_HEADS = 4
HEAD_DIM = HIDDEN // NUM_HEADS            # 8
NUM_BLOCKS = 2
NUM_CLASSES = 10
SE_REDUCTION = 16
SE_RED = max(HIDDEN // SE_REDUCTION, 1)   # 2
SIG_LEN = 16                              # input signal length L
SEQ = (SIG_LEN + 2 * 1 - 3) // 2 + 1      # 8 positions after the stride-2 conv
KTAPS = 8                                 # conv taps (3) + constant-1 bias tap, padded to 8
PAD_CLASSES = 128                         # lane-dense logits store
LN_EPS = 1e-5
WROWS = 40                                # 32 weight rows + 1 bias row, padded to 8-multiple


# ------------------------------ fused kernel --------------------------------
def _fused_forward_kernel(
    col_ref,            # (TB*S, KTAPS)   im2col columns (tap 3 == 1.0 for bias)
    conv_w_ref,         # (KTAPS, H)      conv taps rows 0-2, bias row 3
    se_w_ref,           # (2, H, H)       SE fc1 / fc2, zero-padded to (H, H)
    pe_seb_ref,         # (2*S, H)        rows 0..S-1: pos-enc, row S: se1_b, row S+1: se2_b
    wq_ref,             # (NB, NH, WROWS, Dh)  per-head Q weight (+bias row), scale folded
    wk_ref,             # (NB, NH, WROWS, Dh)  per-head K weight (+bias row)
    wu_ref,             # (NB, NH, WROWS, H)   per-head  Wv_h @ Wo_h  (+bias row)
    ff_ref,             # (NB, 2, WROWS, H)    FF linears (+bias rows)
    vec_ref,            # (NB, 8, H)      rows: ln1_g, ln1_b, ln2_g, ln2_b, out_proj bias
    head_ref,           # (WROWS, 128)    classifier weight (+bias row), lane-padded
    out_ref,            # (TB, 128)
):
    f32 = jnp.float32
    H, S, Dh = HIDDEN, SEQ, HEAD_DIM
    R = col_ref.shape[0]
    TB = R // S

    def layer_norm(y, g, b):
        mu = jnp.mean(y, axis=-1, keepdims=True)
        var = jnp.mean(jnp.square(y - mu), axis=-1, keepdims=True)
        return (y - mu) * lax.rsqrt(var + LN_EPS) * g + b

    # ---- Conv1d(1, H, k=3, s=2, p=1) as im2col matmul; bias via constant tap ----
    h = jnp.dot(col_ref[...], conv_w_ref[...], preferred_element_type=f32)    # (R, H)

    # ---- SqueezeExcite1D, batched over the TB rows of this grid step ----
    pe_tab = pe_seb_ref[...]                                                  # (2S, H)
    h3 = h.reshape(TB, S, H)
    squeeze = jnp.mean(h3, axis=1)                                            # (TB, H)
    e = jnp.dot(squeeze, se_w_ref[0], preferred_element_type=f32) + pe_tab[S:S + 1, :]
    e = jnp.maximum(e, 0.0)
    e = jnp.dot(e, se_w_ref[1], preferred_element_type=f32) + pe_tab[S + 1:S + 2, :]
    gate = jax.nn.sigmoid(e)                                                  # (TB, H)

    # ---- channel gate + positional encoding (dropout = identity in eval) ----
    x = (h3 * gate[:, None, :] + pe_tab[0:S, :][None, :, :]).reshape(R, H)    # (R, H)

    # ---- transformer blocks (unrolled; activations stay in vregs/VMEM) ----
    for blk in range(NUM_BLOCKS):
        vec = vec_ref[blk]                                                    # (8, H)
        ln1_g, ln1_b = vec[0:1, :], vec[1:2, :]
        ln2_g, ln2_b = vec[2:3, :], vec[3:4, :]
        out_b = vec[4:5, :]

        attn = jnp.zeros((TB, S, H), f32)
        for hh in range(NUM_HEADS):
            wq = wq_ref[blk, hh]                                              # (WROWS, Dh)
            wk = wk_ref[blk, hh]
            wu = wu_ref[blk, hh]                                              # (WROWS, H)
            q = jnp.dot(x, wq[0:H, :], preferred_element_type=f32) + wq[H:H + 1, :]   # (R, Dh)
            k = jnp.dot(x, wk[0:H, :], preferred_element_type=f32) + wk[H:H + 1, :]   # (R, Dh)
            # V projection and out-projection fused host-side: u = x @ (Wv_h Wo_h) + bv_h Wo_h
            u = jnp.dot(x, wu[0:H, :], preferred_element_type=f32) + wu[H:H + 1, :]   # (R, H)

            q3 = q.reshape(TB, S, Dh)
            k3 = k.reshape(TB, S, Dh)
            u3 = u.reshape(TB, S, H)
            s = jnp.einsum('bik,bjk->bij', q3, k3, preferred_element_type=f32)        # (TB, S, S)
            s = s - jnp.max(s, axis=-1, keepdims=True)
            p = jnp.exp(s)
            p = p * pl.reciprocal(jnp.sum(p, axis=-1, keepdims=True), approx=True)
            attn = attn + jnp.einsum('bij,bjk->bik', p, u3, preferred_element_type=f32)

        x = layer_norm(attn.reshape(R, H) + out_b + x, ln1_g, ln1_b)          # LN1(attn + x)

        w1 = ff_ref[blk, 0]
        w2 = ff_ref[blk, 1]
        ff = jnp.dot(x, w1[0:H, :], preferred_element_type=f32) + w1[H:H + 1, :]
        ff = jnp.maximum(ff, 0.0)
        ff = jnp.dot(ff, w2[0:H, :], preferred_element_type=f32) + w2[H:H + 1, :]
        x = layer_norm(ff + x, ln2_g, ln2_b)                                  # LN2(ff + x)

    # ---- sequence mean pooling + classification head (lane-dense store) ----
    head = head_ref[...]                                                      # (WROWS, 128)
    pooled = jnp.mean(x.reshape(TB, S, H), axis=1)                            # (TB, H)
    logits = jnp.dot(pooled, head[0:H, :], preferred_element_type=f32) + head[H:H + 1, :]
    out_ref[...] = logits.astype(out_ref.dtype)                               # (TB, 128)


# ------------------------------ parameters ----------------------------------
def _make_positional_encoding(seq_len, d_model):
    position = jnp.arange(seq_len, dtype=jnp.float32)[:, None]
    div_term = jnp.exp(jnp.arange(0, d_model, 2, dtype=jnp.float32)
                       * (-math.log(10000.0) / d_model))
    pe = jnp.zeros((seq_len, d_model), dtype=jnp.float32)
    pe = pe.at[:, 0::2].set(jnp.sin(position * div_term))
    pe = pe.at[:, 1::2].set(jnp.cos(position * div_term))
    return pe


def init_params(key):
    """Random init mirroring the torch layers, packed for the fused kernel."""
    keys = iter(jax.random.split(key, 64))
    H, NB, NH, Dh = HIDDEN, NUM_BLOCKS, NUM_HEADS, HEAD_DIM

    def uni(shape, fan_in):
        bound = 1.0 / math.sqrt(fan_in)
        return jax.random.uniform(next(keys), shape, jnp.float32, -bound, bound)

    p = {}

    # Conv1d(1, H, 3): torch weight (H,1,3) stored transposed as taps x H;
    # bias stored in row 3, matched by the constant-1 im2col tap.
    conv_w = jnp.zeros((KTAPS, H), jnp.float32)
    conv_w = conv_w.at[:3, :].set(uni((3, H), 3))
    conv_w = conv_w.at[3, :].set(uni((H,), 3))
    p["conv_w"] = conv_w

    # SqueezeExcite1D fc1 (H->H/16) / fc2 (H/16->H), zero-padded to (H, H).
    se_w = jnp.zeros((2, H, H), jnp.float32)
    se_w = se_w.at[0, :, :SE_RED].set(uni((H, SE_RED), H))
    se_w = se_w.at[1, :SE_RED, :].set(uni((SE_RED, H), SE_RED))
    p["se_w"] = se_w

    # Positional-encoding rows + SE biases packed together.
    pe_seb = jnp.zeros((2 * SEQ, H), jnp.float32)
    pe_seb = pe_seb.at[:SEQ, :].set(_make_positional_encoding(SEQ, H))
    pe_seb = pe_seb.at[SEQ, :SE_RED].set(uni((SE_RED,), H))
    pe_seb = pe_seb.at[SEQ + 1, :].set(uni((H,), SE_RED))
    p["pe_seb"] = pe_seb

    # Transformer blocks. torch nn.MultiheadAttention layout: packed in_proj
    # (3H, H) + bias, out_proj (H, H) + bias; linear weights here end up (in, out).
    scale = 1.0 / math.sqrt(Dh)
    wq = jnp.zeros((NB, NH, WROWS, Dh), jnp.float32)
    wk = jnp.zeros((NB, NH, WROWS, Dh), jnp.float32)
    wu = jnp.zeros((NB, NH, WROWS, H), jnp.float32)
    ff_w = jnp.zeros((NB, 2, WROWS, H), jnp.float32)
    vecs = jnp.zeros((NB, 8, H), jnp.float32)

    for b in range(NB):
        in_w = uni((3 * H, H), H)        # (out, in) like torch
        in_b = uni((3 * H,), H)
        out_w = uni((H, H), H)           # out_proj.weight (out, in)
        out_b = uni((H,), H)
        for hh in range(NH):
            sl = slice(hh * Dh, (hh + 1) * Dh)
            wq_h = in_w[0 * H:1 * H][sl, :].T * scale          # (H, Dh), 1/sqrt(Dh) folded
            bq_h = in_b[0 * H:1 * H][sl] * scale
            wk_h = in_w[1 * H:2 * H][sl, :].T
            bk_h = in_b[1 * H:2 * H][sl]
            wv_h = in_w[2 * H:3 * H][sl, :].T                  # (H, Dh)
            bv_h = in_b[2 * H:3 * H][sl]
            wo_h = out_w[:, sl].T                              # (Dh, H)
            wq = wq.at[b, hh, :H, :].set(wq_h)
            wq = wq.at[b, hh, H, :].set(bq_h)
            wk = wk.at[b, hh, :H, :].set(wk_h)
            wk = wk.at[b, hh, H, :].set(bk_h)
            wu = wu.at[b, hh, :H, :].set(wv_h @ wo_h)          # fused V-proj + out-proj
            wu = wu.at[b, hh, H, :].set(bv_h @ wo_h)
        vecs = vecs.at[b, 4, :].set(out_b)                     # out_proj bias (added once)

        for j in range(2):                                     # feed-forward Linear(H,H) x2
            ff_w = ff_w.at[b, j, :H, :].set(uni((H, H), H))
            ff_w = ff_w.at[b, j, H, :].set(uni((H,), H))

        vecs = vecs.at[b, 0, :].set(1.0)                       # ln1 gamma
        vecs = vecs.at[b, 2, :].set(1.0)                       # ln2 gamma

    p["wq"], p["wk"], p["wu"] = wq, wk, wu
    p["ff_w"] = ff_w
    p["blk_vecs"] = vecs

    # Classification head, zero-padded to 128 output lanes; bias in row H.
    head = jnp.zeros((WROWS, PAD_CLASSES), jnp.float32)
    head = head.at[:H, :NUM_CLASSES].set(uni((H, NUM_CLASSES), H))
    head = head.at[H, :NUM_CLASSES].set(uni((NUM_CLASSES,), H))
    p["head"] = head
    return p


_PARAM_ORDER = ("conv_w", "se_w", "pe_seb", "wq", "wk", "wu",
                "ff_w", "blk_vecs", "head")


# ------------------------------ forward wrapper ------------------------------
def forward(params, x, tb=None):
    """x: (B, 1, L) float32  ->  logits (B, NUM_CLASSES)."""
    B = x.shape[0]
    L = x.shape[-1]
    S = (L + 2 * 1 - 3) // 2 + 1
    assert S == SEQ, "positional-encoding table was built for SEQ positions"

    if tb is None:
        # TB*S >= 128 fills v5e MXU rows (>=256 for v6e/v7x); keep >= 2 grid
        # steps so ("parallel",) splits the batch across v7x's two TensorCores.
        tb = max(1, min(32, B // 2))
    steps = pl.cdiv(B, tb)
    Bp = steps * tb

    # im2col for the k=3 / stride-2 / pad-1 conv: col[b, t, k] = padded_sig[b, 2t + k];
    # tap 3 is a constant 1 that picks up the conv bias row of conv_w.
    sig = jnp.pad(x.reshape(B, L).astype(jnp.float32), ((0, Bp - B), (1, 1)))
    taps = jnp.stack([sig[:, k:k + 2 * S:2] for k in range(3)], axis=-1)      # (Bp, S, 3)
    col = jnp.concatenate(
        [taps, jnp.ones((Bp, S, 1), jnp.float32),
         jnp.zeros((Bp, S, KTAPS - 4), jnp.float32)], axis=-1)                # (Bp, S, KTAPS)
    col = col.reshape(Bp * S, KTAPS)

    weights = [params[name] for name in _PARAM_ORDER]

    def const_spec(a):
        nd = a.ndim
        return pl.BlockSpec(a.shape, lambda i, _nd=nd: (0,) * _nd)

    in_specs = ([pl.BlockSpec((tb * S, KTAPS), lambda i: (i, 0))]
                + [const_spec(w) for w in weights])
    out_specs = pl.BlockSpec((None, tb, PAD_CLASSES), lambda i: (i, 0, 0))

    logits = pl.pallas_call(
        _fused_forward_kernel,
        out_shape=jax.ShapeDtypeStruct((steps, tb, PAD_CLASSES), jnp.float32),
        grid=(steps,),
        in_specs=in_specs,
        out_specs=out_specs,
        compiler_params=pltpu.CompilerParams(
            dimension_semantics=("parallel",)),    # batch groups are independent
    )(col, *weights)

    return logits.reshape(Bp, PAD_CLASSES)[:B, :NUM_CLASSES]


# ------------------------------------ main -----------------------------------
if __name__ == "__main__":
    root = jax.random.PRNGKey(0)
    k_param, k_data = jax.random.split(root)
    params = init_params(k_param)

    B = 8                                               # -> TB=4, 2 parallel grid steps
    x = jax.random.normal(k_data, (B, 1, SIG_LEN), dtype=jnp.float32)

    fwd = jax.jit(forward)
    out = fwd(params, x)
    jax.block_until_ready(out)

    assert out.shape == (B, NUM_CLASSES)
    assert bool(jnp.all(jnp.isfinite(out)))
    print("KERNEL_OK")
</pallas_src>

<mosaic_0001>
module attributes {stable_mosaic.version = 11 : i64} {
  func.func @_fused_forward_kernel(%arg0: i32, %arg1: memref<32x8xf32, #tpu.memory_space<vmem>>, %arg2: memref<8x32xf32, #tpu.memory_space<vmem>>, %arg3: memref<2x32x32xf32, #tpu.memory_space<vmem>>, %arg4: memref<16x32xf32, #tpu.memory_space<vmem>>, %arg5: memref<2x4x40x8xf32, #tpu.memory_space<vmem>>, %arg6: memref<2x4x40x8xf32, #tpu.memory_space<vmem>>, %arg7: memref<2x4x40x32xf32, #tpu.memory_space<vmem>>, %arg8: memref<2x2x40x32xf32, #tpu.memory_space<vmem>>, %arg9: memref<2x8x32xf32, #tpu.memory_space<vmem>>, %arg10: memref<40x128xf32, #tpu.memory_space<vmem>>, %arg11: memref<1x4x128xf32, #tpu.memory_space<vmem>>) attributes {dimension_semantics = [#tpu.dimension_semantics<parallel>], iteration_bounds = array<i64: 2>, scalar_prefetch = 0 : i64, scratch_operands = 0 : i64, tpu.core_type = #tpu.core_type<tc>, window_params = [{transform_indices = @transform_0, window_bounds = array<i64: 32, 8>}, {pipeline_mode = #tpu.pipeline_mode<synchronous>, transform_indices = @transform_1, window_bounds = array<i64: 8, 32>}, {pipeline_mode = #tpu.pipeline_mode<synchronous>, transform_indices = @transform_2, window_bounds = array<i64: 2, 32, 32>}, {pipeline_mode = #tpu.pipeline_mode<synchronous>, transform_indices = @transform_3, window_bounds = array<i64: 16, 32>}, {pipeline_mode = #tpu.pipeline_mode<synchronous>, transform_indices = @transform_4, window_bounds = array<i64: 2, 4, 40, 8>}, {pipeline_mode = #tpu.pipeline_mode<synchronous>, transform_indices = @transform_5, window_bounds = array<i64: 2, 4, 40, 8>}, {pipeline_mode = #tpu.pipeline_mode<synchronous>, transform_indices = @transform_6, window_bounds = array<i64: 2, 4, 40, 32>}, {pipeline_mode = #tpu.pipeline_mode<synchronous>, transform_indices = @transform_7, window_bounds = array<i64: 2, 2, 40, 32>}, {pipeline_mode = #tpu.pipeline_mode<synchronous>, transform_indices = @transform_8, window_bounds = array<i64: 2, 8, 32>}, {pipeline_mode = #tpu.pipeline_mode<synchronous>, transform_indices = @transform_9, window_bounds = array<i64: 40, 128>}, {transform_indices = @transform_10, window_bounds = array<i64: 1, 4, 128>}]} {
    %c0 = arith.constant 0 : index
    %c0_0 = arith.constant 0 : index
    %0 = vector.load %arg1[%c0, %c0_0] : memref<32x8xf32, #tpu.memory_space<vmem>>, vector<32x8xf32>
    %c0_1 = arith.constant 0 : index
    %c0_2 = arith.constant 0 : index
    %1 = vector.load %arg2[%c0_1, %c0_2] : memref<8x32xf32, #tpu.memory_space<vmem>>, vector<8x32xf32>
    %cst = arith.constant dense<0.000000e+00> : vector<32x32xf32>
    %2 = tpu.matmul %0, %1, %cst {dimension_numbers = #tpu.dot_dimension_numbers<[1], [0], [0], [1], [0, 0, 1, 1], [], []>} : vector<32x8xf32>, vector<8x32xf32>, vector<32x32xf32> -> vector<32x32xf32>
    %c0_3 = arith.constant 0 : index
    %c0_4 = arith.constant 0 : index
    %3 = vector.load %arg4[%c0_3, %c0_4] : memref<16x32xf32, #tpu.memory_space<vmem>>, vector<16x32xf32>
    %4 = vector.shape_cast %2 : vector<32x32xf32> to vector<4x8x32xf32>
    %cst_5 = arith.constant dense<0.000000e+00> : vector<4x32xf32>
    %5 = vector.multi_reduction <add>, %4, %cst_5 [1] : vector<4x8x32xf32> to vector<4x32xf32>
    %cst_6 = arith.constant 8.000000e+00 : f32
    %6 = vector.broadcast %cst_6 : f32 to vector<4x32xf32>
    %7 = arith.divf %5, %6 : vector<4x32xf32>
    %c0_7 = arith.constant 0 : index
    %c0_8 = arith.constant 0 : index
    %c0_9 = arith.constant 0 : index
    %8 = vector.load %arg3[%c0_7, %c0_8, %c0_9] : memref<2x32x32xf32, #tpu.memory_space<vmem>>, vector<1x32x32xf32>
    %9 = vector.shape_cast %8 : vector<1x32x32xf32> to vector<32x32xf32>
    %cst_10 = arith.constant dense<0.000000e+00> : vector<4x32xf32>
    %10 = tpu.matmul %7, %9, %cst_10 {dimension_numbers = #tpu.dot_dimension_numbers<[1], [0], [0], [1], [0, 0, 1, 1], [], []>} : vector<4x32xf32>, vector<32x32xf32>, vector<4x32xf32> -> vector<4x32xf32>
    %11 = vector.extract_strided_slice %3 {offsets = [8, 0], sizes = [1, 32], strides = [1, 1]} : vector<16x32xf32> to vector<1x32xf32>
    %12 = vector.broadcast %11 : vector<1x32xf32> to vector<4x32xf32>
    %13 = arith.addf %10, %12 : vector<4x32xf32>
    %cst_11 = arith.constant 0.000000e+00 : f32
    %14 = vector.broadcast %cst_11 : f32 to vector<4x32xf32>
    %15 = arith.maximumf %13, %14 : vector<4x32xf32>
    %c1 = arith.constant 1 : index
    %c0_12 = arith.constant 0 : index
    %c0_13 = arith.constant 0 : index
    %16 = vector.load %arg3[%c1, %c0_12, %c0_13] : memref<2x32x32xf32, #tpu.memory_space<vmem>>, vector<1x32x32xf32>
    %17 = vector.shape_cast %16 : vector<1x32x32xf32> to vector<32x32xf32>
    %cst_14 = arith.constant dense<0.000000e+00> : vector<4x32xf32>
    %18 = tpu.matmul %15, %17, %cst_14 {dimension_numbers = #tpu.dot_dimension_numbers<[1], [0], [0], [1], [0, 0, 1, 1], [], []>} : vector<4x32xf32>, vector<32x32xf32>, vector<4x32xf32> -> vector<4x32xf32>
    %19 = vector.extract_strided_slice %3 {offsets = [9, 0], sizes = [1, 32], strides = [1, 1]} : vector<16x32xf32> to vector<1x32xf32>
    %20 = vector.broadcast %19 : vector<1x32xf32> to vector<4x32xf32>
    %21 = arith.addf %18, %20 : vector<4x32xf32>
    %22 = arith.negf %21 : vector<4x32xf32>
    %23 = math.exp %22 : vector<4x32xf32>
    %cst_15 = arith.constant 1.000000e+00 : f32
    %24 = vector.broadcast %cst_15 : f32 to vector<4x32xf32>
    %25 = arith.addf %24, %23 : vector<4x32xf32>
    %26 = arith.divf %24, %25 : vector<4x32xf32>
    %27 = vector.shape_cast %26 : vector<4x32xf32> to vector<4x1x32xf32>
    %28 = vector.broadcast %27 : vector<4x1x32xf32> to vector<4x8x32xf32>
    %29 = arith.mulf %4, %28 : vector<4x8x32xf32>
    %30 = vector.extract_strided_slice %3 {offsets = [0, 0], sizes = [8, 32], strides = [1, 1]} : vector<16x32xf32> to vector<8x32xf32>
    %31 = vector.shape_cast %30 : vector<8x32xf32> to vector<1x8x32xf32>
    %32 = vector.broadcast %31 : vector<1x8x32xf32> to vector<4x8x32xf32>
    %33 = arith.addf %29, %32 : vector<4x8x32xf32>
    %34 = vector.shape_cast %33 : vector<4x8x32xf32> to vector<32x32xf32>
    %c0_16 = arith.constant 0 : index
    %c0_17 = arith.constant 0 : index
    %c0_18 = arith.constant 0 : index
    %35 = vector.load %arg9[%c0_16, %c0_17, %c0_18] : memref<2x8x32xf32, #tpu.memory_space<vmem>>, vector<1x8x32xf32>
    %36 = vector.shape_cast %35 : vector<1x8x32xf32> to vector<8x32xf32>
    %37 = vector.extract_strided_slice %36 {offsets = [0, 0], sizes = [1, 32], strides = [1, 1]} : vector<8x32xf32> to vector<1x32xf32>
    %38 = vector.extract_strided_slice %36 {offsets = [1, 0], sizes = [1, 32], strides = [1, 1]} : vector<8x32xf32> to vector<1x32xf32>
    %39 = vector.extract_strided_slice %36 {offsets = [2, 0], sizes = [1, 32], strides = [1, 1]} : vector<8x32xf32> to vector<1x32xf32>
    %40 = vector.extract_strided_slice %36 {offsets = [3, 0], sizes = [1, 32], strides = [1, 1]} : vector<8x32xf32> to vector<1x32xf32>
    %41 = vector.extract_strided_slice %36 {offsets = [4, 0], sizes = [1, 32], strides = [1, 1]} : vector<8x32xf32> to vector<1x32xf32>
    %cst_19 = arith.constant 0.000000e+00 : f32
    %42 = vector.broadcast %cst_19 : f32 to vector<4x8x32xf32>
    %c0_20 = arith.constant 0 : index
    %c0_21 = arith.constant 0 : index
    %c0_22 = arith.constant 0 : index
    %c0_23 = arith.constant 0 : index
    %43 = vector.load %arg5[%c0_20, %c0_21, %c0_22, %c0_23] : memref<2x4x40x8xf32, #tpu.memory_space<vmem>>, vector<1x1x40x8xf32>
    %44 = vector.shape_cast %43 : vector<1x1x40x8xf32> to vector<40x8xf32>
    %c0_24 = arith.constant 0 : index
    %c0_25 = arith.constant 0 : index
    %c0_26 = arith.constant 0 : index
    %c0_27 = arith.constant 0 : index
    %45 = vector.load %arg6[%c0_24, %c0_25, %c0_26, %c0_27] : memref<2x4x40x8xf32, #tpu.memory_space<vmem>>, vector<1x1x40x8xf32>
    %46 = vector.shape_cast %45 : vector<1x1x40x8xf32> to vector<40x8xf32>
    %c0_28 = arith.constant 0 : index
    %c0_29 = arith.constant 0 : index
    %c0_30 = arith.constant 0 : index
    %c0_31 = arith.constant 0 : index
    %47 = vector.load %arg7[%c0_28, %c0_29, %c0_30, %c0_31] : memref<2x4x40x32xf32, #tpu.memory_space<vmem>>, vector<1x1x40x32xf32>
    %48 = vector.shape_cast %47 : vector<1x1x40x32xf32> to vector<40x32xf32>
    %49 = vector.extract_strided_slice %44 {offsets = [0, 0], sizes = [32, 8], strides = [1, 1]} : vector<40x8xf32> to vector<32x8xf32>
    %cst_32 = arith.constant dense<0.000000e+00> : vector<32x8xf32>
    %50 = tpu.matmul %34, %49, %cst_32 {dimension_numbers = #tpu.dot_dimension_numbers<[1], [0], [0], [1], [0, 0, 1, 1], [], []>} : vector<32x32xf32>, vector<32x8xf32>, vector<32x8xf32> -> vector<32x8xf32>
    %51 = vector.extract_strided_slice %44 {offsets = [32, 0], sizes = [1, 8], strides = [1, 1]} : vector<40x8xf32> to vector<1x8xf32>
    %52 = vector.broadcast %51 : vector<1x8xf32> to vector<32x8xf32>
    %53 = arith.addf %50, %52 : vector<32x8xf32>
    %54 = vector.extract_strided_slice %46 {offsets = [0, 0], sizes = [32, 8], strides = [1, 1]} : vector<40x8xf32> to vector<32x8xf32>
    %cst_33 = arith.constant dense<0.000000e+00> : vector<32x8xf32>
    %55 = tpu.matmul %34, %54, %cst_33 {dimension_numbers = #tpu.dot_dimension_numbers<[1], [0], [0], [1], [0, 0, 1, 1], [], []>} : vector<32x32xf32>, vector<32x8xf32>, vector<32x8xf32> -> vector<32x8xf32>
    %56 = vector.extract_strided_slice %46 {offsets = [32, 0], sizes = [1, 8], strides = [1, 1]} : vector<40x8xf32> to vector<1x8xf32>
    %57 = vector.broadcast %56 : vector<1x8xf32> to vector<32x8xf32>
    %58 = arith.addf %55, %57 : vector<32x8xf32>
    %59 = vector.extract_strided_slice %48 {offsets = [0, 0], sizes = [32, 32], strides = [1, 1]} : vector<40x32xf32> to vector<32x32xf32>
    %cst_34 = arith.constant dense<0.000000e+00> : vector<32x32xf32>
    %60 = tpu.matmul %34, %59, %cst_34 {dimension_numbers = #tpu.dot_dimension_numbers<[1], [0], [0], [1], [0, 0, 1, 1], [], []>} : vector<32x32xf32>, vector<32x32xf32>, vector<32x32xf32> -> vector<32x32xf32>
    %61 = vector.extract_strided_slice %48 {offsets = [32, 0], sizes = [1, 32], strides = [1, 1]} : vector<40x32xf32> to vector<1x32xf32>
    %62 = vector.broadcast %61 : vector<1x32xf32> to vector<32x32xf32>
    %63 = arith.addf %60, %62 : vector<32x32xf32>
    %64 = vector.shape_cast %53 : vector<32x8xf32> to vector<4x8x8xf32>
    %65 = vector.shape_cast %58 : vector<32x8xf32> to vector<4x8x8xf32>
    %66 = vector.shape_cast %63 : vector<32x32xf32> to vector<4x8x32xf32>
    "tpu.trace_start"() <{level = 10 : i32, message = "bik,bjk->bij"}> : () -> ()
    %cst_35 = arith.constant dense<0.000000e+00> : vector<4x8x8xf32>
    %67 = tpu.matmul %64, %65, %cst_35 {dimension_numbers = #tpu.dot_dimension_numbers<[2], [2], [1], [1], [0, 0, 0, 1, 1, 1], [0], [0]>} : vector<4x8x8xf32>, vector<4x8x8xf32>, vector<4x8x8xf32> -> vector<4x8x8xf32>
    "tpu.trace_stop"() : () -> ()
    %cst_36 = arith.constant dense<0xFF800000> : vector<4x8xf32>
    %68 = vector.multi_reduction <maximumf>, %67, %cst_36 [2] : vector<4x8x8xf32> to vector<4x8xf32>
    %69 = vector.shape_cast %68 : vector<4x8xf32> to vector<4x8x1xf32>
    %70 = vector.broadcast %69 : vector<4x8x1xf32> to vector<4x8x8xf32>
    %71 = arith.subf %67, %70 : vector<4x8x8xf32>
    %72 = math.exp %71 : vector<4x8x8xf32>
    %cst_37 = arith.constant dense<0.000000e+00> : vector<4x8xf32>
    %73 = vector.multi_reduction <add>, %72, %cst_37 [2] : vector<4x8x8xf32> to vector<4x8xf32>
    %74 = vector.shape_cast %73 : vector<4x8xf32> to vector<4x8x1xf32>
    %75 = tpu.reciprocal %74 {approx = true} : vector<4x8x1xf32> -> vector<4x8x1xf32>
    %76 = vector.broadcast %75 : vector<4x8x1xf32> to vector<4x8x8xf32>
    %77 = arith.mulf %72, %76 : vector<4x8x8xf32>
    "tpu.trace_start"() <{level = 10 : i32, message = "bij,bjk->bik"}> : () -> ()
    %cst_38 = arith.constant dense<0.000000e+00> : vector<4x8x32xf32>
    %78 = tpu.matmul %77, %66, %cst_38 {dimension_numbers = #tpu.dot_dimension_numbers<[2], [1], [1], [2], [0, 0, 0, 1, 1, 2], [0], [0]>} : vector<4x8x8xf32>, vector<4x8x32xf32>, vector<4x8x32xf32> -> vector<4x8x32xf32>
    "tpu.trace_stop"() : () -> ()
    %79 = arith.addf %42, %78 : vector<4x8x32xf32>
    %c0_39 = arith.constant 0 : index
    %c1_40 = arith.constant 1 : index
    %c0_41 = arith.constant 0 : index
    %c0_42 = arith.constant 0 : index
    %80 = vector.load %arg5[%c0_39, %c1_40, %c0_41, %c0_42] : memref<2x4x40x8xf32, #tpu.memory_space<vmem>>, vector<1x1x40x8xf32>
    %81 = vector.shape_cast %80 : vector<1x1x40x8xf32> to vector<40x8xf32>
    %c0_43 = arith.constant 0 : index
    %c1_44 = arith.constant 1 : index
    %c0_45 = arith.constant 0 : index
    %c0_46 = arith.constant 0 : index
    %82 = vector.load %arg6[%c0_43, %c1_44, %c0_45, %c0_46] : memref<2x4x40x8xf32, #tpu.memory_space<vmem>>, vector<1x1x40x8xf32>
    %83 = vector.shape_cast %82 : vector<1x1x40x8xf32> to vector<40x8xf32>
    %c0_47 = arith.constant 0 : index
    %c1_48 = arith.constant 1 : index
    %c0_49 = arith.constant 0 : index
    %c0_50 = arith.constant 0 : index
    %84 = vector.load %arg7[%c0_47, %c1_48, %c0_49, %c0_50] : memref<2x4x40x32xf32, #tpu.memory_space<vmem>>, vector<1x1x40x32xf32>
    %85 = vector.shape_cast %84 : vector<1x1x40x32xf32> to vector<40x32xf32>
    %86 = vector.extract_strided_slice %81 {offsets = [0, 0], sizes = [32, 8], strides = [1, 1]} : vector<40x8xf32> to vector<32x8xf32>
    %cst_51 = arith.constant dense<0.000000e+00> : vector<32x8xf32>
    %87 = tpu.matmul %34, %86, %cst_51 {dimension_numbers = #tpu.dot_dimension_numbers<[1], [0], [0], [1], [0, 0, 1, 1], [], []>} : vector<32x32xf32>, vector<32x8xf32>, vector<32x8xf32> -> vector<32x8xf32>
    %88 = vector.extract_strided_slice %81 {offsets = [32, 0], sizes = [1, 8], strides = [1, 1]} : vector<40x8xf32> to vector<1x8xf32>
    %89 = vector.broadcast %88 : vector<1x8xf32> to vector<32x8xf32>
    %90 = arith.addf %87, %89 : vector<32x8xf32>
    %91 = vector.extract_strided_slice %83 {offsets = [0, 0], sizes = [32, 8], strides = [1, 1]} : vector<40x8xf32> to vector<32x8xf32>
    %cst_52 = arith.constant dense<0.000000e+00> : vector<32x8xf32>
    %92 = tpu.matmul %34, %91, %cst_52 {dimension_numbers = #tpu.dot_dimension_numbers<[1], [0], [0], [1], [0, 0, 1, 1], [], []>} : vector<32x32xf32>, vector<32x8xf32>, vector<32x8xf32> -> vector<32x8xf32>
    %93 = vector.extract_strided_slice %83 {offsets = [32, 0], sizes = [1, 8], strides = [1, 1]} : vector<40x8xf32> to vector<1x8xf32>
    %94 = vector.broadcast %93 : vector<1x8xf32> to vector<32x8xf32>
    %95 = arith.addf %92, %94 : vector<32x8xf32>
    %96 = vector.extract_strided_slice %85 {offsets = [0, 0], sizes = [32, 32], strides = [1, 1]} : vector<40x32xf32> to vector<32x32xf32>
    %cst_53 = arith.constant dense<0.000000e+00> : vector<32x32xf32>
    %97 = tpu.matmul %34, %96, %cst_53 {dimension_numbers = #tpu.dot_dimension_numbers<[1], [0], [0], [1], [0, 0, 1, 1], [], []>} : vector<32x32xf32>, vector<32x32xf32>, vector<32x32xf32> -> vector<32x32xf32>
    %98 = vector.extract_strided_slice %85 {offsets = [32, 0], sizes = [1, 32], strides = [1, 1]} : vector<40x32xf32> to vector<1x32xf32>
    %99 = vector.broadcast %98 : vector<1x32xf32> to vector<32x32xf32>
    %100 = arith.addf %97, %99 : vector<32x32xf32>
    %101 = vector.shape_cast %90 : vector<32x8xf32> to vector<4x8x8xf32>
    %102 = vector.shape_cast %95 : vector<32x8xf32> to vector<4x8x8xf32>
    %103 = vector.shape_cast %100 : vector<32x32xf32> to vector<4x8x32xf32>
    "tpu.trace_start"() <{level = 10 : i32, message = "bik,bjk->bij"}> : () -> ()
    %cst_54 = arith.constant dense<0.000000e+00> : vector<4x8x8xf32>
    %104 = tpu.matmul %101, %102, %cst_54 {dimension_numbers = #tpu.dot_dimension_numbers<[2], [2], [1], [1], [0, 0, 0, 1, 1, 1], [0], [0]>} : vector<4x8x8xf32>, vector<4x8x8xf32>, vector<4x8x8xf32> -> vector<4x8x8xf32>
    "tpu.trace_stop"() : () -> ()
    %cst_55 = arith.constant dense<0xFF800000> : vector<4x8xf32>
    %105 = vector.multi_reduction <maximumf>, %104, %cst_55 [2] : vector<4x8x8xf32> to vector<4x8xf32>
    %106 = vector.shape_cast %105 : vector<4x8xf32> to vector<4x8x1xf32>
    %107 = vector.broadcast %106 : vector<4x8x1xf32> to vector<4x8x8xf32>
    %108 = arith.subf %104, %107 : vector<4x8x8xf32>
    %109 = math.exp %108 : vector<4x8x8xf32>
    %cst_56 = arith.constant dense<0.000000e+00> : vector<4x8xf32>
    %110 = vector.multi_reduction <add>, %109, %cst_56 [2] : vector<4x8x8xf32> to vector<4x8xf32>
    %111 = vector.shape_cast %110 : vector<4x8xf32> to vector<4x8x1xf32>
    %112 = tpu.reciprocal %111 {approx = true} : vector<4x8x1xf32> -> vector<4x8x1xf32>
    %113 = vector.broadcast %112 : vector<4x8x1xf32> to vector<4x8x8xf32>
    %114 = arith.mulf %109, %113 : vector<4x8x8xf32>
    "tpu.trace_start"() <{level = 10 : i32, message = "bij,bjk->bik"}> : () -> ()
    %cst_57 = arith.constant dense<0.000000e+00> : vector<4x8x32xf32>
    %115 = tpu.matmul %114, %103, %cst_57 {dimension_numbers = #tpu.dot_dimension_numbers<[2], [1], [1], [2], [0, 0, 0, 1, 1, 2], [0], [0]>} : vector<4x8x8xf32>, vector<4x8x32xf32>, vector<4x8x32xf32> -> vector<4x8x32xf32>
    "tpu.trace_stop"() : () -> ()
    %116 = arith.addf %79, %115 : vector<4x8x32xf32>
    %c0_58 = arith.constant 0 : index
    %c2 = arith.constant 2 : index
    %c0_59 = arith.constant 0 : index
    %c0_60 = arith.constant 0 : index
    %117 = vector.load %arg5[%c0_58, %c2, %c0_59, %c0_60] : memref<2x4x40x8xf32, #tpu.memory_space<vmem>>, vector<1x1x40x8xf32>
    %118 = vector.shape_cast %117 : vector<1x1x40x8xf32> to vector<40x8xf32>
    %c0_61 = arith.constant 0 : index
    %c2_62 = arith.constant 2 : index
    %c0_63 = arith.constant 0 : index
    %c0_64 = arith.constant 0 : index
    %119 = vector.load %arg6[%c0_61, %c2_62, %c0_63, %c0_64] : memref<2x4x40x8xf32, #tpu.memory_space<vmem>>, vector<1x1x40x8xf32>
    %120 = vector.shape_cast %119 : vector<1x1x40x8xf32> to vector<40x8xf32>
    %c0_65 = arith.constant 0 : index
    %c2_66 = arith.constant 2 : index
    %c0_67 = arith.constant 0 : index
    %c0_68 = arith.constant 0 : index
    %121 = vector.load %arg7[%c0_65, %c2_66, %c0_67, %c0_68] : memref<2x4x40x32xf32, #tpu.memory_space<vmem>>, vector<1x1x40x32xf32>
    %122 = vector.shape_cast %121 : vector<1x1x40x32xf32> to vector<40x32xf32>
    %123 = vector.extract_strided_slice %118 {offsets = [0, 0], sizes = [32, 8], strides = [1, 1]} : vector<40x8xf32> to vector<32x8xf32>
    %cst_69 = arith.constant dense<0.000000e+00> : vector<32x8xf32>
    %124 = tpu.matmul %34, %123, %cst_69 {dimension_numbers = #tpu.dot_dimension_numbers<[1], [0], [0], [1], [0, 0, 1, 1], [], []>} : vector<32x32xf32>, vector<32x8xf32>, vector<32x8xf32> -> vector<32x8xf32>
    %125 = vector.extract_strided_slice %118 {offsets = [32, 0], sizes = [1, 8], strides = [1, 1]} : vector<40x8xf32> to vector<1x8xf32>
    %126 = vector.broadcast %125 : vector<1x8xf32> to vector<32x8xf32>
    %127 = arith.addf %124, %126 : vector<32x8xf32>
    %128 = vector.extract_strided_slice %120 {offsets = [0, 0], sizes = [32, 8], strides = [1, 1]} : vector<40x8xf32> to vector<32x8xf32>
    %cst_70 = arith.constant dense<0.000000e+00> : vector<32x8xf32>
    %129 = tpu.matmul %34, %128, %cst_70 {dimension_numbers = #tpu.dot_dimension_numbers<[1], [0], [0], [1], [0, 0, 1, 1], [], []>} : vector<32x32xf32>, vector<32x8xf32>, vector<32x8xf32> -> vector<32x8xf32>
    %130 = vector.extract_strided_slice %120 {offsets = [32, 0], sizes = [1, 8], strides = [1, 1]} : vector<40x8xf32> to vector<1x8xf32>
    %131 = vector.broadcast %130 : vector<1x8xf32> to vector<32x8xf32>
    %132 = arith.addf %129, %131 : vector<32x8xf32>
    %133 = vector.extract_strided_slice %122 {offsets = [0, 0], sizes = [32, 32], strides = [1, 1]} : vector<40x32xf32> to vector<32x32xf32>
    %cst_71 = arith.constant dense<0.000000e+00> : vector<32x32xf32>
    %134 = tpu.matmul %34, %133, %cst_71 {dimension_numbers = #tpu.dot_dimension_numbers<[1], [0], [0], [1], [0, 0, 1, 1], [], []>} : vector<32x32xf32>, vector<32x32xf32>, vector<32x32xf32> -> vector<32x32xf32>
    %135 = vector.extract_strided_slice %122 {offsets = [32, 0], sizes = [1, 32], strides = [1, 1]} : vector<40x32xf32> to vector<1x32xf32>
    %136 = vector.broadcast %135 : vector<1x32xf32> to vector<32x32xf32>
    %137 = arith.addf %134, %136 : vector<32x32xf32>
    %138 = vector.shape_cast %127 : vector<32x8xf32> to vector<4x8x8xf32>
    %139 = vector.shape_cast %132 : vector<32x8xf32> to vector<4x8x8xf32>
    %140 = vector.shape_cast %137 : vector<32x32xf32> to vector<4x8x32xf32>
    "tpu.trace_start"() <{level = 10 : i32, message = "bik,bjk->bij"}> : () -> ()
    %cst_72 = arith.constant dense<0.000000e+00> : vector<4x8x8xf32>
    %141 = tpu.matmul %138, %139, %cst_72 {dimension_numbers = #tpu.dot_dimension_numbers<[2], [2], [1], [1], [0, 0, 0, 1, 1, 1], [0], [0]>} : vector<4x8x8xf32>, vector<4x8x8xf32>, vector<4x8x8xf32> -> vector<4x8x8xf32>
    "tpu.trace_stop"() : () -> ()
    %cst_73 = arith.constant dense<0xFF800000> : vector<4x8xf32>
    %142 = vector.multi_reduction <maximumf>, %141, %cst_73 [2] : vector<4x8x8xf32> to vector<4x8xf32>
    %143 = vector.shape_cast %142 : vector<4x8xf32> to vector<4x8x1xf32>
    %144 = vector.broadcast %143 : vector<4x8x1xf32> to vector<4x8x8xf32>
    %145 = arith.subf %141, %144 : vector<4x8x8xf32>
    %146 = math.exp %145 : vector<4x8x8xf32>
    %cst_74 = arith.constant dense<0.000000e+00> : vector<4x8xf32>
    %147 = vector.multi_reduction <add>, %146, %cst_74 [2] : vector<4x8x8xf32> to vector<4x8xf32>
    %148 = vector.shape_cast %147 : vector<4x8xf32> to vector<4x8x1xf32>
    %149 = tpu.reciprocal %148 {approx = true} : vector<4x8x1xf32> -> vector<4x8x1xf32>
    %150 = vector.broadcast %149 : vector<4x8x1xf32> to vector<4x8x8xf32>
    %151 = arith.mulf %146, %150 : vector<4x8x8xf32>
    "tpu.trace_start"() <{level = 10 : i32, message = "bij,bjk->bik"}> : () -> ()
    %cst_75 = arith.constant dense<0.000000e+00> : vector<4x8x32xf32>
    %152 = tpu.matmul %151, %140, %cst_75 {dimension_numbers = #tpu.dot_dimension_numbers<[2], [1], [1], [2], [0, 0, 0, 1, 1, 2], [0], [0]>} : vector<4x8x8xf32>, vector<4x8x32xf32>, vector<4x8x32xf32> -> vector<4x8x32xf32>
    "tpu.trace_stop"() : () -> ()
    %153 = arith.addf %116, %152 : vector<4x8x32xf32>
    %c0_76 = arith.constant 0 : index
    %c3 = arith.constant 3 : index
    %c0_77 = arith.constant 0 : index
    %c0_78 = arith.constant 0 : index
    %154 = vector.load %arg5[%c0_76, %c3, %c0_77, %c0_78] : memref<2x4x40x8xf32, #tpu.memory_space<vmem>>, vector<1x1x40x8xf32>
    %155 = vector.shape_cast %154 : vector<1x1x40x8xf32> to vector<40x8xf32>
    %c0_79 = arith.constant 0 : index
    %c3_80 = arith.constant 3 : index
    %c0_81 = arith.constant 0 : index
    %c0_82 = arith.constant 0 : index
    %156 = vector.load %arg6[%c0_79, %c3_80, %c0_81, %c0_82] : memref<2x4x40x8xf32, #tpu.memory_space<vmem>>, vector<1x1x40x8xf32>
    %157 = vector.shape_cast %156 : vector<1x1x40x8xf32> to vector<40x8xf32>
    %c0_83 = arith.constant 0 : index
    %c3_84 = arith.constant 3 : index
    %c0_85 = arith.constant 0 : index
    %c0_86 = arith.constant 0 : index
    %158 = vector.load %arg7[%c0_83, %c3_84, %c0_85, %c0_86] : memref<2x4x40x32xf32, #tpu.memory_space<vmem>>, vector<1x1x40x32xf32>
    %159 = vector.shape_cast %158 : vector<1x1x40x32xf32> to vector<40x32xf32>
    %160 = vector.extract_strided_slice %155 {offsets = [0, 0], sizes = [32, 8], strides = [1, 1]} : vector<40x8xf32> to vector<32x8xf32>
    %cst_87 = arith.constant dense<0.000000e+00> : vector<32x8xf32>
    %161 = tpu.matmul %34, %160, %cst_87 {dimension_numbers = #tpu.dot_dimension_numbers<[1], [0], [0], [1], [0, 0, 1, 1], [], []>} : vector<32x32xf32>, vector<32x8xf32>, vector<32x8xf32> -> vector<32x8xf32>
    %162 = vector.extract_strided_slice %155 {offsets = [32, 0], sizes = [1, 8], strides = [1, 1]} : vector<40x8xf32> to vector<1x8xf32>
    %163 = vector.broadcast %162 : vector<1x8xf32> to vector<32x8xf32>
    %164 = arith.addf %161, %163 : vector<32x8xf32>
    %165 = vector.extract_strided_slice %157 {offsets = [0, 0], sizes = [32, 8], strides = [1, 1]} : vector<40x8xf32> to vector<32x8xf32>
    %cst_88 = arith.constant dense<0.000000e+00> : vector<32x8xf32>
    %166 = tpu.matmul %34, %165, %cst_88 {dimension_numbers = #tpu.dot_dimension_numbers<[1], [0], [0], [1], [0, 0, 1, 1], [], []>} : vector<32x32xf32>, vector<32x8xf32>, vector<32x8xf32> -> vector<32x8xf32>
    %167 = vector.extract_strided_slice %157 {offsets = [32, 0], sizes = [1, 8], strides = [1, 1]} : vector<40x8xf32> to vector<1x8xf32>
    %168 = vector.broadcast %167 : vector<1x8xf32> to vector<32x8xf32>
    %169 = arith.addf %166, %168 : vector<32x8xf32>
    %170 = vector.extract_strided_slice %159 {offsets = [0, 0], sizes = [32, 32], strides = [1, 1]} : vector<40x32xf32> to vector<32x32xf32>
    %cst_89 = arith.constant dense<0.000000e+00> : vector<32x32xf32>
    %171 = tpu.matmul %34, %170, %cst_89 {dimension_numbers = #tpu.dot_dimension_numbers<[1], [0], [0], [1], [0, 0, 1, 1], [], []>} : vector<32x32xf32>, vector<32x32xf32>, vector<32x32xf32> -> vector<32x32xf32>
    %172 = vector.extract_strided_slice %159 {offsets = [32, 0], sizes = [1, 32], strides = [1, 1]} : vector<40x32xf32> to vector<1x32xf32>
    %173 = vector.broadcast %172 : vector<1x32xf32> to vector<32x32xf32>
    %174 = arith.addf %171, %173 : vector<32x32xf32>
    %175 = vector.shape_cast %164 : vector<32x8xf32> to vector<4x8x8xf32>
    %176 = vector.shape_cast %169 : vector<32x8xf32> to vector<4x8x8xf32>
    %177 = vector.shape_cast %174 : vector<32x32xf32> to vector<4x8x32xf32>
    "tpu.trace_start"() <{level = 10 : i32, message = "bik,bjk->bij"}> : () -> ()
    %cst_90 = arith.constant dense<0.000000e+00> : vector<4x8x8xf32>
    %178 = tpu.matmul %175, %176, %cst_90 {dimension_numbers = #tpu.dot_dimension_numbers<[2], [2], [1], [1], [0, 0, 0, 1, 1, 1], [0], [0]>} : vector<4x8x8xf32>, vector<4x8x8xf32>, vector<4x8x8xf32> -> vector<4x8x8xf32>
    "tpu.trace_stop"() : () -> ()
    %cst_91 = arith.constant dense<0xFF800000> : vector<4x8xf32>
    %179 = vector.multi_reduction <maximumf>, %178, %cst_91 [2] : vector<4x8x8xf32> to vector<4x8xf32>
    %180 = vector.shape_cast %179 : vector<4x8xf32> to vector<4x8x1xf32>
    %181 = vector.broadcast %180 : vector<4x8x1xf32> to vector<4x8x8xf32>
    %182 = arith.subf %178, %181 : vector<4x8x8xf32>
    %183 = math.exp %182 : vector<4x8x8xf32>
    %cst_92 = arith.constant dense<0.000000e+00> : vector<4x8xf32>
    %184 = vector.multi_reduction <add>, %183, %cst_92 [2] : vector<4x8x8xf32> to vector<4x8xf32>
    %185 = vector.shape_cast %184 : vector<4x8xf32> to vector<4x8x1xf32>
    %186 = tpu.reciprocal %185 {approx = true} : vector<4x8x1xf32> -> vector<4x8x1xf32>
    %187 = vector.broadcast %186 : vector<4x8x1xf32> to vector<4x8x8xf32>
    %188 = arith.mulf %183, %187 : vector<4x8x8xf32>
    "tpu.trace_start"() <{level = 10 : i32, message = "bij,bjk->bik"}> : () -> ()
    %cst_93 = arith.constant dense<0.000000e+00> : vector<4x8x32xf32>
    %189 = tpu.matmul %188, %177, %cst_93 {dimension_numbers = #tpu.dot_dimension_numbers<[2], [1], [1], [2], [0, 0, 0, 1, 1, 2], [0], [0]>} : vector<4x8x8xf32>, vector<4x8x32xf32>, vector<4x8x32xf32> -> vector<4x8x32xf32>
    "tpu.trace_stop"() : () -> ()
    %190 = arith.addf %153, %189 : vector<4x8x32xf32>
    %191 = vector.shape_cast %190 : vector<4x8x32xf32> to vector<32x32xf32>
    %192 = vector.broadcast %41 : vector<1x32xf32> to vector<32x32xf32>
    %193 = arith.addf %191, %192 : vector<32x32xf32>
    %194 = arith.addf %193, %34 : vector<32x32xf32>
    %cst_94 = arith.constant dense<0.000000e+00> : vector<32xf32>
    %195 = vector.multi_reduction <add>, %194, %cst_94 [1] : vector<32x32xf32> to vector<32xf32>
    %196 = vector.shape_cast %195 : vector<32xf32> to vector<32x1xf32>
    %cst_95 = arith.constant 3.200000e+01 : f32
    %197 = vector.broadcast %cst_95 : f32 to vector<32x1xf32>
    %198 = arith.divf %196, %197 : vector<32x1xf32>
    %199 = vector.broadcast %198 : vector<32x1xf32> to vector<32x32xf32>
    %200 = arith.subf %194, %199 : vector<32x32xf32>
    %201 = arith.mulf %200, %200 : vector<32x32xf32>
    %cst_96 = arith.constant dense<0.000000e+00> : vector<32xf32>
    %202 = vector.multi_reduction <add>, %201, %cst_96 [1] : vector<32x32xf32> to vector<32xf32>
    %203 = vector.shape_cast %202 : vector<32xf32> to vector<32x1xf32>
    %cst_97 = arith.constant 3.200000e+01 : f32
    %204 = vector.broadcast %cst_97 : f32 to vector<32x1xf32>
    %205 = arith.divf %203, %204 : vector<32x1xf32>
    %206 = vector.broadcast %198 : vector<32x1xf32> to vector<32x32xf32>
    %207 = arith.subf %194, %206 : vector<32x32xf32>
    %cst_98 = arith.constant 9.99999974E-6 : f32
    %208 = vector.broadcast %cst_98 : f32 to vector<32x1xf32>
    %209 = arith.addf %205, %208 : vector<32x1xf32>
    %210 = math.rsqrt %209 : vector<32x1xf32>
    %211 = vector.broadcast %210 : vector<32x1xf32> to vector<32x32xf32>
    %212 = arith.mulf %207, %211 : vector<32x32xf32>
    %213 = vector.broadcast %37 : vector<1x32xf32> to vector<32x32xf32>
    %214 = arith.mulf %212, %213 : vector<32x32xf32>
    %215 = vector.broadcast %38 : vector<1x32xf32> to vector<32x32xf32>
    %216 = arith.addf %214, %215 : vector<32x32xf32>
    %c0_99 = arith.constant 0 : index
    %c0_100 = arith.constant 0 : index
    %c0_101 = arith.constant 0 : index
    %c0_102 = arith.constant 0 : index
    %217 = vector.load %arg8[%c0_99, %c0_100, %c0_101, %c0_102] : memref<2x2x40x32xf32, #tpu.memory_space<vmem>>, vector<1x1x40x32xf32>
    %218 = vector.shape_cast %217 : vector<1x1x40x32xf32> to vector<40x32xf32>
    %c0_103 = arith.constant 0 : index
    %c1_104 = arith.constant 1 : index
    %c0_105 = arith.constant 0 : index
    %c0_106 = arith.constant 0 : index
    %219 = vector.load %arg8[%c0_103, %c1_104, %c0_105, %c0_106] : memref<2x2x40x32xf32, #tpu.memory_space<vmem>>, vector<1x1x40x32xf32>
    %220 = vector.shape_cast %219 : vector<1x1x40x32xf32> to vector<40x32xf32>
    %221 = vector.extract_strided_slice %218 {offsets = [0, 0], sizes = [32, 32], strides = [1, 1]} : vector<40x32xf32> to vector<32x32xf32>
    %cst_107 = arith.constant dense<0.000000e+00> : vector<32x32xf32>
    %222 = tpu.matmul %216, %221, %cst_107 {dimension_numbers = #tpu.dot_dimension_numbers<[1], [0], [0], [1], [0, 0, 1, 1], [], []>} : vector<32x32xf32>, vector<32x32xf32>, vector<32x32xf32> -> vector<32x32xf32>
    %223 = vector.extract_strided_slice %218 {offsets = [32, 0], sizes = [1, 32], strides = [1, 1]} : vector<40x32xf32> to vector<1x32xf32>
    %224 = vector.broadcast %223 : vector<1x32xf32> to vector<32x32xf32>
    %225 = arith.addf %222, %224 : vector<32x32xf32>
    %cst_108 = arith.constant 0.000000e+00 : f32
    %226 = vector.broadcast %cst_108 : f32 to vector<32x32xf32>
    %227 = arith.maximumf %225, %226 : vector<32x32xf32>
    %228 = vector.extract_strided_slice %220 {offsets = [0, 0], sizes = [32, 32], strides = [1, 1]} : vector<40x32xf32> to vector<32x32xf32>
    %cst_109 = arith.constant dense<0.000000e+00> : vector<32x32xf32>
    %229 = tpu.matmul %227, %228, %cst_109 {dimension_numbers = #tpu.dot_dimension_numbers<[1], [0], [0], [1], [0, 0, 1, 1], [], []>} : vector<32x32xf32>, vector<32x32xf32>, vector<32x32xf32> -> vector<32x32xf32>
    %230 = vector.extract_strided_slice %220 {offsets = [32, 0], sizes = [1, 32], strides = [1, 1]} : vector<40x32xf32> to vector<1x32xf32>
    %231 = vector.broadcast %230 : vector<1x32xf32> to vector<32x32xf32>
    %232 = arith.addf %229, %231 : vector<32x32xf32>
    %233 = arith.addf %232, %216 : vector<32x32xf32>
    %cst_110 = arith.constant dense<0.000000e+00> : vector<32xf32>
    %234 = vector.multi_reduction <add>, %233, %cst_110 [1] : vector<32x32xf32> to vector<32xf32>
    %235 = vector.shape_cast %234 : vector<32xf32> to vector<32x1xf32>
    %cst_111 = arith.constant 3.200000e+01 : f32
    %236 = vector.broadcast %cst_111 : f32 to vector<32x1xf32>
    %237 = arith.divf %235, %236 : vector<32x1xf32>
    %238 = vector.broadcast %237 : vector<32x1xf32> to vector<32x32xf32>
    %239 = arith.subf %233, %238 : vector<32x32xf32>
    %240 = arith.mulf %239, %239 : vector<32x32xf32>
    %cst_112 = arith.constant dense<0.000000e+00> : vector<32xf32>
    %241 = vector.multi_reduction <add>, %240, %cst_112 [1] : vector<32x32xf32> to vector<32xf32>
    %242 = vector.shape_cast %241 : vector<32xf32> to vector<32x1xf32>
    %cst_113 = arith.constant 3.200000e+01 : f32
    %243 = vector.broadcast %cst_113 : f32 to vector<32x1xf32>
    %244 = arith.divf %242, %243 : vector<32x1xf32>
    %245 = vector.broadcast %237 : vector<32x1xf32> to vector<32x32xf32>
    %246 = arith.subf %233, %245 : vector<32x32xf32>
    %cst_114 = arith.constant 9.99999974E-6 : f32
    %247 = vector.broadcast %cst_114 : f32 to vector<32x1xf32>
    %248 = arith.addf %244, %247 : vector<32x1xf32>
    %249 = math.rsqrt %248 : vector<32x1xf32>
    %250 = vector.broadcast %249 : vector<32x1xf32> to vector<32x32xf32>
    %251 = arith.mulf %246, %250 : vector<32x32xf32>
    %252 = vector.broadcast %39 : vector<1x32xf32> to vector<32x32xf32>
    %253 = arith.mulf %251, %252 : vector<32x32xf32>
    %254 = vector.broadcast %40 : vector<1x32xf32> to vector<32x32xf32>
    %255 = arith.addf %253, %254 : vector<32x32xf32>
    %c1_115 = arith.constant 1 : index
    %c0_116 = arith.constant 0 : index
    %c0_117 = arith.constant 0 : index
    %256 = vector.load %arg9[%c1_115, %c0_116, %c0_117] : memref<2x8x32xf32, #tpu.memory_space<vmem>>, vector<1x8x32xf32>
    %257 = vector.shape_cast %256 : vector<1x8x32xf32> to vector<8x32xf32>
    %258 = vector.extract_strided_slice %257 {offsets = [0, 0], sizes = [1, 32], strides = [1, 1]} : vector<8x32xf32> to vector<1x32xf32>
    %259 = vector.extract_strided_slice %257 {offsets = [1, 0], sizes = [1, 32], strides = [1, 1]} : vector<8x32xf32> to vector<1x32xf32>
    %260 = vector.extract_strided_slice %257 {offsets = [2, 0], sizes = [1, 32], strides = [1, 1]} : vector<8x32xf32> to vector<1x32xf32>
    %261 = vector.extract_strided_slice %257 {offsets = [3, 0], sizes = [1, 32], strides = [1, 1]} : vector<8x32xf32> to vector<1x32xf32>
    %262 = vector.extract_strided_slice %257 {offsets = [4, 0], sizes = [1, 32], strides = [1, 1]} : vector<8x32xf32> to vector<1x32xf32>
    %cst_118 = arith.constant 0.000000e+00 : f32
    %263 = vector.broadcast %cst_118 : f32 to vector<4x8x32xf32>
    %c1_119 = arith.constant 1 : index
    %c0_120 = arith.constant 0 : index
    %c0_121 = arith.constant 0 : index
    %c0_122 = arith.constant 0 : index
    %264 = vector.load %arg5[%c1_119, %c0_120, %c0_121, %c0_122] : memref<2x4x40x8xf32, #tpu.memory_space<vmem>>, vector<1x1x40x8xf32>
    %265 = vector.shape_cast %264 : vector<1x1x40x8xf32> to vector<40x8xf32>
    %c1_123 = arith.constant 1 : index
    %c0_124 = arith.constant 0 : index
    %c0_125 = arith.constant 0 : index
    %c0_126 = arith.constant 0 : index
    %266 = vector.load %arg6[%c1_123, %c0_124, %c0_125, %c0_126] : memref<2x4x40x8xf32, #tpu.memory_space<vmem>>, vector<1x1x40x8xf32>
    %267 = vector.shape_cast %266 : vector<1x1x40x8xf32> to vector<40x8xf32>
    %c1_127 = arith.constant 1 : index
    %c0_128 = arith.constant 0 : index
    %c0_129 = arith.constant 0 : index
    %c0_130 = arith.constant 0 : index
    %268 = vector.load %arg7[%c1_127, %c0_128, %c0_129, %c0_130] : memref<2x4x40x32xf32, #tpu.memory_space<vmem>>, vector<1x1x40x32xf32>
    %269 = vector.shape_cast %268 : vector<1x1x40x32xf32> to vector<40x32xf32>
    %270 = vector.extract_strided_slice %265 {offsets = [0, 0], sizes = [32, 8], strides = [1, 1]} : vector<40x8xf32> to vector<32x8xf32>
    %cst_131 = arith.constant dense<0.000000e+00> : vector<32x8xf32>
    %271 = tpu.matmul %255, %270, %cst_131 {dimension_numbers = #tpu.dot_dimension_numbers<[1], [0], [0], [1], [0, 0, 1, 1], [], []>} : vector<32x32xf32>, vector<32x8xf32>, vector<32x8xf32> -> vector<32x8xf32>
    %272 = vector.extract_strided_slice %265 {offsets = [32, 0], sizes = [1, 8], strides = [1, 1]} : vector<40x8xf32> to vector<1x8xf32>
    %273 = vector.broadcast %272 : vector<1x8xf32> to vector<32x8xf32>
    %274 = arith.addf %271, %273 : vector<32x8xf32>
    %275 = vector.extract_strided_slice %267 {offsets = [0, 0], sizes = [32, 8], strides = [1, 1]} : vector<40x8xf32> to vector<32x8xf32>
    %cst_132 = arith.constant dense<0.000000e+00> : vector<32x8xf32>
    %276 = tpu.matmul %255, %275, %cst_132 {dimension_numbers = #tpu.dot_dimension_numbers<[1], [0], [0], [1], [0, 0, 1, 1], [], []>} : vector<32x32xf32>, vector<32x8xf32>, vector<32x8xf32> -> vector<32x8xf32>
    %277 = vector.extract_strided_slice %267 {offsets = [32, 0], sizes = [1, 8], strides = [1, 1]} : vector<40x8xf32> to vector<1x8xf32>
    %278 = vector.broadcast %277 : vector<1x8xf32> to vector<32x8xf32>
    %279 = arith.addf %276, %278 : vector<32x8xf32>
    %280 = vector.extract_strided_slice %269 {offsets = [0, 0], sizes = [32, 32], strides = [1, 1]} : vector<40x32xf32> to vector<32x32xf32>
    %cst_133 = arith.constant dense<0.000000e+00> : vector<32x32xf32>
    %281 = tpu.matmul %255, %280, %cst_133 {dimension_numbers = #tpu.dot_dimension_numbers<[1], [0], [0], [1], [0, 0, 1, 1], [], []>} : vector<32x32xf32>, vector<32x32xf32>, vector<32x32xf32> -> vector<32x32xf32>
    %282 = vector.extract_strided_slice %269 {offsets = [32, 0], sizes = [1, 32], strides = [1, 1]} : vector<40x32xf32> to vector<1x32xf32>
    %283 = vector.broadcast %282 : vector<1x32xf32> to vector<32x32xf32>
    %284 = arith.addf %281, %283 : vector<32x32xf32>
    %285 = vector.shape_cast %274 : vector<32x8xf32> to vector<4x8x8xf32>
    %286 = vector.shape_cast %279 : vector<32x8xf32> to vector<4x8x8xf32>
    %287 = vector.shape_cast %284 : vector<32x32xf32> to vector<4x8x32xf32>
    "tpu.trace_start"() <{level = 10 : i32, message = "bik,bjk->bij"}> : () -> ()
    %cst_134 = arith.constant dense<0.000000e+00> : vector<4x8x8xf32>
    %288 = tpu.matmul %285, %286, %cst_134 {dimension_numbers = #tpu.dot_dimension_numbers<[2], [2], [1], [1], [0, 0, 0, 1, 1, 1], [0], [0]>} : vector<4x8x8xf32>, vector<4x8x8xf32>, vector<4x8x8xf32> -> vector<4x8x8xf32>
    "tpu.trace_stop"() : () -> ()
    %cst_135 = arith.constant dense<0xFF800000> : vector<4x8xf32>
    %289 = vector.multi_reduction <maximumf>, %288, %cst_135 [2] : vector<4x8x8xf32> to vector<4x8xf32>
    %290 = vector.shape_cast %289 : vector<4x8xf32> to vector<4x8x1xf32>
    %291 = vector.broadcast %290 : vector<4x8x1xf32> to vector<4x8x8xf32>
    %292 = arith.subf %288, %291 : vector<4x8x8xf32>
    %293 = math.exp %292 : vector<4x8x8xf32>
    %cst_136 = arith.constant dense<0.000000e+00> : vector<4x8xf32>
    %294 = vector.multi_reduction <add>, %293, %cst_136 [2] : vector<4x8x8xf32> to vector<4x8xf32>
    %295 = vector.shape_cast %294 : vector<4x8xf32> to vector<4x8x1xf32>
    %296 = tpu.reciprocal %295 {approx = true} : vector<4x8x1xf32> -> vector<4x8x1xf32>
    %297 = vector.broadcast %296 : vector<4x8x1xf32> to vector<4x8x8xf32>
    %298 = arith.mulf %293, %297 : vector<4x8x8xf32>
    "tpu.trace_start"() <{level = 10 : i32, message = "bij,bjk->bik"}> : () -> ()
    %cst_137 = arith.constant dense<0.000000e+00> : vector<4x8x32xf32>
    %299 = tpu.matmul %298, %287, %cst_137 {dimension_numbers = #tpu.dot_dimension_numbers<[2], [1], [1], [2], [0, 0, 0, 1, 1, 2], [0], [0]>} : vector<4x8x8xf32>, vector<4x8x32xf32>, vector<4x8x32xf32> -> vector<4x8x32xf32>
    "tpu.trace_stop"() : () -> ()
    %300 = arith.addf %263, %299 : vector<4x8x32xf32>
    %c1_138 = arith.constant 1 : index
    %c1_139 = arith.constant 1 : index
    %c0_140 = arith.constant 0 : index
    %c0_141 = arith.constant 0 : index
    %301 = vector.load %arg5[%c1_138, %c1_139, %c0_140, %c0_141] : memref<2x4x40x8xf32, #tpu.memory_space<vmem>>, vector<1x1x40x8xf32>
    %302 = vector.shape_cast %301 : vector<1x1x40x8xf32> to vector<40x8xf32>
    %c1_142 = arith.constant 1 : index
    %c1_143 = arith.constant 1 : index
    %c0_144 = arith.constant 0 : index
    %c0_145 = arith.constant 0 : index
    %303 = vector.load %arg6[%c1_142, %c1_143, %c0_144, %c0_145] : memref<2x4x40x8xf32, #tpu.memory_space<vmem>>, vector<1x1x40x8xf32>
    %304 = vector.shape_cast %303 : vector<1x1x40x8xf32> to vector<40x8xf32>
    %c1_146 = arith.constant 1 : index
    %c1_147 = arith.constant 1 : index
    %c0_148 = arith.constant 0 : index
    %c0_149 = arith.constant 0 : index
    %305 = vector.load %arg7[%c1_146, %c1_147, %c0_148, %c0_149] : memref<2x4x40x32xf32, #tpu.memory_space<vmem>>, vector<1x1x40x32xf32>
    %306 = vector.shape_cast %305 : vector<1x1x40x32xf32> to vector<40x32xf32>
    %307 = vector.extract_strided_slice %302 {offsets = [0, 0], sizes = [32, 8], strides = [1, 1]} : vector<40x8xf32> to vector<32x8xf32>
    %cst_150 = arith.constant dense<0.000000e+00> : vector<32x8xf32>
    %308 = tpu.matmul %255, %307, %cst_150 {dimension_numbers = #tpu.dot_dimension_numbers<[1], [0], [0], [1], [0, 0, 1, 1], [], []>} : vector<32x32xf32>, vector<32x8xf32>, vector<32x8xf32> -> vector<32x8xf32>
    %309 = vector.extract_strided_slice %302 {offsets = [32, 0], sizes = [1, 8], strides = [1, 1]} : vector<40x8xf32> to vector<1x8xf32>
    %310 = vector.broadcast %309 : vector<1x8xf32> to vector<32x8xf32>
    %311 = arith.addf %308, %310 : vector<32x8xf32>
    %312 = vector.extract_strided_slice %304 {offsets = [0, 0], sizes = [32, 8], strides = [1, 1]} : vector<40x8xf32> to vector<32x8xf32>
    %cst_151 = arith.constant dense<0.000000e+00> : vector<32x8xf32>
    %313 = tpu.matmul %255, %312, %cst_151 {dimension_numbers = #tpu.dot_dimension_numbers<[1], [0], [0], [1], [0, 0, 1, 1], [], []>} : vector<32x32xf32>, vector<32x8xf32>, vector<32x8xf32> -> vector<32x8xf32>
    %314 = vector.extract_strided_slice %304 {offsets = [32, 0], sizes = [1, 8], strides = [1, 1]} : vector<40x8xf32> to vector<1x8xf32>
    %315 = vector.broadcast %314 : vector<1x8xf32> to vector<32x8xf32>
    %316 = arith.addf %313, %315 : vector<32x8xf32>
    %317 = vector.extract_strided_slice %306 {offsets = [0, 0], sizes = [32, 32], strides = [1, 1]} : vector<40x32xf32> to vector<32x32xf32>
    %cst_152 = arith.constant dense<0.000000e+00> : vector<32x32xf32>
    %318 = tpu.matmul %255, %317, %cst_152 {dimension_numbers = #tpu.dot_dimension_numbers<[1], [0], [0], [1], [0, 0, 1, 1], [], []>} : vector<32x32xf32>, vector<32x32xf32>, vector<32x32xf32> -> vector<32x32xf32>
    %319 = vector.extract_strided_slice %306 {offsets = [32, 0], sizes = [1, 32], strides = [1, 1]} : vector<40x32xf32> to vector<1x32xf32>
    %320 = vector.broadcast %319 : vector<1x32xf32> to vector<32x32xf32>
    %321 = arith.addf %318, %320 : vector<32x32xf32>
    %322 = vector.shape_cast %311 : vector<32x8xf32> to vector<4x8x8xf32>
    %323 = vector.shape_cast %316 : vector<32x8xf32> to vector<4x8x8xf32>
    %324 = vector.shape_cast %321 : vector<32x32xf32> to vector<4x8x32xf32>
    "tpu.trace_start"() <{level = 10 : i32, message = "bik,bjk->bij"}> : () -> ()
    %cst_153 = arith.constant dense<0.000000e+00> : vector<4x8x8xf32>
    %325 = tpu.matmul %322, %323, %cst_153 {dimension_numbers = #tpu.dot_dimension_numbers<[2], [2], [1], [1], [0, 0, 0, 1, 1, 1], [0], [0]>} : vector<4x8x8xf32>, vector<4x8x8xf32>, vector<4x8x8xf32> -> vector<4x8x8xf32>
    "tpu.trace_stop"() : () -> ()
    %cst_154 = arith.constant dense<0xFF800000> : vector<4x8xf32>
    %326 = vector.multi_reduction <maximumf>, %325, %cst_154 [2] : vector<4x8x8xf32> to vector<4x8xf32>
    %327 = vector.shape_cast %326 : vector<4x8xf32> to vector<4x8x1xf32>
    %328 = vector.broadcast %327 : vector<4x8x1xf32> to vector<4x8x8xf32>
    %329 = arith.subf %325, %328 : vector<4x8x8xf32>
    %330 = math.exp %329 : vector<4x8x8xf32>
    %cst_155 = arith.constant dense<0.000000e+00> : vector<4x8xf32>
    %331 = vector.multi_reduction <add>, %330, %cst_155 [2] : vector<4x8x8xf32> to vector<4x8xf32>
    %332 = vector.shape_cast %331 : vector<4x8xf32> to vector<4x8x1xf32>
    %333 = tpu.reciprocal %332 {approx = true} : vector<4x8x1xf32> -> vector<4x8x1xf32>
    %334 = vector.broadcast %333 : vector<4x8x1xf32> to vector<4x8x8xf32>
    %335 = arith.mulf %330, %334 : vector<4x8x8xf32>
    "tpu.trace_start"() <{level = 10 : i32, message = "bij,bjk->bik"}> : () -> ()
    %cst_156 = arith.constant dense<0.000000e+00> : vector<4x8x32xf32>
    %336 = tpu.matmul %335, %324, %cst_156 {dimension_numbers = #tpu.dot_dimension_numbers<[2], [1], [1], [2], [0, 0, 0, 1, 1, 2], [0], [0]>} : vector<4x8x8xf32>, vector<4x8x32xf32>, vector<4x8x32xf32> -> vector<4x8x32xf32>
    "tpu.trace_stop"() : () -> ()
    %337 = arith.addf %300, %336 : vector<4x8x32xf32>
    %c1_157 = arith.constant 1 : index
    %c2_158 = arith.constant 2 : index
    %c0_159 = arith.constant 0 : index
    %c0_160 = arith.constant 0 : index
    %338 = vector.load %arg5[%c1_157, %c2_158, %c0_159, %c0_160] : memref<2x4x40x8xf32, #tpu.memory_space<vmem>>, vector<1x1x40x8xf32>
    %339 = vector.shape_cast %338 : vector<1x1x40x8xf32> to vector<40x8xf32>
    %c1_161 = arith.constant 1 : index
    %c2_162 = arith.constant 2 : index
    %c0_163 = arith.constant 0 : index
    %c0_164 = arith.constant 0 : index
    %340 = vector.load %arg6[%c1_161, %c2_162, %c0_163, %c0_164] : memref<2x4x40x8xf32, #tpu.memory_space<vmem>>, vector<1x1x40x8xf32>
    %341 = vector.shape_cast %340 : vector<1x1x40x8xf32> to vector<40x8xf32>
    %c1_165 = arith.constant 1 : index
    %c2_166 = arith.constant 2 : index
    %c0_167 = arith.constant 0 : index
    %c0_168 = arith.constant 0 : index
    %342 = vector.load %arg7[%c1_165, %c2_166, %c0_167, %c0_168] : memref<2x4x40x32xf32, #tpu.memory_space<vmem>>, vector<1x1x40x32xf32>
    %343 = vector.shape_cast %342 : vector<1x1x40x32xf32> to vector<40x32xf32>
    %344 = vector.extract_strided_slice %339 {offsets = [0, 0], sizes = [32, 8], strides = [1, 1]} : vector<40x8xf32> to vector<32x8xf32>
    %cst_169 = arith.constant dense<0.000000e+00> : vector<32x8xf32>
    %345 = tpu.matmul %255, %344, %cst_169 {dimension_numbers = #tpu.dot_dimension_numbers<[1], [0], [0], [1], [0, 0, 1, 1], [], []>} : vector<32x32xf32>, vector<32x8xf32>, vector<32x8xf32> -> vector<32x8xf32>
    %346 = vector.extract_strided_slice %339 {offsets = [32, 0], sizes = [1, 8], strides = [1, 1]} : vector<40x8xf32> to vector<1x8xf32>
    %347 = vector.broadcast %346 : vector<1x8xf32> to vector<32x8xf32>
    %348 = arith.addf %345, %347 : vector<32x8xf32>
    %349 = vector.extract_strided_slice %341 {offsets = [0, 0], sizes = [32, 8], strides = [1, 1]} : vector<40x8xf32> to vector<32x8xf32>
    %cst_170 = arith.constant dense<0.000000e+00> : vector<32x8xf32>
    %350 = tpu.matmul %255, %349, %cst_170 {dimension_numbers = #tpu.dot_dimension_numbers<[1], [0], [0], [1], [0, 0, 1, 1], [], []>} : vector<32x32xf32>, vector<32x8xf32>, vector<32x8xf32> -> vector<32x8xf32>
    %351 = vector.extract_strided_slice %341 {offsets = [32, 0], sizes = [1, 8], strides = [1, 1]} : vector<40x8xf32> to vector<1x8xf32>
    %352 = vector.broadcast %351 : vector<1x8xf32> to vector<32x8xf32>
    %353 = arith.addf %350, %352 : vector<32x8xf32>
    %354 = vector.extract_strided_slice %343 {offsets = [0, 0], sizes = [32, 32], strides = [1, 1]} : vector<40x32xf32> to vector<32x32xf32>
    %cst_171 = arith.constant dense<0.000000e+00> : vector<32x32xf32>
    %355 = tpu.matmul %255, %354, %cst_171 {dimension_numbers = #tpu.dot_dimension_numbers<[1], [0], [0], [1], [0, 0, 1, 1], [], []>} : vector<32x32xf32>, vector<32x32xf32>, vector<32x32xf32> -> vector<32x32xf32>
    %356 = vector.extract_strided_slice %343 {offsets = [32, 0], sizes = [1, 32], strides = [1, 1]} : vector<40x32xf32> to vector<1x32xf32>
    %357 = vector.broadcast %356 : vector<1x32xf32> to vector<32x32xf32>
    %358 = arith.addf %355, %357 : vector<32x32xf32>
    %359 = vector.shape_cast %348 : vector<32x8xf32> to vector<4x8x8xf32>
    %360 = vector.shape_cast %353 : vector<32x8xf32> to vector<4x8x8xf32>
    %361 = vector.shape_cast %358 : vector<32x32xf32> to vector<4x8x32xf32>
    "tpu.trace_start"() <{level = 10 : i32, message = "bik,bjk->bij"}> : () -> ()
    %cst_172 = arith.constant dense<0.000000e+00> : vector<4x8x8xf32>
    %362 = tpu.matmul %359, %360, %cst_172 {dimension_numbers = #tpu.dot_dimension_numbers<[2], [2], [1], [1], [0, 0, 0, 1, 1, 1], [0], [0]>} : vector<4x8x8xf32>, vector<4x8x8xf32>, vector<4x8x8xf32> -> vector<4x8x8xf32>
    "tpu.trace_stop"() : () -> ()
    %cst_173 = arith.constant dense<0xFF800000> : vector<4x8xf32>
    %363 = vector.multi_reduction <maximumf>, %362, %cst_173 [2] : vector<4x8x8xf32> to vector<4x8xf32>
    %364 = vector.shape_cast %363 : vector<4x8xf32> to vector<4x8x1xf32>
    %365 = vector.broadcast %364 : vector<4x8x1xf32> to vector<4x8x8xf32>
    %366 = arith.subf %362, %365 : vector<4x8x8xf32>
    %367 = math.exp %366 : vector<4x8x8xf32>
    %cst_174 = arith.constant dense<0.000000e+00> : vector<4x8xf32>
    %368 = vector.multi_reduction <add>, %367, %cst_174 [2] : vector<4x8x8xf32> to vector<4x8xf32>
    %369 = vector.shape_cast %368 : vector<4x8xf32> to vector<4x8x1xf32>
    %370 = tpu.reciprocal %369 {approx = true} : vector<4x8x1xf32> -> vector<4x8x1xf32>
    %371 = vector.broadcast %370 : vector<4x8x1xf32> to vector<4x8x8xf32>
    %372 = arith.mulf %367, %371 : vector<4x8x8xf32>
    "tpu.trace_start"() <{level = 10 : i32, message = "bij,bjk->bik"}> : () -> ()
    %cst_175 = arith.constant dense<0.000000e+00> : vector<4x8x32xf32>
    %373 = tpu.matmul %372, %361, %cst_175 {dimension_numbers = #tpu.dot_dimension_numbers<[2], [1], [1], [2], [0, 0, 0, 1, 1, 2], [0], [0]>} : vector<4x8x8xf32>, vector<4x8x32xf32>, vector<4x8x32xf32> -> vector<4x8x32xf32>
    "tpu.trace_stop"() : () -> ()
    %374 = arith.addf %337, %373 : vector<4x8x32xf32>
    %c1_176 = arith.constant 1 : index
    %c3_177 = arith.constant 3 : index
    %c0_178 = arith.constant 0 : index
    %c0_179 = arith.constant 0 : index
    %375 = vector.load %arg5[%c1_176, %c3_177, %c0_178, %c0_179] : memref<2x4x40x8xf32, #tpu.memory_space<vmem>>, vector<1x1x40x8xf32>
    %376 = vector.shape_cast %375 : vector<1x1x40x8xf32> to vector<40x8xf32>
    %c1_180 = arith.constant 1 : index
    %c3_181 = arith.constant 3 : index
    %c0_182 = arith.constant 0 : index
    %c0_183 = arith.constant 0 : index
    %377 = vector.load %arg6[%c1_180, %c3_181, %c0_182, %c0_183] : memref<2x4x40x8xf32, #tpu.memory_space<vmem>>, vector<1x1x40x8xf32>
    %378 = vector.shape_cast %377 : vector<1x1x40x8xf32> to vector<40x8xf32>
    %c1_184 = arith.constant 1 : index
    %c3_185 = arith.constant 3 : index
    %c0_186 = arith.constant 0 : index
    %c0_187 = arith.constant 0 : index
    %379 = vector.load %arg7[%c1_184, %c3_185, %c0_186, %c0_187] : memref<2x4x40x32xf32, #tpu.memory_space<vmem>>, vector<1x1x40x32xf32>
    %380 = vector.shape_cast %379 : vector<1x1x40x32xf32> to vector<40x32xf32>
    %381 = vector.extract_strided_slice %376 {offsets = [0, 0], sizes = [32, 8], strides = [1, 1]} : vector<40x8xf32> to vector<32x8xf32>
    %cst_188 = arith.constant dense<0.000000e+00> : vector<32x8xf32>
    %382 = tpu.matmul %255, %381, %cst_188 {dimension_numbers = #tpu.dot_dimension_numbers<[1], [0], [0], [1], [0, 0, 1, 1], [], []>} : vector<32x32xf32>, vector<32x8xf32>, vector<32x8xf32> -> vector<32x8xf32>
    %383 = vector.extract_strided_slice %376 {offsets = [32, 0], sizes = [1, 8], strides = [1, 1]} : vector<40x8xf32> to vector<1x8xf32>
    %384 = vector.broadcast %383 : vector<1x8xf32> to vector<32x8xf32>
    %385 = arith.addf %382, %384 : vector<32x8xf32>
    %386 = vector.extract_strided_slice %378 {offsets = [0, 0], sizes = [32, 8], strides = [1, 1]} : vector<40x8xf32> to vector<32x8xf32>
    %cst_189 = arith.constant dense<0.000000e+00> : vector<32x8xf32>
    %387 = tpu.matmul %255, %386, %cst_189 {dimension_numbers = #tpu.dot_dimension_numbers<[1], [0], [0], [1], [0, 0, 1, 1], [], []>} : vector<32x32xf32>, vector<32x8xf32>, vector<32x8xf32> -> vector<32x8xf32>
    %388 = vector.extract_strided_slice %378 {offsets = [32, 0], sizes = [1, 8], strides = [1, 1]} : vector<40x8xf32> to vector<1x8xf32>
    %389 = vector.broadcast %388 : vector<1x8xf32> to vector<32x8xf32>
    %390 = arith.addf %387, %389 : vector<32x8xf32>
    %391 = vector.extract_strided_slice %380 {offsets = [0, 0], sizes = [32, 32], strides = [1, 1]} : vector<40x32xf32> to vector<32x32xf32>
    %cst_190 = arith.constant dense<0.000000e+00> : vector<32x32xf32>
    %392 = tpu.matmul %255, %391, %cst_190 {dimension_numbers = #tpu.dot_dimension_numbers<[1], [0], [0], [1], [0, 0, 1, 1], [], []>} : vector<32x32xf32>, vector<32x32xf32>, vector<32x32xf32> -> vector<32x32xf32>
    %393 = vector.extract_strided_slice %380 {offsets = [32, 0], sizes = [1, 32], strides = [1, 1]} : vector<40x32xf32> to vector<1x32xf32>
    %394 = vector.broadcast %393 : vector<1x32xf32> to vector<32x32xf32>
    %395 = arith.addf %392, %394 : vector<32x32xf32>
    %396 = vector.shape_cast %385 : vector<32x8xf32> to vector<4x8x8xf32>
    %397 = vector.shape_cast %390 : vector<32x8xf32> to vector<4x8x8xf32>
    %398 = vector.shape_cast %395 : vector<32x32xf32> to vector<4x8x32xf32>
    "tpu.trace_start"() <{level = 10 : i32, message = "bik,bjk->bij"}> : () -> ()
    %cst_191 = arith.constant dense<0.000000e+00> : vector<4x8x8xf32>
    %399 = tpu.matmul %396, %397, %cst_191 {dimension_numbers = #tpu.dot_dimension_numbers<[2], [2], [1], [1], [0, 0, 0, 1, 1, 1], [0], [0]>} : vector<4x8x8xf32>, vector<4x8x8xf32>, vector<4x8x8xf32> -> vector<4x8x8xf32>
    "tpu.trace_stop"() : () -> ()
    %cst_192 = arith.constant dense<0xFF800000> : vector<4x8xf32>
    %400 = vector.multi_reduction <maximumf>, %399, %cst_192 [2] : vector<4x8x8xf32> to vector<4x8xf32>
    %401 = vector.shape_cast %400 : vector<4x8xf32> to vector<4x8x1xf32>
    %402 = vector.broadcast %401 : vector<4x8x1xf32> to vector<4x8x8xf32>
    %403 = arith.subf %399, %402 : vector<4x8x8xf32>
    %404 = math.exp %403 : vector<4x8x8xf32>
    %cst_193 = arith.constant dense<0.000000e+00> : vector<4x8xf32>
    %405 = vector.multi_reduction <add>, %404, %cst_193 [2] : vector<4x8x8xf32> to vector<4x8xf32>
    %406 = vector.shape_cast %405 : vector<4x8xf32> to vector<4x8x1xf32>
    %407 = tpu.reciprocal %406 {approx = true} : vector<4x8x1xf32> -> vector<4x8x1xf32>
    %408 = vector.broadcast %407 : vector<4x8x1xf32> to vector<4x8x8xf32>
    %409 = arith.mulf %404, %408 : vector<4x8x8xf32>
    "tpu.trace_start"() <{level = 10 : i32, message = "bij,bjk->bik"}> : () -> ()
    %cst_194 = arith.constant dense<0.000000e+00> : vector<4x8x32xf32>
    %410 = tpu.matmul %409, %398, %cst_194 {dimension_numbers = #tpu.dot_dimension_numbers<[2], [1], [1], [2], [0, 0, 0, 1, 1, 2], [0], [0]>} : vector<4x8x8xf32>, vector<4x8x32xf32>, vector<4x8x32xf32> -> vector<4x8x32xf32>
    "tpu.trace_stop"() : () -> ()
    %411 = arith.addf %374, %410 : vector<4x8x32xf32>
    %412 = vector.shape_cast %411 : vector<4x8x32xf32> to vector<32x32xf32>
    %413 = vector.broadcast %262 : vector<1x32xf32> to vector<32x32xf32>
    %414 = arith.addf %412, %413 : vector<32x32xf32>
    %415 = arith.addf %414, %255 : vector<32x32xf32>
    %cst_195 = arith.constant dense<0.000000e+00> : vector<32xf32>
    %416 = vector.multi_reduction <add>, %415, %cst_195 [1] : vector<32x32xf32> to vector<32xf32>
    %417 = vector.shape_cast %416 : vector<32xf32> to vector<32x1xf32>
    %cst_196 = arith.constant 3.200000e+01 : f32
    %418 = vector.broadcast %cst_196 : f32 to vector<32x1xf32>
    %419 = arith.divf %417, %418 : vector<32x1xf32>
    %420 = vector.broadcast %419 : vector<32x1xf32> to vector<32x32xf32>
    %421 = arith.subf %415, %420 : vector<32x32xf32>
    %422 = arith.mulf %421, %421 : vector<32x32xf32>
    %cst_197 = arith.constant dense<0.000000e+00> : vector<32xf32>
    %423 = vector.multi_reduction <add>, %422, %cst_197 [1] : vector<32x32xf32> to vector<32xf32>
    %424 = vector.shape_cast %423 : vector<32xf32> to vector<32x1xf32>
    %cst_198 = arith.constant 3.200000e+01 : f32
    %425 = vector.broadcast %cst_198 : f32 to vector<32x1xf32>
    %426 = arith.divf %424, %425 : vector<32x1xf32>
    %427 = vector.broadcast %419 : vector<32x1xf32> to vector<32x32xf32>
    %428 = arith.subf %415, %427 : vector<32x32xf32>
    %cst_199 = arith.constant 9.99999974E-6 : f32
    %429 = vector.broadcast %cst_199 : f32 to vector<32x1xf32>
    %430 = arith.addf %426, %429 : vector<32x1xf32>
    %431 = math.rsqrt %430 : vector<32x1xf32>
    %432 = vector.broadcast %431 : vector<32x1xf32> to vector<32x32xf32>
    %433 = arith.mulf %428, %432 : vector<32x32xf32>
    %434 = vector.broadcast %258 : vector<1x32xf32> to vector<32x32xf32>
    %435 = arith.mulf %433, %434 : vector<32x32xf32>
    %436 = vector.broadcast %259 : vector<1x32xf32> to vector<32x32xf32>
    %437 = arith.addf %435, %436 : vector<32x32xf32>
    %c1_200 = arith.constant 1 : index
    %c0_201 = arith.constant 0 : index
    %c0_202 = arith.constant 0 : index
    %c0_203 = arith.constant 0 : index
    %438 = vector.load %arg8[%c1_200, %c0_201, %c0_202, %c0_203] : memref<2x2x40x32xf32, #tpu.memory_space<vmem>>, vector<1x1x40x32xf32>
    %439 = vector.shape_cast %438 : vector<1x1x40x32xf32> to vector<40x32xf32>
    %c1_204 = arith.constant 1 : index
    %c1_205 = arith.constant 1 : index
    %c0_206 = arith.constant 0 : index
    %c0_207 = arith.constant 0 : index
    %440 = vector.load %arg8[%c1_204, %c1_205, %c0_206, %c0_207] : memref<2x2x40x32xf32, #tpu.memory_space<vmem>>, vector<1x1x40x32xf32>
    %441 = vector.shape_cast %440 : vector<1x1x40x32xf32> to vector<40x32xf32>
    %442 = vector.extract_strided_slice %439 {offsets = [0, 0], sizes = [32, 32], strides = [1, 1]} : vector<40x32xf32> to vector<32x32xf32>
    %cst_208 = arith.constant dense<0.000000e+00> : vector<32x32xf32>
    %443 = tpu.matmul %437, %442, %cst_208 {dimension_numbers = #tpu.dot_dimension_numbers<[1], [0], [0], [1], [0, 0, 1, 1], [], []>} : vector<32x32xf32>, vector<32x32xf32>, vector<32x32xf32> -> vector<32x32xf32>
    %444 = vector.extract_strided_slice %439 {offsets = [32, 0], sizes = [1, 32], strides = [1, 1]} : vector<40x32xf32> to vector<1x32xf32>
    %445 = vector.broadcast %444 : vector<1x32xf32> to vector<32x32xf32>
    %446 = arith.addf %443, %445 : vector<32x32xf32>
    %cst_209 = arith.constant 0.000000e+00 : f32
    %447 = vector.broadcast %cst_209 : f32 to vector<32x32xf32>
    %448 = arith.maximumf %446, %447 : vector<32x32xf32>
    %449 = vector.extract_strided_slice %441 {offsets = [0, 0], sizes = [32, 32], strides = [1, 1]} : vector<40x32xf32> to vector<32x32xf32>
    %cst_210 = arith.constant dense<0.000000e+00> : vector<32x32xf32>
    %450 = tpu.matmul %448, %449, %cst_210 {dimension_numbers = #tpu.dot_dimension_numbers<[1], [0], [0], [1], [0, 0, 1, 1], [], []>} : vector<32x32xf32>, vector<32x32xf32>, vector<32x32xf32> -> vector<32x32xf32>
    %451 = vector.extract_strided_slice %441 {offsets = [32, 0], sizes = [1, 32], strides = [1, 1]} : vector<40x32xf32> to vector<1x32xf32>
    %452 = vector.broadcast %451 : vector<1x32xf32> to vector<32x32xf32>
    %453 = arith.addf %450, %452 : vector<32x32xf32>
    %454 = arith.addf %453, %437 : vector<32x32xf32>
    %cst_211 = arith.constant dense<0.000000e+00> : vector<32xf32>
    %455 = vector.multi_reduction <add>, %454, %cst_211 [1] : vector<32x32xf32> to vector<32xf32>
    %456 = vector.shape_cast %455 : vector<32xf32> to vector<32x1xf32>
    %cst_212 = arith.constant 3.200000e+01 : f32
    %457 = vector.broadcast %cst_212 : f32 to vector<32x1xf32>
    %458 = arith.divf %456, %457 : vector<32x1xf32>
    %459 = vector.broadcast %458 : vector<32x1xf32> to vector<32x32xf32>
    %460 = arith.subf %454, %459 : vector<32x32xf32>
    %461 = arith.mulf %460, %460 : vector<32x32xf32>
    %cst_213 = arith.constant dense<0.000000e+00> : vector<32xf32>
    %462 = vector.multi_reduction <add>, %461, %cst_213 [1] : vector<32x32xf32> to vector<32xf32>
    %463 = vector.shape_cast %462 : vector<32xf32> to vector<32x1xf32>
    %cst_214 = arith.constant 3.200000e+01 : f32
    %464 = vector.broadcast %cst_214 : f32 to vector<32x1xf32>
    %465 = arith.divf %463, %464 : vector<32x1xf32>
    %466 = vector.broadcast %458 : vector<32x1xf32> to vector<32x32xf32>
    %467 = arith.subf %454, %466 : vector<32x32xf32>
    %cst_215 = arith.constant 9.99999974E-6 : f32
    %468 = vector.broadcast %cst_215 : f32 to vector<32x1xf32>
    %469 = arith.addf %465, %468 : vector<32x1xf32>
    %470 = math.rsqrt %469 : vector<32x1xf32>
    %471 = vector.broadcast %470 : vector<32x1xf32> to vector<32x32xf32>
    %472 = arith.mulf %467, %471 : vector<32x32xf32>
    %473 = vector.broadcast %260 : vector<1x32xf32> to vector<32x32xf32>
    %474 = arith.mulf %472, %473 : vector<32x32xf32>
    %475 = vector.broadcast %261 : vector<1x32xf32> to vector<32x32xf32>
    %476 = arith.addf %474, %475 : vector<32x32xf32>
    %c0_216 = arith.constant 0 : index
    %c0_217 = arith.constant 0 : index
    %477 = vector.load %arg10[%c0_216, %c0_217] : memref<40x128xf32, #tpu.memory_space<vmem>>, vector<40x128xf32>
    %478 = vector.shape_cast %476 : vector<32x32xf32> to vector<4x8x32xf32>
    %cst_218 = arith.constant dense<0.000000e+00> : vector<4x32xf32>
    %479 = vector.multi_reduction <add>, %478, %cst_218 [1] : vector<4x8x32xf32> to vector<4x32xf32>
    %cst_219 = arith.constant 8.000000e+00 : f32
    %480 = vector.broadcast %cst_219 : f32 to vector<4x32xf32>
    %481 = arith.divf %479, %480 : vector<4x32xf32>
    %482 = vector.extract_strided_slice %477 {offsets = [0, 0], sizes = [32, 128], strides = [1, 1]} : vector<40x128xf32> to vector<32x128xf32>
    %cst_220 = arith.constant dense<0.000000e+00> : vector<4x128xf32>
    %483 = tpu.matmul %481, %482, %cst_220 {dimension_numbers = #tpu.dot_dimension_numbers<[1], [0], [0], [1], [0, 0, 1, 1], [], []>} : vector<4x32xf32>, vector<32x128xf32>, vector<4x128xf32> -> vector<4x128xf32>
    %484 = vector.extract_strided_slice %477 {offsets = [32, 0], sizes = [1, 128], strides = [1, 1]} : vector<40x128xf32> to vector<1x128xf32>
    %485 = vector.broadcast %484 : vector<1x128xf32> to vector<4x128xf32>
    %486 = arith.addf %483, %485 : vector<4x128xf32>
    %c0_221 = arith.constant 0 : index
    %c0_222 = arith.constant 0 : index
    %c0_223 = arith.constant 0 : index
    %487 = vector.load %arg11[%c0_221, %c0_222, %c0_223] : memref<1x4x128xf32, #tpu.memory_space<vmem>>, vector<1x4x128xf32>
    %488 = vector.shape_cast %487 : vector<1x4x128xf32> to vector<4x128xf32>
    %489 = vector.shape_cast %486 : vector<4x128xf32> to vector<1x4x128xf32>
    tpu.vector_store %arg11[%c0_221, %c0_222, %c0_223], %489 {strides = array<i32>} : memref<1x4x128xf32, #tpu.memory_space<vmem>>, vector<1x4x128xf32>,
    return
  }
  func.func @transform_0(%arg0: i32) -> (i32, i32) {
    %c0_i32 = arith.constant 0 : i32
    %c0_i32_0 = arith.constant 0 : i32
    return %arg0, %c0_i32 : i32, i32
  }
  func.func @transform_1(%arg0: i32) -> (i32, i32) {
    %c0_i32 = arith.constant 0 : i32
    %c0_i32_0 = arith.constant 0 : i32
    %c0_i32_1 = arith.constant 0 : i32
    return %c0_i32, %c0_i32_0 : i32, i32
  }
  func.func @transform_2(%arg0: i32) -> (i32, i32, i32) {
    %c0_i32 = arith.constant 0 : i32
    %c0_i32_0 = arith.constant 0 : i32
    %c0_i32_1 = arith.constant 0 : i32
    %c0_i32_2 = arith.constant 0 : i32
    return %c0_i32, %c0_i32_0, %c0_i32_1 : i32, i32, i32
  }
  func.func @transform_3(%arg0: i32) -> (i32, i32) {
    %c0_i32 = arith.constant 0 : i32
    %c0_i32_0 = arith.constant 0 : i32
    %c0_i32_1 = arith.constant 0 : i32
    return %c0_i32, %c0_i32_0 : i32, i32
  }
  func.func @transform_4(%arg0: i32) -> (i32, i32, i32, i32) {
    %c0_i32 = arith.constant 0 : i32
    %c0_i32_0 = arith.constant 0 : i32
    %c0_i32_1 = arith.constant 0 : i32
    %c0_i32_2 = arith.constant 0 : i32
    %c0_i32_3 = arith.constant 0 : i32
    return %c0_i32, %c0_i32_0, %c0_i32_1, %c0_i32_2 : i32, i32, i32, i32
  }
  func.func @transform_5(%arg0: i32) -> (i32, i32, i32, i32) {
    %c0_i32 = arith.constant 0 : i32
    %c0_i32_0 = arith.constant 0 : i32
    %c0_i32_1 = arith.constant 0 : i32
    %c0_i32_2 = arith.constant 0 : i32
    %c0_i32_3 = arith.constant 0 : i32
    return %c0_i32, %c0_i32_0, %c0_i32_1, %c0_i32_2 : i32, i32, i32, i32
  }
  func.func @transform_6(%arg0: i32) -> (i32, i32, i32, i32) {
    %c0_i32 = arith.constant 0 : i32
    %c0_i32_0 = arith.constant 0 : i32
    %c0_i32_1 = arith.constant 0 : i32
    %c0_i32_2 = arith.constant 0 : i32
    %c0_i32_3 = arith.constant 0 : i32
    return %c0_i32, %c0_i32_0, %c0_i32_1, %c0_i32_2 : i32, i32, i32, i32
  }
  func.func @transform_7(%arg0: i32) -> (i32, i32, i32, i32) {
    %c0_i32 = arith.constant 0 : i32
    %c0_i32_0 = arith.constant 0 : i32
    %c0_i32_1 = arith.constant 0 : i32
    %c0_i32_2 = arith.constant 0 : i32
    %c0_i32_3 = arith.constant 0 : i32
    return %c0_i32, %c0_i32_0, %c0_i32_1, %c0_i32_2 : i32, i32, i32, i32
  }
  func.func @transform_8(%arg0: i32) -> (i32, i32, i32) {
    %c0_i32 = arith.constant 0 : i32
    %c0_i32_0 = arith.constant 0 : i32
    %c0_i32_1 = arith.constant 0 : i32
    %c0_i32_2 = arith.constant 0 : i32
    return %c0_i32, %c0_i32_0, %c0_i32_1 : i32, i32, i32
  }
  func.func @transform_9(%arg0: i32) -> (i32, i32) {
    %c0_i32 = arith.constant 0 : i32
    %c0_i32_0 = arith.constant 0 : i32
    %c0_i32_1 = arith.constant 0 : i32
    return %c0_i32, %c0_i32_0 : i32, i32
  }
  func.func @transform_10(%arg0: i32) -> (i32, i32, i32) {
    %c0_i32 = arith.constant 0 : i32
    %c0_i32_0 = arith.constant 0 : i32
    %c0_i32_1 = arith.constant 0 : i32
    return %arg0, %c0_i32, %c0_i32_0 : i32, i32, i32
  }
}

</mosaic_0001>

<llo_original>
// kernel: forward.1
$region0: #{forward.1}
  #allocation0 [shape = 'u32[]', space=smem, size = 0x4, offset = 0x4, fixed_abs, tag = 'smem constant byte address 0x4 - core index']
  #allocation1 [shape = 'u32[72,128]{1,0:T(1,128)}', space=vmem, size = 0x9000, scoped, tag = 'internal scratch']
  %s0 = inlined_call_operand.vmem [shape: f32[64,8], index: 0, kind: input, shape index: {}]
  %s1 = inlined_call_operand.vmem [shape: f32[8,32], index: 1, kind: input, shape index: {}]
  %s2 = inlined_call_operand.vmem [shape: f32[2,32,32], index: 2, kind: input, shape index: {}]
  %s3 = inlined_call_operand.vmem [shape: f32[16,32], index: 3, kind: input, shape index: {}]
  %s4 = inlined_call_operand.vmem [shape: f32[2,4,40,8], index: 4, kind: input, shape index: {}]
  %s5 = inlined_call_operand.vmem [shape: f32[2,4,40,8], index: 5, kind: input, shape index: {}]
  %s6 = inlined_call_operand.vmem [shape: f32[2,4,40,32], index: 6, kind: input, shape index: {}]
  %s7 = inlined_call_operand.vmem [shape: f32[2,2,40,32], index: 7, kind: input, shape index: {}]
  %s8 = inlined_call_operand.vmem [shape: f32[2,8,32], index: 8, kind: input, shape index: {}]
  %s9 = inlined_call_operand.vmem [shape: f32[40,128], index: 9, kind: input, shape index: {}]
  %s10 = inlined_call_operand.hbm [shape: f32[2,4,128], index: 10, kind: output, shape index: {}]
  %s11 = sld [smem:[#allocation0]]
  $region73: #{forward.1} parent=0
    _
  %s13 = ssub.s32 1, %s11
  %s14 = scalar_select 0, %s13, %s11
  $region1: #{forward.1} parent=0
    #allocation2 [shape = 'u8[4096]{0}', space=vmem, size = 0x1000, scoped, tag = 'output window, operand 0']
    #allocation3 [shape = 's32[2]{0}', space=sflag, size = 0x8, scoped, tag = 'scoped memory for forward.1']
    %15 = vsyncpa [#allocation3], 0
    %s16 = scalar_lea.sflag [#allocation3], 1
    %17 = vsyncpa %s16, 0
    loop: start=0, step=1, limit=4
    $region2: #{forward.1} parent=1 // loop_pre_header
      _
    $region3: #{forward.1} parent=1 // loop_header
      %s19 = sphi 0, %s23
      %p20 = scmp.ge.s32.totalorder %s19, 4
      %s29 = sphi 0, %s31
      %s32 = sphi 0, %s29
      %s33 = sphi 0, %s32
      %s49 = sphi 0, %s33
      %s53 = sphi 0, %s53
      %s55 = sphi 0, %s53
      %s56 = sphi 0, %s55
      %s70 = sphi 0, %s56
      %s74 = sphi 0, %s74
      %s76 = sphi 0, %s74
      %s77 = sphi 0, %s76
      %s91 = sphi 0, %s77
      %s95 = sphi 0, %s95
      %s97 = sphi 0, %s95
      %s98 = sphi 0, %s97
      %s112 = sphi 0, %s98
      %s116 = sphi 0, %s116
      %s118 = sphi 0, %s116
      %s119 = sphi 0, %s118
      %s133 = sphi 0, %s119
      %s137 = sphi 0, %s137
      %s139 = sphi 0, %s137
      %s140 = sphi 0, %s139
      %s154 = sphi 0, %s140
      %s158 = sphi 0, %s158
      %s160 = sphi 0, %s158
      %s161 = sphi 0, %s160
      %s175 = sphi 0, %s161
      %s179 = sphi 0, %s179
      %s181 = sphi 0, %s179
      %s182 = sphi 0, %s181
      %s196 = sphi 0, %s182
      %s200 = sphi 0, %s200
      %s202 = sphi 0, %s200
      %s203 = sphi 0, %s202
      %s217 = sphi 0, %s203
      %s221 = sphi 0, %s221
      %s223 = sphi 0, %s221
      %s224 = sphi 0, %s223
      %s238 = sphi 0, %s224
      %s244 = sphi 0, %s246
      %s247 = sphi 0, %s244
      %s248 = sphi 0, %s247
      %s264 = sphi 0, %s248
    $region4: #{forward.1} parent=1 // loop_header_branch
      %22 = sbr.rel (%p20) target = $region8
    $region5: #{forward.1} parent=1 // loop_body
      %s24 = ssub.s32 %s19, 1
      %s25 = ssub.s32 %s19, 2
      %s26 = sadd.s32 %s19, 1
      %s27 = ssub.s32 %s19, %s26
      %p28 = scmp.eq.s32.totalorder %s27, 0
      %s30 = sadd.s32 %s29, 1
      %s31 = scalar_select %p28, %s29, %s30
      %p34 = pneg %p28
      %p35 = scmp.eq.s32.totalorder %s19, 1
      %p36 = por %p34, %p35
      %p37 = scmp.ne.s32.totalorder %s29, %s32
      %p38 = scmp.eq.s32.totalorder %s19, 0
      %p39 = por %p37, %p38
      %p40 = scmp.ne.s32.totalorder %s29, %s32
      %p41 = scmp.eq.s32.totalorder %s24, 1
      %p42 = por %p40, %p41
      %p43 = scmp.ne.s32.totalorder %s32, %s33
      %p44 = scmp.eq.s32.totalorder %s24, 0
      %p45 = por %p43, %p44
      %p46 = scmp.ne.s32.totalorder %s32, %s33
      %p47 = scmp.eq.s32.totalorder %s25, 1
      %p48 = por %p46, %p47
      %p50 = scmp.ne.s32.totalorder %s33, %s49
      %p51 = scmp.eq.s32.totalorder %s25, 0
      %p52 = por %p50, %p51
      %s54 = sadd.s32 %s53, 1
      %p57 = scmp.eq.s32.totalorder %s19, 1
      %p58 = scmp.ne.s32.totalorder %s53, %s55
      %p59 = scmp.eq.s32.totalorder %s19, 0
      %p60 = por %p58, %p59
      %p61 = scmp.ne.s32.totalorder %s53, %s55
      %p62 = scmp.eq.s32.totalorder %s24, 1
      %p63 = por %p61, %p62
      %p64 = scmp.ne.s32.totalorder %s55, %s56
      %p65 = scmp.eq.s32.totalorder %s24, 0
      %p66 = por %p64, %p65
      %p67 = scmp.ne.s32.totalorder %s55, %s56
      %p68 = scmp.eq.s32.totalorder %s25, 1
      %p69 = por %p67, %p68
      %p71 = scmp.ne.s32.totalorder %s56, %s70
      %p72 = scmp.eq.s32.totalorder %s25, 0
      %p73 = por %p71, %p72
      %s75 = sadd.s32 %s74, 1
      %p78 = scmp.eq.s32.totalorder %s19, 1
      %p79 = scmp.ne.s32.totalorder %s74, %s76
      %p80 = scmp.eq.s32.totalorder %s19, 0
      %p81 = por %p79, %p80
      %p82 = scmp.ne.s32.totalorder %s74, %s76
      %p83 = scmp.eq.s32.totalorder %s24, 1
      %p84 = por %p82, %p83
      %p85 = scmp.ne.s32.totalorder %s76, %s77
      %p86 = scmp.eq.s32.totalorder %s24, 0
      %p87 = por %p85, %p86
      %p88 = scmp.ne.s32.totalorder %s76, %s77
      %p89 = scmp.eq.s32.totalorder %s25, 1
      %p90 = por %p88, %p89
      %p92 = scmp.ne.s32.totalorder %s77, %s91
      %p93 = scmp.eq.s32.totalorder %s25, 0
      %p94 = por %p92, %p93
      %s96 = sadd.s32 %s95, 1
      %p99 = scmp.eq.s32.totalorder %s19, 1
      %p100 = scmp.ne.s32.totalorder %s95, %s97
      %p101 = scmp.eq.s32.totalorder %s19, 0
      %p102 = por %p100, %p101
      %p103 = scmp.ne.s32.totalorder %s95, %s97
      %p104 = scmp.eq.s32.totalorder %s24, 1
      %p105 = por %p103, %p104
      %p106 = scmp.ne.s32.totalorder %s97, %s98
      %p107 = scmp.eq.s32.totalorder %s24, 0
      %p108 = por %p106, %p107
      %p109 = scmp.ne.s32.totalorder %s97, %s98
      %p110 = scmp.eq.s32.totalorder %s25, 1
      %p111 = por %p109, %p110
      %p113 = scmp.ne.s32.totalorder %s98, %s112
      %p114 = scmp.eq.s32.totalorder %s25, 0
      %p115 = por %p113, %p114
      %s117 = sadd.s32 %s116, 1
      %p120 = scmp.eq.s32.totalorder %s19, 1
      %p121 = scmp.ne.s32.totalorder %s116, %s118
      %p122 = scmp.eq.s32.totalorder %s19, 0
      %p123 = por %p121, %p122
      %p124 = scmp.ne.s32.totalorder %s116, %s118
      %p125 = scmp.eq.s32.totalorder %s24, 1
      %p126 = por %p124, %p125
      %p127 = scmp.ne.s32.totalorder %s118, %s119
      %p128 = scmp.eq.s32.totalorder %s24, 0
      %p129 = por %p127, %p128
      %p130 = scmp.ne.s32.totalorder %s118, %s119
      %p131 = scmp.eq.s32.totalorder %s25, 1
      %p132 = por %p130, %p131
      %p134 = scmp.ne.s32.totalorder %s119, %s133
      %p135 = scmp.eq.s32.totalorder %s25, 0
      %p136 = por %p134, %p135
      %s138 = sadd.s32 %s137, 1
      %p141 = scmp.eq.s32.totalorder %s19, 1
      %p142 = scmp.ne.s32.totalorder %s137, %s139
      %p143 = scmp.eq.s32.totalorder %s19, 0
      %p144 = por %p142, %p143
      %p145 = scmp.ne.s32.totalorder %s137, %s139
      %p146 = scmp.eq.s32.totalorder %s24, 1
      %p147 = por %p145, %p146
      %p148 = scmp.ne.s32.totalorder %s139, %s140
      %p149 = scmp.eq.s32.totalorder %s24, 0
      %p150 = por %p148, %p149
      %p151 = scmp.ne.s32.totalorder %s139, %s140
      %p152 = scmp.eq.s32.totalorder %s25, 1
      %p153 = por %p151, %p152
      %p155 = scmp.ne.s32.totalorder %s140, %s154
      %p156 = scmp.eq.s32.totalorder %s25, 0
      %p157 = por %p155, %p156
      %s159 = sadd.s32 %s158, 1
      %p162 = scmp.eq.s32.totalorder %s19, 1
      %p163 = scmp.ne.s32.totalorder %s158, %s160
      %p164 = scmp.eq.s32.totalorder %s19, 0
      %p165 = por %p163, %p164
      %p166 = scmp.ne.s32.totalorder %s158, %s160
      %p167 = scmp.eq.s32.totalorder %s24, 1
      %p168 = por %p166, %p167
      %p169 = scmp.ne.s32.totalorder %s160, %s161
      %p170 = scmp.eq.s32.totalorder %s24, 0
      %p171 = por %p169, %p170
      %p172 = scmp.ne.s32.totalorder %s160, %s161
      %p173 = scmp.eq.s32.totalorder %s25, 1
      %p174 = por %p172, %p173
      %p176 = scmp.ne.s32.totalorder %s161, %s175
      %p177 = scmp.eq.s32.totalorder %s25, 0
      %p178 = por %p176, %p177
      %s180 = sadd.s32 %s179, 1
      %p183 = scmp.eq.s32.totalorder %s19, 1
      %p184 = scmp.ne.s32.totalorder %s179, %s181
      %p185 = scmp.eq.s32.totalorder %s19, 0
      %p186 = por %p184, %p185
      %p187 = scmp.ne.s32.totalorder %s179, %s181
      %p188 = scmp.eq.s32.totalorder %s24, 1
      %p189 = por %p187, %p188
      %p190 = scmp.ne.s32.totalorder %s181, %s182
      %p191 = scmp.eq.s32.totalorder %s24, 0
      %p192 = por %p190, %p191
      %p193 = scmp.ne.s32.totalorder %s181, %s182
      %p194 = scmp.eq.s32.totalorder %s25, 1
      %p195 = por %p193, %p194
      %p197 = scmp.ne.s32.totalorder %s182, %s196
      %p198 = scmp.eq.s32.totalorder %s25, 0
      %p199 = por %p197, %p198
      %s201 = sadd.s32 %s200, 1
      %p204 = scmp.eq.s32.totalorder %s19, 1
      %p205 = scmp.ne.s32.totalorder %s200, %s202
      %p206 = scmp.eq.s32.totalorder %s19, 0
      %p207 = por %p205, %p206
      %p208 = scmp.ne.s32.totalorder %s200, %s202
      %p209 = scmp.eq.s32.totalorder %s24, 1
      %p210 = por %p208, %p209
      %p211 = scmp.ne.s32.totalorder %s202, %s203
      %p212 = scmp.eq.s32.totalorder %s24, 0
      %p213 = por %p211, %p212
      %p214 = scmp.ne.s32.totalorder %s202, %s203
      %p215 = scmp.eq.s32.totalorder %s25, 1
      %p216 = por %p214, %p215
      %p218 = scmp.ne.s32.totalorder %s203, %s217
      %p219 = scmp.eq.s32.totalorder %s25, 0
      %p220 = por %p218, %p219
      %s222 = sadd.s32 %s221, 1
      %p225 = scmp.eq.s32.totalorder %s19, 1
      %p226 = scmp.ne.s32.totalorder %s221, %s223
      %p227 = scmp.eq.s32.totalorder %s19, 0
      %p228 = por %p226, %p227
      %p229 = scmp.ne.s32.totalorder %s221, %s223
      %p230 = scmp.eq.s32.totalorder %s24, 1
      %p231 = por %p229, %p230
      %p232 = scmp.ne.s32.totalorder %s223, %s224
      %p233 = scmp.eq.s32.totalorder %s24, 0
      %p234 = por %p232, %p233
      %p235 = scmp.ne.s32.totalorder %s223, %s224
      %p236 = scmp.eq.s32.totalorder %s25, 1
      %p237 = por %p235, %p236
      %p239 = scmp.ne.s32.totalorder %s224, %s238
      %p240 = scmp.eq.s32.totalorder %s25, 0
      %p241 = por %p239, %p240
      %s242 = ssub.s32 %s19, %s26
      %p243 = scmp.eq.s32.totalorder %s242, 0
      %s245 = sadd.s32 %s244, 1
      %s246 = scalar_select %p243, %s244, %s245
      %p249 = pneg %p243
      %p250 = scmp.eq.s32.totalorder %s19, 1
      %p251 = por %p249, %p250
      %p252 = scmp.ne.s32.totalorder %s244, %s247
      %p253 = scmp.eq.s32.totalorder %s19, 0
      %p254 = por %p252, %p253
      %p255 = scmp.ne.s32.totalorder %s244, %s247
      %p256 = scmp.eq.s32.totalorder %s24, 1
      %p257 = por %p255, %p256
      %p258 = scmp.ne.s32.totalorder %s247, %s248
      %p259 = scmp.eq.s32.totalorder %s24, 0
      %p260 = por %p258, %p259
      %p261 = scmp.ne.s32.totalorder %s247, %s248
      %p262 = scmp.eq.s32.totalorder %s25, 1
      %p263 = por %p261, %p262
      %p265 = scmp.ne.s32.totalorder %s248, %s264
      %p266 = scmp.eq.s32.totalorder %s25, 0
      %p267 = por %p265, %p266
      %p268 = scmp.le.s32.totalorder 1, %s19
      %p269 = scmp.lt.s32.totalorder %s19, 3
      %p270 = pnand %p268, %p269
      %p271 = pneg %p270
      // Predicated region
      $region9: #{forward.1} parent=5 // pred_check
        _
      $region10: #{forward.1} parent=5 // pred_check_branch
        %273 = sbr.rel (%p270) target = $region12
      $region11: #{forward.1} parent=5 // pred_region
        %s274 = ssub.s32 %s19, 1
        // Predicated region
        $region13: #{forward.1} parent=11 // pred_check
          %p275 = pneg %p66
        $region14: #{forward.1} parent=11 // pred_check_branch
          %277 = sbr.rel (%p275) target = $region16
        $region15: #{forward.1} parent=11 // pred_region
          _
        $region16: #{forward.1} parent=11 // pred_fallthru
          _
        // Predicated region
        $region17: #{forward.1} parent=11 // pred_check
          %p278 = pneg %p87
        $region18: #{forward.1} parent=11 // pred_check_branch
          %280 = sbr.rel (%p278) target = $region20
        $region19: #{forward.1} parent=11 // pred_region
          _
        $region20: #{forward.1} parent=11 // pred_fallthru
          _
        // Predicated region
        $region21: #{forward.1} parent=11 // pred_check
          %p281 = pneg %p108
        $region22: #{forward.1} parent=11 // pred_check_branch
          %283 = sbr.rel (%p281) target = $region24
        $region23: #{forward.1} parent=11 // pred_region
          _
        $region24: #{forward.1} parent=11 // pred_fallthru
          _
        // Predicated region
        $region25: #{forward.1} parent=11 // pred_check
          %p284 = pneg %p129
        $region26: #{forward.1} parent=11 // pred_check_branch
          %286 = sbr.rel (%p284) target = $region28
        $region27: #{forward.1} parent=11 // pred_region
          _
        $region28: #{forward.1} parent=11 // pred_fallthru
          _
        // Predicated region
        $region29: #{forward.1} parent=11 // pred_check
          %p287 = pneg %p150
        $region30: #{forward.1} parent=11 // pred_check_branch
          %289 = sbr.rel (%p287) target = $region32
        $region31: #{forward.1} parent=11 // pred_region
          _
        $region32: #{forward.1} parent=11 // pred_fallthru
          _
        // Predicated region
        $region33: #{forward.1} parent=11 // pred_check
          %p290 = pneg %p171
        $region34: #{forward.1} parent=11 // pred_check_branch
          %292 = sbr.rel (%p290) target = $region36
        $region35: #{forward.1} parent=11 // pred_region
          _
        $region36: #{forward.1} parent=11 // pred_fallthru
          _
        // Predicated region
        $region37: #{forward.1} parent=11 // pred_check
          %p293 = pneg %p192
        $region38: #{forward.1} parent=11 // pred_check_branch
          %295 = sbr.rel (%p293) target = $region40
        $region39: #{forward.1} parent=11 // pred_region
          _
        $region40: #{forward.1} parent=11 // pred_fallthru
          _
        // Predicated region
        $region41: #{forward.1} parent=11 // pred_check
          %p296 = pneg %p213
        $region42: #{forward.1} parent=11 // pred_check_branch
          %298 = sbr.rel (%p296) target = $region44
        $region43: #{forward.1} parent=11 // pred_region
          _
        $region44: #{forward.1} parent=11 // pred_fallthru
          _
        // Predicated region
        $region45: #{forward.1} parent=11 // pred_check
          %p299 = pneg %p234
        $region46: #{forward.1} parent=11 // pred_check_branch
          %301 = sbr.rel (%p299) target = $region48
        $region47: #{forward.1} parent=11 // pred_region
          _
        $region48: #{forward.1} parent=11 // pred_fallthru
          _
      $region12: #{forward.1} parent=5 // pred_fallthru
        _
      %p302 = scmp.lt.s32.totalorder %s19, 2
      // Predicated region
      $region49: #{forward.1} parent=5 // pred_check
        %p303 = pneg %p302
      $region50: #{forward.1} parent=5 // pred_check_branch
        %305 = sbr.rel (%p303) target = $region52
      $region51: #{forward.1} parent=5 // pred_region
        // Predicated region
        $region53: #{forward.1} parent=51 // pred_check
          %p306 = pneg %p39
        $region54: #{forward.1} parent=51 // pred_check_branch
          %308 = sbr.rel (%p306) target = $region56
        $region55: #{forward.1} parent=51 // pred_region
          %s309 = smul.u32 4, %s19
          %p310 = scmp.lt.s32.totalorder %s309, 7
          %s311 = scalar_select %p310, %s309, 7
          %s312 = smul.addr %s311, 8
          %s313 = scalar_lea.vmem %s0, %s312
          %s314 = smul.u32 4, %s19
        $region56: #{forward.1} parent=51 // pred_fallthru
          _
      $region52: #{forward.1} parent=5 // pred_fallthru
        _
      %p315 = scmp.le.s32.totalorder 1, %s19
      %p316 = scmp.lt.s32.totalorder %s19, 3
      %p317 = pnand %p315, %p316
      %p318 = pneg %p317
      // Predicated region
      $region57: #{forward.1} parent=5 // pred_check
        _
      $region58: #{forward.1} parent=5 // pred_check_branch
        %320 = sbr.rel (%p317) target = $region60
      $region59: #{forward.1} parent=5 // pred_region
        %s321 = ssub.s32 %s19, 1
        %s322 = smul.u32 4, %s24
        %p323 = scmp.lt.s32.totalorder %s322, 7
        %s324 = scalar_select %p323, %s322, 7
        %s325 = smul.addr %s324, 8
        %s326 = scalar_lea.vmem %s0, %s325
        %p327 = pneg %p45
        %p328 = pneg %p42
        %p329 = pneg %p66
        %p330 = pneg %p63
        %p331 = pneg %p87
        %p332 = pneg %p84
        %p333 = pneg %p108
        %p334 = pneg %p105
        %p335 = pneg %p129
        %p336 = pneg %p126
        %p337 = pneg %p150
        %p338 = pneg %p147
        %p339 = pneg %p171
        %p340 = pneg %p168
        %p341 = pneg %p192
        %p342 = pneg %p189
        %p343 = pneg %p213
        %p344 = pneg %p210
        %p345 = pneg %p234
        %p346 = pneg %p231
        %p347 = pneg %p260
        %p348 = pneg %p257
        %s349 = sand.u32 %s247, 1
        %s350 = scalar_lea.sflag [#allocation3], %s349
        %s351 = sand.u32 %s247, 1
        %s352 = smul.addr %s351, 4
        %s353 = scalar_lea.vmem [#allocation2], %s352
        %s354 = smul.u32 4, %s24
        %p355 = scmp.lt.s32.totalorder %s354, 7
        %s356 = scalar_select %p355, %s354, 7
        %s357 = smul.addr %s356, 8
        %s358 = scalar_lea.vmem %s0, %s357
        %s359 = smul.u32 4, %s24
        %v360 = vld [vmem:[%s358] sm:$0xff]
        %v361 = vld [vmem:[%s358 + $0x8] sm:$0xff]
        %v362 = vld [vmem:[%s358 + $0x10] sm:$0xff]
        %v363 = vld [vmem:[%s358 + $0x18] sm:$0xff]
        %v364 = vld [vmem:[%s1] sm:$0xff]
        %vm365 = vcmask 64512
        %v367 = vsel %vm365, %v360, 0
        %v370 = vsel %vm365, %v361, 0
        %v373 = vsel %vm365, %v362, 0
        %v376 = vsel %vm365, %v363, 0
        %378 = vmatpush.msra.mxu0 0.0
        %379 = vmatpush.msra.mxu0 0.0
        %380 = vmatpush.msra.mxu0 0.0
        %381 = vmatpush.msra.mxu0 0.0
        %382 = vmatpush.msra.mxu0 0.0
        %383 = vmatpush.msra.mxu0 0.0
        %384 = vmatpush.msra.mxu0 0.0
        %385 = vmatpush.msra.mxu0 0.0
        %386 = vmatpush.msra.mxu0 0.0
        %387 = vmatpush.msra.mxu0 0.0
        %388 = vmatpush.msra.mxu0 0.0
        %389 = vmatpush.msra.mxu0 0.0
        %390 = vmatpush.msra.mxu0 0.0
        %391 = vmatpush.msra.mxu0 0.0
        %392 = vmatpush.msra.mxu0 0.0
        %393 = vmatpush.msra.mxu0 %v364
        %394 = vmatmul.f32.gmra.mxu0 %v367
        %v395 = vpop.f32.mrf.mxu0
        %v396 = vadd.f32 0.0, %v395
        %397 = vmatmul.f32.gmra.mxu0 %v370
        %v398 = vpop.f32.mrf.mxu0
        %v399 = vadd.f32 0.0, %v398
        %400 = vmatmul.f32.gmra.mxu0 %v373
        %v401 = vpop.f32.mrf.mxu0
        %v402 = vadd.f32 0.0, %v401
        %403 = vmatmul.f32.gmra.mxu0 %v376
        %v404 = vpop.f32.mrf.mxu0
        %v405 = vadd.f32 0.0, %v404
        %406 = vdwg.mxu0
        %v407 = vld [vmem:[%s3] sm:$0xff]
        %v408 = vld [vmem:[%s3 + $0x8] sm:$0xff]
        %vm409 = vcmask 261120
        %v410 = vsel %vm409, %v396, 0.0
        %v411 = vrot.slane %v410, 4
        %v412 = vadd.f32 %v410, %v411
        %v413 = vrot.slane %v412, 2
        %v414 = vadd.f32 %v412, %v413
        %v415 = vrot.slane %v414, 1
        %v416 = vadd.f32 %v414, %v415
        %v417 = vsel %vm409, %v399, 0.0
        %v418 = vrot.slane %v417, 4
        %v419 = vadd.f32 %v417, %v418
        %v420 = vrot.slane %v419, 2
        %v421 = vadd.f32 %v419, %v420
        %v422 = vrot.slane %v421, 1
        %v423 = vadd.f32 %v421, %v422
        %v424 = vsel %vm409, %v402, 0.0
        %v425 = vrot.slane %v424, 4
        %v426 = vadd.f32 %v424, %v425
        %v427 = vrot.slane %v426, 2
        %v428 = vadd.f32 %v426, %v427
        %v429 = vrot.slane %v428, 1
        %v430 = vadd.f32 %v428, %v429
        %v431 = vsel %vm409, %v405, 0.0
        %v432 = vrot.slane %v431, 4
        %v433 = vadd.f32 %v431, %v432
        %v434 = vrot.slane %v433, 2
        %v435 = vadd.f32 %v433, %v434
        %v436 = vrot.slane %v435, 1
        %v437 = vadd.f32 %v435, %v436
        %v438 = vrcp.pop 8.0
        %v439 = vmul.f32 8.0, %v438
        %v440 = vsub.f32 1.0, %v439
        %v441 = vmul.f32 %v438, %v440
        %v442 = vadd.f32 %v438, %v441
        %vm443 = vweird.f32 %v438
        %v444 = vsel %vm443, %v438, %v442
        %v445 = vmul.f32 %v416, %v444
        %v446 = vmul.f32 %v423, %v444
        %v447 = vmul.f32 %v430, %v444
        %v448 = vmul.f32 %v437, %v444
        %v449 = vld [vmem:[%s2] sm:$0xff]
        %v450 = vld [vmem:[%s2 + $0x8] sm:$0xff]
        %v451 = vld [vmem:[%s2 + $0x10] sm:$0xff]
        %v452 = vld [vmem:[%s2 + $0x18] sm:$0xff]
        %v453 = vperm.slane %v408, 0
        %vm458 = vcmask 1041409
        %v459 = vsel %vm458, %v446, %v445
        %vm460 = vcmask 1042434
        %v461 = vsel %vm460, %v447, %v459
        %vm462 = vcmask 1043459
        %v463 = vsel %vm462, %v448, %v461
        %v464 = vsel %vm409, %v463, 0
        %466 = vmatpush.msra.mxu0 0.0
        %467 = vmatpush.msra.mxu0 0.0
        %468 = vmatpush.msra.mxu0 0.0
        %469 = vmatpush.msra.mxu0 0.0
        %470 = vmatpush.msra.mxu0 0.0
        %471 = vmatpush.msra.mxu0 0.0
        %472 = vmatpush.msra.mxu0 0.0
        %473 = vmatpush.msra.mxu0 0.0
        %474 = vmatpush.msra.mxu0 0.0
        %475 = vmatpush.msra.mxu0 0.0
        %476 = vmatpush.msra.mxu0 0.0
        %477 = vmatpush.msra.mxu0 0.0
        %478 = vmatpush.msra.mxu0 %v452
        %479 = vmatpush.msra.mxu0 %v451
        %480 = vmatpush.msra.mxu0 %v450
        %481 = vmatpush.msra.mxu0 %v449
        %482 = vmatmul.f32.gmra.mxu0 %v464
        %v483 = vpop.f32.mrf.mxu0
        %v484 = vadd.f32 %v453, %v483
        %485 = vdwg.mxu0
        %v486 = vmax.f32 %v484, 0.0
        %s487 = scalar_lea.vmem %s2, 32
        %v488 = vld [vmem:[%s487] sm:$0xff]
        %v489 = vld [vmem:[%s487 + $0x8] sm:$0xff]
        %v490 = vld [vmem:[%s487 + $0x10] sm:$0xff]
        %v491 = vld [vmem:[%s487 + $0x18] sm:$0xff]
        %v492 = vperm.slane %v408, 1
        %v494 = vsel %vm409, %v486, 0
        %496 = vmatpush.msra.mxu0 0.0
        %497 = vmatpush.msra.mxu0 0.0
        %498 = vmatpush.msra.mxu0 0.0
        %499 = vmatpush.msra.mxu0 0.0
        %500 = vmatpush.msra.mxu0 0.0
        %501 = vmatpush.msra.mxu0 0.0
        %502 = vmatpush.msra.mxu0 0.0
        %503 = vmatpush.msra.mxu0 0.0
        %504 = vmatpush.msra.mxu0 0.0
        %505 = vmatpush.msra.mxu0 0.0
        %506 = vmatpush.msra.mxu0 0.0
        %507 = vmatpush.msra.mxu0 0.0
        %508 = vmatpush.msra.mxu0 %v491
        %509 = vmatpush.msra.mxu0 %v490
        %510 = vmatpush.msra.mxu0 %v489
        %511 = vmatpush.msra.mxu0 %v488
        %512 = vmatmul.f32.gmra.mxu0 %v494
        %v513 = vpop.f32.mrf.mxu0
        %v514 = vadd.f32 %v492, %v513
        %515 = vdwg.mxu0
        %v516 = vxor.u32 %v514, 2147483648
        %v517 = vmul.f32 %v516, 1.442695
        %v518 = vpow.pop %v517
        %v519 = vadd.f32 %v518, 1.0
        %v520 = vrcp.pop %v519
        %v521 = vmul.f32 %v519, %v520
        %v522 = vsub.f32 1.0, %v521
        %v523 = vmul.f32 %v520, %v522
        %v524 = vadd.f32 %v520, %v523
        %vm525 = vweird.f32 %v519
        %vm526 = vweird.f32 %v520
        %vm527 = vmor %vm525, %vm526
        %v528 = vsel %vm527, %v520, %v524
        %v529 = vand.u32 2147483647, %v519
        %vm530 = vcmp.eq.f32.partialorder %v529, 8.507059e+37
        %v531 = vand.u32 %v519, 2147483648
        %v532 = vor.u32 1.1754944e-38, %v531
        %v533 = vsel %vm530, %v532, %v528
        %v534 = vmul.f32 1.0, %v533
        %v536 = vrot.slane %v534, 1
        %v537 = vrot.slane %v534, 2
        %v538 = vrot.slane %v534, 3
        %v539 = vperm.slane %v534, 0
        %v540 = vperm.slane %v536, 0
        %v541 = vperm.slane %v537, 0
        %v542 = vperm.slane %v538, 0
        %v547 = vmul.f32 %v396, %v539
        %v548 = vmul.f32 %v399, %v540
        %v549 = vmul.f32 %v402, %v541
        %v550 = vmul.f32 %v405, %v542
        %v551 = vadd.f32 %v547, %v407
        %v552 = vadd.f32 %v548, %v407
        %v553 = vadd.f32 %v549, %v407
        %v554 = vadd.f32 %v550, %v407
        %v555 = vld [vmem:[%s8] sm:$0xff]
        %v556 = vld [vmem:[%s4] sm:$0xff]
        %v557 = vld [vmem:[%s4 + $0x8] sm:$0xff]
        %v558 = vld [vmem:[%s4 + $0x10] sm:$0xff]
        %v559 = vld [vmem:[%s4 + $0x18] sm:$0xff]
        %v560 = vld [vmem:[%s4 + $0x20] sm:$0xff]
        %v561 = vld [vmem:[%s5] sm:$0xff]
        %v562 = vld [vmem:[%s5 + $0x8] sm:$0xff]
        %v563 = vld [vmem:[%s5 + $0x10] sm:$0xff]
        %v564 = vld [vmem:[%s5 + $0x18] sm:$0xff]
        %v565 = vld [vmem:[%s5 + $0x20] sm:$0xff]
        %v566 = vld [vmem:[%s6] sm:$0xff]
        %v567 = vld [vmem:[%s6 + $0x8] sm:$0xff]
        %v568 = vld [vmem:[%s6 + $0x10] sm:$0xff]
        %v569 = vld [vmem:[%s6 + $0x18] sm:$0xff]
        %v570 = vld [vmem:[%s6 + $0x20] sm:$0xff]
        %v571 = vperm.slane %v560, 0
        %v573 = vsel %vm409, %v551, 0
        %v576 = vsel %vm409, %v552, 0
        %v579 = vsel %vm409, %v553, 0
        %v582 = vsel %vm409, %v554, 0
        %584 = vmatpush.msra.mxu0 0.0
        %585 = vmatpush.msra.mxu0 0.0
        %586 = vmatpush.msra.mxu0 0.0
        %587 = vmatpush.msra.mxu0 0.0
        %588 = vmatpush.msra.mxu0 0.0
        %589 = vmatpush.msra.mxu0 0.0
        %590 = vmatpush.msra.mxu0 0.0
        %591 = vmatpush.msra.mxu0 0.0
        %592 = vmatpush.msra.mxu0 0.0
        %593 = vmatpush.msra.mxu0 0.0
        %594 = vmatpush.msra.mxu0 0.0
        %595 = vmatpush.msra.mxu0 0.0
        %596 = vmatpush.msra.mxu0 %v559
        %597 = vmatpush.msra.mxu0 %v558
        %598 = vmatpush.msra.mxu0 %v557
        %599 = vmatpush.msra.mxu0 %v556
        %600 = vmatmul.f32.gmra.mxu0 %v573
        %v601 = vpop.f32.mrf.mxu0
        %v602 = vadd.f32 %v571, %v601
        %603 = vmatmul.f32.gmra.mxu0 %v576
        %v604 = vpop.f32.mrf.mxu0
        %v605 = vadd.f32 %v571, %v604
        %606 = vmatmul.f32.gmra.mxu0 %v579
        %v607 = vpop.f32.mrf.mxu0
        %v608 = vadd.f32 %v571, %v607
        %609 = vmatmul.f32.gmra.mxu0 %v582
        %v610 = vpop.f32.mrf.mxu0
        %v611 = vadd.f32 %v571, %v610
        %612 = vdwg.mxu0
        %v613 = vperm.slane %v565, 0
        %614 = vmatpush.msra.mxu0 0.0
        %615 = vmatpush.msra.mxu0 0.0
        %616 = vmatpush.msra.mxu0 0.0
        %617 = vmatpush.msra.mxu0 0.0
        %618 = vmatpush.msra.mxu0 0.0
        %619 = vmatpush.msra.mxu0 0.0
        %620 = vmatpush.msra.mxu0 0.0
        %621 = vmatpush.msra.mxu0 0.0
        %622 = vmatpush.msra.mxu0 0.0
        %623 = vmatpush.msra.mxu0 0.0
        %624 = vmatpush.msra.mxu0 0.0
        %625 = vmatpush.msra.mxu0 0.0
        %626 = vmatpush.msra.mxu0 %v564
        %627 = vmatpush.msra.mxu0 %v563
        %628 = vmatpush.msra.mxu0 %v562
        %629 = vmatpush.msra.mxu0 %v561
        %630 = vmatmul.f32.gmra.mxu0 %v573
        %v631 = vpop.f32.mrf.mxu0
        %v632 = vadd.f32 %v613, %v631
        %633 = vmatmul.f32.gmra.mxu0 %v576
        %v634 = vpop.f32.mrf.mxu0
        %v635 = vadd.f32 %v613, %v634
        %636 = vmatmul.f32.gmra.mxu0 %v579
        %v637 = vpop.f32.mrf.mxu0
        %v638 = vadd.f32 %v613, %v637
        %639 = vmatmul.f32.gmra.mxu0 %v582
        %v640 = vpop.f32.mrf.mxu0
        %v641 = vadd.f32 %v613, %v640
        %642 = vdwg.mxu0
        %v643 = vperm.slane %v570, 0
        %644 = vmatpush.msra.mxu0 0.0
        %645 = vmatpush.msra.mxu0 0.0
        %646 = vmatpush.msra.mxu0 0.0
        %647 = vmatpush.msra.mxu0 0.0
        %648 = vmatpush.msra.mxu0 0.0
        %649 = vmatpush.msra.mxu0 0.0
        %650 = vmatpush.msra.mxu0 0.0
        %651 = vmatpush.msra.mxu0 0.0
        %652 = vmatpush.msra.mxu0 0.0
        %653 = vmatpush.msra.mxu0 0.0
        %654 = vmatpush.msra.mxu0 0.0
        %655 = vmatpush.msra.mxu0 0.0
        %656 = vmatpush.msra.mxu0 %v569
        %657 = vmatpush.msra.mxu0 %v568
        %658 = vmatpush.msra.mxu0 %v567
        %659 = vmatpush.msra.mxu0 %v566
        %660 = vmatmul.f32.gmra.mxu0 %v573
        %v661 = vpop.f32.mrf.mxu0
        %v662 = vadd.f32 %v643, %v661
        %663 = vmatmul.f32.gmra.mxu0 %v576
        %v664 = vpop.f32.mrf.mxu0
        %v665 = vadd.f32 %v643, %v664
        %666 = vmatmul.f32.gmra.mxu0 %v579
        %v667 = vpop.f32.mrf.mxu0
        %v668 = vadd.f32 %v643, %v667
        %669 = vmatmul.f32.gmra.mxu0 %v582
        %v670 = vpop.f32.mrf.mxu0
        %v671 = vadd.f32 %v643, %v670
        %672 = vdwg.mxu0
        %v674 = vsel %vm365, %v602, 0
        %v677 = vsel %vm365, %v632, 0
        %679 = vmatpush.xpose.msra.mxu0 0.0
        %680 = vmatpush.xpose.msra.mxu0 0.0
        %681 = vmatpush.xpose.msra.mxu0 0.0
        %682 = vmatpush.xpose.msra.mxu0 0.0
        %683 = vmatpush.xpose.msra.mxu0 0.0
        %684 = vmatpush.xpose.msra.mxu0 0.0
        %685 = vmatpush.xpose.msra.mxu0 0.0
        %686 = vmatpush.xpose.msra.mxu0 0.0
        %687 = vmatpush.xpose.msra.mxu0 0.0
        %688 = vmatpush.xpose.msra.mxu0 0.0
        %689 = vmatpush.xpose.msra.mxu0 0.0
        %690 = vmatpush.xpose.msra.mxu0 0.0
        %691 = vmatpush.xpose.msra.mxu0 0.0
        %692 = vmatpush.xpose.msra.mxu0 0.0
        %693 = vmatpush.xpose.msra.mxu0 0.0
        %694 = vmatpush.xpose.msra.mxu0 %v677
        %695 = vmatmul.f32.gmra.mxu0 %v674
        %v696 = vpop.f32.mrf.mxu0
        %v697 = vadd.f32 0.0, %v696
        %698 = vdwg.mxu0
        %v700 = vsel %vm365, %v605, 0
        %v703 = vsel %vm365, %v635, 0
        %705 = vmatpush.xpose.msra.mxu0 0.0
        %706 = vmatpush.xpose.msra.mxu0 0.0
        %707 = vmatpush.xpose.msra.mxu0 0.0
        %708 = vmatpush.xpose.msra.mxu0 0.0
        %709 = vmatpush.xpose.msra.mxu0 0.0
        %710 = vmatpush.xpose.msra.mxu0 0.0
        %711 = vmatpush.xpose.msra.mxu0 0.0
        %712 = vmatpush.xpose.msra.mxu0 0.0
        %713 = vmatpush.xpose.msra.mxu0 0.0
        %714 = vmatpush.xpose.msra.mxu0 0.0
        %715 = vmatpush.xpose.msra.mxu0 0.0
        %716 = vmatpush.xpose.msra.mxu0 0.0
        %717 = vmatpush.xpose.msra.mxu0 0.0
        %718 = vmatpush.xpose.msra.mxu0 0.0
        %719 = vmatpush.xpose.msra.mxu0 0.0
        %720 = vmatpush.xpose.msra.mxu0 %v703
        %721 = vmatmul.f32.gmra.mxu0 %v700
        %v722 = vpop.f32.mrf.mxu0
        %v723 = vadd.f32 0.0, %v722
        %724 = vdwg.mxu0
        %v726 = vsel %vm365, %v608, 0
        %v729 = vsel %vm365, %v638, 0
        %731 = vmatpush.xpose.msra.mxu0 0.0
        %732 = vmatpush.xpose.msra.mxu0 0.0
        %733 = vmatpush.xpose.msra.mxu0 0.0
        %734 = vmatpush.xpose.msra.mxu0 0.0
        %735 = vmatpush.xpose.msra.mxu0 0.0
        %736 = vmatpush.xpose.msra.mxu0 0.0
        %737 = vmatpush.xpose.msra.mxu0 0.0
        %738 = vmatpush.xpose.msra.mxu0 0.0
        %739 = vmatpush.xpose.msra.mxu0 0.0
        %740 = vmatpush.xpose.msra.mxu0 0.0
        %741 = vmatpush.xpose.msra.mxu0 0.0
        %742 = vmatpush.xpose.msra.mxu0 0.0
        %743 = vmatpush.xpose.msra.mxu0 0.0
        %744 = vmatpush.xpose.msra.mxu0 0.0
        %745 = vmatpush.xpose.msra.mxu0 0.0
        %746 = vmatpush.xpose.msra.mxu0 %v729
        %747 = vmatmul.f32.gmra.mxu0 %v726
        %v748 = vpop.f32.mrf.mxu0
        %v749 = vadd.f32 0.0, %v748
        %750 = vdwg.mxu0
        %v752 = vsel %vm365, %v611, 0
        %v755 = vsel %vm365, %v641, 0
        %757 = vmatpush.xpose.msra.mxu0 0.0
        %758 = vmatpush.xpose.msra.mxu0 0.0
        %759 = vmatpush.xpose.msra.mxu0 0.0
        %760 = vmatpush.xpose.msra.mxu0 0.0
        %761 = vmatpush.xpose.msra.mxu0 0.0
        %762 = vmatpush.xpose.msra.mxu0 0.0
        %763 = vmatpush.xpose.msra.mxu0 0.0
        %764 = vmatpush.xpose.msra.mxu0 0.0
        %765 = vmatpush.xpose.msra.mxu0 0.0
        %766 = vmatpush.xpose.msra.mxu0 0.0
        %767 = vmatpush.xpose.msra.mxu0 0.0
        %768 = vmatpush.xpose.msra.mxu0 0.0
        %769 = vmatpush.xpose.msra.mxu0 0.0
        %770 = vmatpush.xpose.msra.mxu0 0.0
        %771 = vmatpush.xpose.msra.mxu0 0.0
        %772 = vmatpush.xpose.msra.mxu0 %v755
        %773 = vmatmul.f32.gmra.mxu0 %v752
        %v774 = vpop.f32.mrf.mxu0
        %v775 = vadd.f32 0.0, %v774
        %776 = vdwg.mxu0
        %v777 = vsel %vm365, %v697, -inf
        %778 = vmax.xlane.f32.xlu0 %v777
        %v779 = vpop.xlane.xlu0 %778
        %v780 = vsel %vm365, %v723, -inf
        %781 = vmax.xlane.f32.xlu0 %v780
        %v782 = vpop.xlane.xlu0 %781
        %v783 = vsel %vm365, %v749, -inf
        %784 = vmax.xlane.f32.xlu0 %v783
        %v785 = vpop.xlane.xlu0 %784
        %v786 = vsel %vm365, %v775, -inf
        %787 = vmax.xlane.f32.xlu0 %v786
        %v788 = vpop.xlane.xlu0 %787
        %v789 = vsub.f32 %v697, %v779
        %v790 = vsub.f32 %v723, %v782
        %v791 = vsub.f32 %v749, %v785
        %v792 = vsub.f32 %v775, %v788
        %v793 = vmul.f32 %v789, 1.442695
        %v794 = vpow.pop %v793
        %v795 = vmul.f32 %v790, 1.442695
        %v796 = vpow.pop %v795
        %v797 = vmul.f32 %v791, 1.442695
        %v798 = vpow.pop %v797
        %v799 = vmul.f32 %v792, 1.442695
        %v800 = vpow.pop %v799
        %v801 = vsel %vm365, %v794, 0.0
        %802 = vadd.xlane.f32.xlu0 %v801
        %v803 = vpop.xlane.xlu0 %802
        %v804 = vsel %vm365, %v796, 0.0
        %805 = vadd.xlane.f32.xlu0 %v804
        %v806 = vpop.xlane.xlu0 %805
        %v807 = vsel %vm365, %v798, 0.0
        %808 = vadd.xlane.f32.xlu0 %v807
        %v809 = vpop.xlane.xlu0 %808
        %v810 = vsel %vm365, %v800, 0.0
        %811 = vadd.xlane.f32.xlu0 %v810
        %v812 = vpop.xlane.xlu0 %811
        %v813 = vrcp.pop %v803
        %v814 = vrcp.pop %v806
        %v815 = vrcp.pop %v809
        %v816 = vrcp.pop %v812
        %v817 = vmul.f32 %v794, %v813
        %v818 = vmul.f32 %v796, %v814
        %v819 = vmul.f32 %v798, %v815
        %v820 = vmul.f32 %v800, %v816
        %s821 = scalar_lea.vmem %s4, 40
        %v822 = vld [vmem:[%s821] sm:$0xff]
        %v823 = vld [vmem:[%s821 + $0x8] sm:$0xff]
        %v824 = vld [vmem:[%s821 + $0x10] sm:$0xff]
        %v825 = vld [vmem:[%s821 + $0x18] sm:$0xff]
        %v826 = vld [vmem:[%s821 + $0x20] sm:$0xff]
        %s827 = scalar_lea.vmem %s5, 40
        %v828 = vld [vmem:[%s827] sm:$0xff]
        %v829 = vld [vmem:[%s827 + $0x8] sm:$0xff]
        %v830 = vld [vmem:[%s827 + $0x10] sm:$0xff]
        %v831 = vld [vmem:[%s827 + $0x18] sm:$0xff]
        %v832 = vld [vmem:[%s827 + $0x20] sm:$0xff]
        %s833 = scalar_lea.vmem %s6, 40
        %v834 = vld [vmem:[%s833] sm:$0xff]
        %v835 = vld [vmem:[%s833 + $0x8] sm:$0xff]
        %v836 = vld [vmem:[%s833 + $0x10] sm:$0xff]
        %v837 = vld [vmem:[%s833 + $0x18] sm:$0xff]
        %v838 = vld [vmem:[%s833 + $0x20] sm:$0xff]
        %v839 = vperm.slane %v826, 0
        %840 = vmatpush.msra.mxu0 0.0
        %841 = vmatpush.msra.mxu0 0.0
        %842 = vmatpush.msra.mxu0 0.0
        %843 = vmatpush.msra.mxu0 0.0
        %844 = vmatpush.msra.mxu0 0.0
        %845 = vmatpush.msra.mxu0 0.0
        %846 = vmatpush.msra.mxu0 0.0
        %847 = vmatpush.msra.mxu0 0.0
        %848 = vmatpush.msra.mxu0 0.0
        %849 = vmatpush.msra.mxu0 0.0
        %850 = vmatpush.msra.mxu0 0.0
        %851 = vmatpush.msra.mxu0 0.0
        %852 = vmatpush.msra.mxu0 %v825
        %853 = vmatpush.msra.mxu0 %v824
        %854 = vmatpush.msra.mxu0 %v823
        %855 = vmatpush.msra.mxu0 %v822
        %856 = vmatmul.f32.gmra.mxu0 %v573
        %v857 = vpop.f32.mrf.mxu0
        %v858 = vadd.f32 %v839, %v857
        %859 = vmatmul.f32.gmra.mxu0 %v576
        %v860 = vpop.f32.mrf.mxu0
        %v861 = vadd.f32 %v839, %v860
        %862 = vmatmul.f32.gmra.mxu0 %v579
        %v863 = vpop.f32.mrf.mxu0
        %v864 = vadd.f32 %v839, %v863
        %865 = vmatmul.f32.gmra.mxu0 %v582
        %v866 = vpop.f32.mrf.mxu0
        %v867 = vadd.f32 %v839, %v866
        %868 = vdwg.mxu0
        %v869 = vperm.slane %v832, 0
        %870 = vmatpush.msra.mxu0 0.0
        %871 = vmatpush.msra.mxu0 0.0
        %872 = vmatpush.msra.mxu0 0.0
        %873 = vmatpush.msra.mxu0 0.0
        %874 = vmatpush.msra.mxu0 0.0
        %875 = vmatpush.msra.mxu0 0.0
        %876 = vmatpush.msra.mxu0 0.0
        %877 = vmatpush.msra.mxu0 0.0
        %878 = vmatpush.msra.mxu0 0.0
        %879 = vmatpush.msra.mxu0 0.0
        %880 = vmatpush.msra.mxu0 0.0
        %881 = vmatpush.msra.mxu0 0.0
        %882 = vmatpush.msra.mxu0 %v831
        %883 = vmatpush.msra.mxu0 %v830
        %884 = vmatpush.msra.mxu0 %v829
        %885 = vmatpush.msra.mxu0 %v828
        %886 = vmatmul.f32.gmra.mxu0 %v573
        %v887 = vpop.f32.mrf.mxu0
        %v888 = vadd.f32 %v869, %v887
        %889 = vmatmul.f32.gmra.mxu0 %v576
        %v890 = vpop.f32.mrf.mxu0
        %v891 = vadd.f32 %v869, %v890
        %892 = vmatmul.f32.gmra.mxu0 %v579
        %v893 = vpop.f32.mrf.mxu0
        %v894 = vadd.f32 %v869, %v893
        %895 = vmatmul.f32.gmra.mxu0 %v582
        %v896 = vpop.f32.mrf.mxu0
        %v897 = vadd.f32 %v869, %v896
        %898 = vdwg.mxu0
        %v899 = vperm.slane %v838, 0
        %900 = vmatpush.msra.mxu0 0.0
        %901 = vmatpush.msra.mxu0 0.0
        %902 = vmatpush.msra.mxu0 0.0
        %903 = vmatpush.msra.mxu0 0.0
        %904 = vmatpush.msra.mxu0 0.0
        %905 = vmatpush.msra.mxu0 0.0
        %906 = vmatpush.msra.mxu0 0.0
        %907 = vmatpush.msra.mxu0 0.0
        %908 = vmatpush.msra.mxu0 0.0
        %909 = vmatpush.msra.mxu0 0.0
        %910 = vmatpush.msra.mxu0 0.0
        %911 = vmatpush.msra.mxu0 0.0
        %912 = vmatpush.msra.mxu0 %v837
        %913 = vmatpush.msra.mxu0 %v836
        %914 = vmatpush.msra.mxu0 %v835
        %915 = vmatpush.msra.mxu0 %v834
        %916 = vmatmul.f32.gmra.mxu0 %v573
        %v917 = vpop.f32.mrf.mxu0
        %v918 = vadd.f32 %v899, %v917
        %919 = vmatmul.f32.gmra.mxu0 %v576
        %v920 = vpop.f32.mrf.mxu0
        %v921 = vadd.f32 %v899, %v920
        %922 = vmatmul.f32.gmra.mxu0 %v579
        %v923 = vpop.f32.mrf.mxu0
        %v924 = vadd.f32 %v899, %v923
        %925 = vmatmul.f32.gmra.mxu0 %v582
        %v926 = vpop.f32.mrf.mxu0
        %v927 = vadd.f32 %v899, %v926
        %928 = vdwg.mxu0
        %v930 = vsel %vm365, %v858, 0
        %v933 = vsel %vm365, %v888, 0
        %935 = vmatpush.xpose.msra.mxu0 0.0
        %936 = vmatpush.xpose.msra.mxu0 0.0
        %937 = vmatpush.xpose.msra.mxu0 0.0
        %938 = vmatpush.xpose.msra.mxu0 0.0
        %939 = vmatpush.xpose.msra.mxu0 0.0
        %940 = vmatpush.xpose.msra.mxu0 0.0
        %941 = vmatpush.xpose.msra.mxu0 0.0
        %942 = vmatpush.xpose.msra.mxu0 0.0
        %943 = vmatpush.xpose.msra.mxu0 0.0
        %944 = vmatpush.xpose.msra.mxu0 0.0
        %945 = vmatpush.xpose.msra.mxu0 0.0
        %946 = vmatpush.xpose.msra.mxu0 0.0
        %947 = vmatpush.xpose.msra.mxu0 0.0
        %948 = vmatpush.xpose.msra.mxu0 0.0
        %949 = vmatpush.xpose.msra.mxu0 0.0
        %950 = vmatpush.xpose.msra.mxu0 %v933
        %951 = vmatmul.f32.gmra.mxu0 %v930
        %v952 = vpop.f32.mrf.mxu0
        %v953 = vadd.f32 0.0, %v952
        %954 = vdwg.mxu0
        %v956 = vsel %vm365, %v861, 0
        %v959 = vsel %vm365, %v891, 0
        %961 = vmatpush.xpose.msra.mxu0 0.0
        %962 = vmatpush.xpose.msra.mxu0 0.0
        %963 = vmatpush.xpose.msra.mxu0 0.0
        %964 = vmatpush.xpose.msra.mxu0 0.0
        %965 = vmatpush.xpose.msra.mxu0 0.0
        %966 = vmatpush.xpose.msra.mxu0 0.0
        %967 = vmatpush.xpose.msra.mxu0 0.0
        %968 = vmatpush.xpose.msra.mxu0 0.0
        %969 = vmatpush.xpose.msra.mxu0 0.0
        %970 = vmatpush.xpose.msra.mxu0 0.0
        %971 = vmatpush.xpose.msra.mxu0 0.0
        %972 = vmatpush.xpose.msra.mxu0 0.0
        %973 = vmatpush.xpose.msra.mxu0 0.0
        %974 = vmatpush.xpose.msra.mxu0 0.0
        %975 = vmatpush.xpose.msra.mxu0 0.0
        %976 = vmatpush.xpose.msra.mxu0 %v959
        %977 = vmatmul.f32.gmra.mxu0 %v956
        %v978 = vpop.f32.mrf.mxu0
        %v979 = vadd.f32 0.0, %v978
        %980 = vdwg.mxu0
        %v982 = vsel %vm365, %v864, 0
        %v985 = vsel %vm365, %v894, 0
        %987 = vmatpush.xpose.msra.mxu0 0.0
        %988 = vmatpush.xpose.msra.mxu0 0.0
        %989 = vmatpush.xpose.msra.mxu0 0.0
        %990 = vmatpush.xpose.msra.mxu0 0.0
        %991 = vmatpush.xpose.msra.mxu0 0.0
        %992 = vmatpush.xpose.msra.mxu0 0.0
        %993 = vmatpush.xpose.msra.mxu0 0.0
        %994 = vmatpush.xpose.msra.mxu0 0.0
        %995 = vmatpush.xpose.msra.mxu0 0.0
        %996 = vmatpush.xpose.msra.mxu0 0.0
        %997 = vmatpush.xpose.msra.mxu0 0.0
        %998 = vmatpush.xpose.msra.mxu0 0.0
        %999 = vmatpush.xpose.msra.mxu0 0.0
        %1000 = vmatpush.xpose.msra.mxu0 0.0
        %1001 = vmatpush.xpose.msra.mxu0 0.0
        %1002 = vmatpush.xpose.msra.mxu0 %v985
        %1003 = vmatmul.f32.gmra.mxu0 %v982
        %v1004 = vpop.f32.mrf.mxu0
        %v1005 = vadd.f32 0.0, %v1004
        %1006 = vdwg.mxu0
        %v1008 = vsel %vm365, %v867, 0
        %v1011 = vsel %vm365, %v897, 0
        %1013 = vmatpush.xpose.msra.mxu0 0.0
        %1014 = vmatpush.xpose.msra.mxu0 0.0
        %1015 = vmatpush.xpose.msra.mxu0 0.0
        %1016 = vmatpush.xpose.msra.mxu0 0.0
        %1017 = vmatpush.xpose.msra.mxu0 0.0
        %1018 = vmatpush.xpose.msra.mxu0 0.0
        %1019 = vmatpush.xpose.msra.mxu0 0.0
        %1020 = vmatpush.xpose.msra.mxu0 0.0
        %1021 = vmatpush.xpose.msra.mxu0 0.0
        %1022 = vmatpush.xpose.msra.mxu0 0.0
        %1023 = vmatpush.xpose.msra.mxu0 0.0
        %1024 = vmatpush.xpose.msra.mxu0 0.0
        %1025 = vmatpush.xpose.msra.mxu0 0.0
        %1026 = vmatpush.xpose.msra.mxu0 0.0
        %1027 = vmatpush.xpose.msra.mxu0 0.0
        %1028 = vmatpush.xpose.msra.mxu0 %v1011
        %1029 = vmatmul.f32.gmra.mxu0 %v1008
        %v1030 = vpop.f32.mrf.mxu0
        %v1031 = vadd.f32 0.0, %v1030
        %1032 = vdwg.mxu0
        %v1033 = vsel %vm365, %v953, -inf
        %1034 = vmax.xlane.f32.xlu0 %v1033
        %v1035 = vpop.xlane.xlu0 %1034
        %v1036 = vsel %vm365, %v979, -inf
        %1037 = vmax.xlane.f32.xlu0 %v1036
        %v1038 = vpop.xlane.xlu0 %1037
        %v1039 = vsel %vm365, %v1005, -inf
        %1040 = vmax.xlane.f32.xlu0 %v1039
        %v1041 = vpop.xlane.xlu0 %1040
        %v1042 = vsel %vm365, %v1031, -inf
        %1043 = vmax.xlane.f32.xlu0 %v1042
        %v1044 = vpop.xlane.xlu0 %1043
        %v1045 = vsub.f32 %v953, %v1035
        %v1046 = vsub.f32 %v979, %v1038
        %v1047 = vsub.f32 %v1005, %v1041
        %v1048 = vsub.f32 %v1031, %v1044
        %v1049 = vmul.f32 %v1045, 1.442695
        %v1050 = vpow.pop %v1049
        %v1051 = vmul.f32 %v1046, 1.442695
        %v1052 = vpow.pop %v1051
        %v1053 = vmul.f32 %v1047, 1.442695
        %v1054 = vpow.pop %v1053
        %v1055 = vmul.f32 %v1048, 1.442695
        %v1056 = vpow.pop %v1055
        %v1057 = vsel %vm365, %v1050, 0.0
        %1058 = vadd.xlane.f32.xlu0 %v1057
        %v1059 = vpop.xlane.xlu0 %1058
        %v1060 = vsel %vm365, %v1052, 0.0
        %1061 = vadd.xlane.f32.xlu0 %v1060
        %v1062 = vpop.xlane.xlu0 %1061
        %v1063 = vsel %vm365, %v1054, 0.0
        %1064 = vadd.xlane.f32.xlu0 %v1063
        %v1065 = vpop.xlane.xlu0 %1064
        %v1066 = vsel %vm365, %v1056, 0.0
        %1067 = vadd.xlane.f32.xlu0 %v1066
        %v1068 = vpop.xlane.xlu0 %1067
        %v1069 = vrcp.pop %v1059
        %v1070 = vrcp.pop %v1062
        %v1071 = vrcp.pop %v1065
        %v1072 = vrcp.pop %v1068
        %v1073 = vmul.f32 %v1050, %v1069
        %v1074 = vmul.f32 %v1052, %v1070
        %v1075 = vmul.f32 %v1054, %v1071
        %v1076 = vmul.f32 %v1056, %v1072
        %v1078 = vsel %vm365, %v1073, 0
        %1080 = vmatpush.msra.mxu0 0.0
        %1081 = vmatpush.msra.mxu0 0.0
        %1082 = vmatpush.msra.mxu0 0.0
        %1083 = vmatpush.msra.mxu0 0.0
        %1084 = vmatpush.msra.mxu0 0.0
        %1085 = vmatpush.msra.mxu0 0.0
        %1086 = vmatpush.msra.mxu0 0.0
        %1087 = vmatpush.msra.mxu0 0.0
        %1088 = vmatpush.msra.mxu0 0.0
        %1089 = vmatpush.msra.mxu0 0.0
        %1090 = vmatpush.msra.mxu0 0.0
        %1091 = vmatpush.msra.mxu0 0.0
        %1092 = vmatpush.msra.mxu0 0.0
        %1093 = vmatpush.msra.mxu0 0.0
        %1094 = vmatpush.msra.mxu0 0.0
        %1095 = vmatpush.msra.mxu0 %v918
        %1096 = vmatmul.f32.gmra.mxu0 %v1078
        %v1097 = vpop.f32.mrf.mxu0
        %v1098 = vadd.f32 0.0, %v1097
        %1099 = vdwg.mxu0
        %v1101 = vsel %vm365, %v1074, 0
        %1103 = vmatpush.msra.mxu0 0.0
        %1104 = vmatpush.msra.mxu0 0.0
        %1105 = vmatpush.msra.mxu0 0.0
        %1106 = vmatpush.msra.mxu0 0.0
        %1107 = vmatpush.msra.mxu0 0.0
        %1108 = vmatpush.msra.mxu0 0.0
        %1109 = vmatpush.msra.mxu0 0.0
        %1110 = vmatpush.msra.mxu0 0.0
        %1111 = vmatpush.msra.mxu0 0.0
        %1112 = vmatpush.msra.mxu0 0.0
        %1113 = vmatpush.msra.mxu0 0.0
        %1114 = vmatpush.msra.mxu0 0.0
        %1115 = vmatpush.msra.mxu0 0.0
        %1116 = vmatpush.msra.mxu0 0.0
        %1117 = vmatpush.msra.mxu0 0.0
        %1118 = vmatpush.msra.mxu0 %v921
        %1119 = vmatmul.f32.gmra.mxu0 %v1101
        %v1120 = vpop.f32.mrf.mxu0
        %v1121 = vadd.f32 0.0, %v1120
        %1122 = vdwg.mxu0
        %v1124 = vsel %vm365, %v1075, 0
        %1126 = vmatpush.msra.mxu0 0.0
        %1127 = vmatpush.msra.mxu0 0.0
        %1128 = vmatpush.msra.mxu0 0.0
        %1129 = vmatpush.msra.mxu0 0.0
        %1130 = vmatpush.msra.mxu0 0.0
        %1131 = vmatpush.msra.mxu0 0.0
        %1132 = vmatpush.msra.mxu0 0.0
        %1133 = vmatpush.msra.mxu0 0.0
        %1134 = vmatpush.msra.mxu0 0.0
        %1135 = vmatpush.msra.mxu0 0.0
        %1136 = vmatpush.msra.mxu0 0.0
        %1137 = vmatpush.msra.mxu0 0.0
        %1138 = vmatpush.msra.mxu0 0.0
        %1139 = vmatpush.msra.mxu0 0.0
        %1140 = vmatpush.msra.mxu0 0.0
        %1141 = vmatpush.msra.mxu0 %v924
        %1142 = vmatmul.f32.gmra.mxu0 %v1124
        %v1143 = vpop.f32.mrf.mxu0
        %v1144 = vadd.f32 0.0, %v1143
        %1145 = vdwg.mxu0
        %v1147 = vsel %vm365, %v1076, 0
        %1149 = vmatpush.msra.mxu0 0.0
        %1150 = vmatpush.msra.mxu0 0.0
        %1151 = vmatpush.msra.mxu0 0.0
        %1152 = vmatpush.msra.mxu0 0.0
        %1153 = vmatpush.msra.mxu0 0.0
        %1154 = vmatpush.msra.mxu0 0.0
        %1155 = vmatpush.msra.mxu0 0.0
        %1156 = vmatpush.msra.mxu0 0.0
        %1157 = vmatpush.msra.mxu0 0.0
        %1158 = vmatpush.msra.mxu0 0.0
        %1159 = vmatpush.msra.mxu0 0.0
        %1160 = vmatpush.msra.mxu0 0.0
        %1161 = vmatpush.msra.mxu0 0.0
        %1162 = vmatpush.msra.mxu0 0.0
        %1163 = vmatpush.msra.mxu0 0.0
        %1164 = vmatpush.msra.mxu0 %v927
        %1165 = vmatmul.f32.gmra.mxu0 %v1147
        %v1166 = vpop.f32.mrf.mxu0
        %v1167 = vadd.f32 0.0, %v1166
        %1168 = vdwg.mxu0
        %v1170 = vsel %vm365, %v817, 0
        %1172 = vmatpush.msra.mxu0 0.0
        %1173 = vmatpush.msra.mxu0 0.0
        %1174 = vmatpush.msra.mxu0 0.0
        %1175 = vmatpush.msra.mxu0 0.0
        %1176 = vmatpush.msra.mxu0 0.0
        %1177 = vmatpush.msra.mxu0 0.0
        %1178 = vmatpush.msra.mxu0 0.0
        %1179 = vmatpush.msra.mxu0 0.0
        %1180 = vmatpush.msra.mxu0 0.0
        %1181 = vmatpush.msra.mxu0 0.0
        %1182 = vmatpush.msra.mxu0 0.0
        %1183 = vmatpush.msra.mxu0 0.0
        %1184 = vmatpush.msra.mxu0 0.0
        %1185 = vmatpush.msra.mxu0 0.0
        %1186 = vmatpush.msra.mxu0 0.0
        %1187 = vmatpush.msra.mxu0 %v662
        %1188 = vmatmul.f32.gmra.mxu0 %v1170
        %v1189 = vpop.f32.mrf.mxu0
        %v1190 = vadd.f32 %v1098, %v1189
        %1191 = vdwg.mxu0
        %v1193 = vsel %vm365, %v818, 0
        %1195 = vmatpush.msra.mxu0 0.0
        %1196 = vmatpush.msra.mxu0 0.0
        %1197 = vmatpush.msra.mxu0 0.0
        %1198 = vmatpush.msra.mxu0 0.0
        %1199 = vmatpush.msra.mxu0 0.0
        %1200 = vmatpush.msra.mxu0 0.0
        %1201 = vmatpush.msra.mxu0 0.0
        %1202 = vmatpush.msra.mxu0 0.0
        %1203 = vmatpush.msra.mxu0 0.0
        %1204 = vmatpush.msra.mxu0 0.0
        %1205 = vmatpush.msra.mxu0 0.0
        %1206 = vmatpush.msra.mxu0 0.0
        %1207 = vmatpush.msra.mxu0 0.0
        %1208 = vmatpush.msra.mxu0 0.0
        %1209 = vmatpush.msra.mxu0 0.0
        %1210 = vmatpush.msra.mxu0 %v665
        %1211 = vmatmul.f32.gmra.mxu0 %v1193
        %v1212 = vpop.f32.mrf.mxu0
        %v1213 = vadd.f32 %v1121, %v1212
        %1214 = vdwg.mxu0
        %v1216 = vsel %vm365, %v819, 0
        %1218 = vmatpush.msra.mxu0 0.0
        %1219 = vmatpush.msra.mxu0 0.0
        %1220 = vmatpush.msra.mxu0 0.0
        %1221 = vmatpush.msra.mxu0 0.0
        %1222 = vmatpush.msra.mxu0 0.0
        %1223 = vmatpush.msra.mxu0 0.0
        %1224 = vmatpush.msra.mxu0 0.0
        %1225 = vmatpush.msra.mxu0 0.0
        %1226 = vmatpush.msra.mxu0 0.0
        %1227 = vmatpush.msra.mxu0 0.0
        %1228 = vmatpush.msra.mxu0 0.0
        %1229 = vmatpush.msra.mxu0 0.0
        %1230 = vmatpush.msra.mxu0 0.0
        %1231 = vmatpush.msra.mxu0 0.0
        %1232 = vmatpush.msra.mxu0 0.0
        %1233 = vmatpush.msra.mxu0 %v668
        %1234 = vmatmul.f32.gmra.mxu0 %v1216
        %v1235 = vpop.f32.mrf.mxu0
        %v1236 = vadd.f32 %v1144, %v1235
        %1237 = vdwg.mxu0
        %v1239 = vsel %vm365, %v820, 0
        %1241 = vmatpush.msra.mxu0 0.0
        %1242 = vmatpush.msra.mxu0 0.0
        %1243 = vmatpush.msra.mxu0 0.0
        %1244 = vmatpush.msra.mxu0 0.0
        %1245 = vmatpush.msra.mxu0 0.0
        %1246 = vmatpush.msra.mxu0 0.0
        %1247 = vmatpush.msra.mxu0 0.0
        %1248 = vmatpush.msra.mxu0 0.0
        %1249 = vmatpush.msra.mxu0 0.0
        %1250 = vmatpush.msra.mxu0 0.0
        %1251 = vmatpush.msra.mxu0 0.0
        %1252 = vmatpush.msra.mxu0 0.0
        %1253 = vmatpush.msra.mxu0 0.0
        %1254 = vmatpush.msra.mxu0 0.0
        %1255 = vmatpush.msra.mxu0 0.0
        %1256 = vmatpush.msra.mxu0 %v671
        %1257 = vmatmul.f32.gmra.mxu0 %v1239
        %v1258 = vpop.f32.mrf.mxu0
        %v1259 = vadd.f32 %v1167, %v1258
        %1260 = vdwg.mxu0
        %s1261 = scalar_lea.vmem %s4, 80
        %v1262 = vld [vmem:[%s1261] sm:$0xff]
        %v1263 = vld [vmem:[%s1261 + $0x8] sm:$0xff]
        %v1264 = vld [vmem:[%s1261 + $0x10] sm:$0xff]
        %v1265 = vld [vmem:[%s1261 + $0x18] sm:$0xff]
        %v1266 = vld [vmem:[%s1261 + $0x20] sm:$0xff]
        %s1267 = scalar_lea.vmem %s5, 80
        %v1268 = vld [vmem:[%s1267] sm:$0xff]
        %v1269 = vld [vmem:[%s1267 + $0x8] sm:$0xff]
        %v1270 = vld [vmem:[%s1267 + $0x10] sm:$0xff]
        %v1271 = vld [vmem:[%s1267 + $0x18] sm:$0xff]
        %v1272 = vld [vmem:[%s1267 + $0x20] sm:$0xff]
        %s1273 = scalar_lea.vmem %s6, 80
        %v1274 = vld [vmem:[%s1273] sm:$0xff]
        %v1275 = vld [vmem:[%s1273 + $0x8] sm:$0xff]
        %v1276 = vld [vmem:[%s1273 + $0x10] sm:$0xff]
        %v1277 = vld [vmem:[%s1273 + $0x18] sm:$0xff]
        %v1278 = vld [vmem:[%s1273 + $0x20] sm:$0xff]
        %v1279 = vperm.slane %v1266, 0
        %1280 = vmatpush.msra.mxu0 0.0
        %1281 = vmatpush.msra.mxu0 0.0
        %1282 = vmatpush.msra.mxu0 0.0
        %1283 = vmatpush.msra.mxu0 0.0
        %1284 = vmatpush.msra.mxu0 0.0
        %1285 = vmatpush.msra.mxu0 0.0
        %1286 = vmatpush.msra.mxu0 0.0
        %1287 = vmatpush.msra.mxu0 0.0
        %1288 = vmatpush.msra.mxu0 0.0
        %1289 = vmatpush.msra.mxu0 0.0
        %1290 = vmatpush.msra.mxu0 0.0
        %1291 = vmatpush.msra.mxu0 0.0
        %1292 = vmatpush.msra.mxu0 %v1265
        %1293 = vmatpush.msra.mxu0 %v1264
        %1294 = vmatpush.msra.mxu0 %v1263
        %1295 = vmatpush.msra.mxu0 %v1262
        %1296 = vmatmul.f32.gmra.mxu0 %v573
        %v1297 = vpop.f32.mrf.mxu0
        %v1298 = vadd.f32 %v1279, %v1297
        %1299 = vmatmul.f32.gmra.mxu0 %v576
        %v1300 = vpop.f32.mrf.mxu0
        %v1301 = vadd.f32 %v1279, %v1300
        %1302 = vmatmul.f32.gmra.mxu0 %v579
        %v1303 = vpop.f32.mrf.mxu0
        %v1304 = vadd.f32 %v1279, %v1303
        %1305 = vmatmul.f32.gmra.mxu0 %v582
        %v1306 = vpop.f32.mrf.mxu0
        %v1307 = vadd.f32 %v1279, %v1306
        %1308 = vdwg.mxu0
        %v1309 = vperm.slane %v1272, 0
        %1310 = vmatpush.msra.mxu0 0.0
        %1311 = vmatpush.msra.mxu0 0.0
        %1312 = vmatpush.msra.mxu0 0.0
        %1313 = vmatpush.msra.mxu0 0.0
        %1314 = vmatpush.msra.mxu0 0.0
        %1315 = vmatpush.msra.mxu0 0.0
        %1316 = vmatpush.msra.mxu0 0.0
        %1317 = vmatpush.msra.mxu0 0.0
        %1318 = vmatpush.msra.mxu0 0.0
        %1319 = vmatpush.msra.mxu0 0.0
        %1320 = vmatpush.msra.mxu0 0.0
        %1321 = vmatpush.msra.mxu0 0.0
        %1322 = vmatpush.msra.mxu0 %v1271
        %1323 = vmatpush.msra.mxu0 %v1270
        %1324 = vmatpush.msra.mxu0 %v1269
        %1325 = vmatpush.msra.mxu0 %v1268
        %1326 = vmatmul.f32.gmra.mxu0 %v573
        %v1327 = vpop.f32.mrf.mxu0
        %v1328 = vadd.f32 %v1309, %v1327
        %1329 = vmatmul.f32.gmra.mxu0 %v576
        %v1330 = vpop.f32.mrf.mxu0
        %v1331 = vadd.f32 %v1309, %v1330
        %1332 = vmatmul.f32.gmra.mxu0 %v579
        %v1333 = vpop.f32.mrf.mxu0
        %v1334 = vadd.f32 %v1309, %v1333
        %1335 = vmatmul.f32.gmra.mxu0 %v582
        %v1336 = vpop.f32.mrf.mxu0
        %v1337 = vadd.f32 %v1309, %v1336
        %1338 = vdwg.mxu0
        %v1339 = vperm.slane %v1278, 0
        %1340 = vmatpush.msra.mxu0 0.0
        %1341 = vmatpush.msra.mxu0 0.0
        %1342 = vmatpush.msra.mxu0 0.0
        %1343 = vmatpush.msra.mxu0 0.0
        %1344 = vmatpush.msra.mxu0 0.0
        %1345 = vmatpush.msra.mxu0 0.0
        %1346 = vmatpush.msra.mxu0 0.0
        %1347 = vmatpush.msra.mxu0 0.0
        %1348 = vmatpush.msra.mxu0 0.0
        %1349 = vmatpush.msra.mxu0 0.0
        %1350 = vmatpush.msra.mxu0 0.0
        %1351 = vmatpush.msra.mxu0 0.0
        %1352 = vmatpush.msra.mxu0 %v1277
        %1353 = vmatpush.msra.mxu0 %v1276
        %1354 = vmatpush.msra.mxu0 %v1275
        %1355 = vmatpush.msra.mxu0 %v1274
        %1356 = vmatmul.f32.gmra.mxu0 %v573
        %v1357 = vpop.f32.mrf.mxu0
        %v1358 = vadd.f32 %v1339, %v1357
        %1359 = vmatmul.f32.gmra.mxu0 %v576
        %v1360 = vpop.f32.mrf.mxu0
        %v1361 = vadd.f32 %v1339, %v1360
        %1362 = vmatmul.f32.gmra.mxu0 %v579
        %v1363 = vpop.f32.mrf.mxu0
        %v1364 = vadd.f32 %v1339, %v1363
        %1365 = vmatmul.f32.gmra.mxu0 %v582
        %v1366 = vpop.f32.mrf.mxu0
        %v1367 = vadd.f32 %v1339, %v1366
        %1368 = vdwg.mxu0
        %v1370 = vsel %vm365, %v1298, 0
        %v1373 = vsel %vm365, %v1328, 0
        %1375 = vmatpush.xpose.msra.mxu0 0.0
        %1376 = vmatpush.xpose.msra.mxu0 0.0
        %1377 = vmatpush.xpose.msra.mxu0 0.0
        %1378 = vmatpush.xpose.msra.mxu0 0.0
        %1379 = vmatpush.xpose.msra.mxu0 0.0
        %1380 = vmatpush.xpose.msra.mxu0 0.0
        %1381 = vmatpush.xpose.msra.mxu0 0.0
        %1382 = vmatpush.xpose.msra.mxu0 0.0
        %1383 = vmatpush.xpose.msra.mxu0 0.0
        %1384 = vmatpush.xpose.msra.mxu0 0.0
        %1385 = vmatpush.xpose.msra.mxu0 0.0
        %1386 = vmatpush.xpose.msra.mxu0 0.0
        %1387 = vmatpush.xpose.msra.mxu0 0.0
        %1388 = vmatpush.xpose.msra.mxu0 0.0
        %1389 = vmatpush.xpose.msra.mxu0 0.0
        %1390 = vmatpush.xpose.msra.mxu0 %v1373
        %1391 = vmatmul.f32.gmra.mxu0 %v1370
        %v1392 = vpop.f32.mrf.mxu0
        %v1393 = vadd.f32 0.0, %v1392
        %1394 = vdwg.mxu0
        %v1396 = vsel %vm365, %v1301, 0
        %v1399 = vsel %vm365, %v1331, 0
        %1401 = vmatpush.xpose.msra.mxu0 0.0
        %1402 = vmatpush.xpose.msra.mxu0 0.0
        %1403 = vmatpush.xpose.msra.mxu0 0.0
        %1404 = vmatpush.xpose.msra.mxu0 0.0
        %1405 = vmatpush.xpose.msra.mxu0 0.0
        %1406 = vmatpush.xpose.msra.mxu0 0.0
        %1407 = vmatpush.xpose.msra.mxu0 0.0
        %1408 = vmatpush.xpose.msra.mxu0 0.0
        %1409 = vmatpush.xpose.msra.mxu0 0.0
        %1410 = vmatpush.xpose.msra.mxu0 0.0
        %1411 = vmatpush.xpose.msra.mxu0 0.0
        %1412 = vmatpush.xpose.msra.mxu0 0.0
        %1413 = vmatpush.xpose.msra.mxu0 0.0
        %1414 = vmatpush.xpose.msra.mxu0 0.0
        %1415 = vmatpush.xpose.msra.mxu0 0.0
        %1416 = vmatpush.xpose.msra.mxu0 %v1399
        %1417 = vmatmul.f32.gmra.mxu0 %v1396
        %v1418 = vpop.f32.mrf.mxu0
        %v1419 = vadd.f32 0.0, %v1418
        %1420 = vdwg.mxu0
        %v1422 = vsel %vm365, %v1304, 0
        %v1425 = vsel %vm365, %v1334, 0
        %1427 = vmatpush.xpose.msra.mxu0 0.0
        %1428 = vmatpush.xpose.msra.mxu0 0.0
        %1429 = vmatpush.xpose.msra.mxu0 0.0
        %1430 = vmatpush.xpose.msra.mxu0 0.0
        %1431 = vmatpush.xpose.msra.mxu0 0.0
        %1432 = vmatpush.xpose.msra.mxu0 0.0
        %1433 = vmatpush.xpose.msra.mxu0 0.0
        %1434 = vmatpush.xpose.msra.mxu0 0.0
        %1435 = vmatpush.xpose.msra.mxu0 0.0
        %1436 = vmatpush.xpose.msra.mxu0 0.0
        %1437 = vmatpush.xpose.msra.mxu0 0.0
        %1438 = vmatpush.xpose.msra.mxu0 0.0
        %1439 = vmatpush.xpose.msra.mxu0 0.0
        %1440 = vmatpush.xpose.msra.mxu0 0.0
        %1441 = vmatpush.xpose.msra.mxu0 0.0
        %1442 = vmatpush.xpose.msra.mxu0 %v1425
        %1443 = vmatmul.f32.gmra.mxu0 %v1422
        %v1444 = vpop.f32.mrf.mxu0
        %v1445 = vadd.f32 0.0, %v1444
        %1446 = vdwg.mxu0
        %v1448 = vsel %vm365, %v1307, 0
        %v1451 = vsel %vm365, %v1337, 0
        %1453 = vmatpush.xpose.msra.mxu0 0.0
        %1454 = vmatpush.xpose.msra.mxu0 0.0
        %1455 = vmatpush.xpose.msra.mxu0 0.0
        %1456 = vmatpush.xpose.msra.mxu0 0.0
        %1457 = vmatpush.xpose.msra.mxu0 0.0
        %1458 = vmatpush.xpose.msra.mxu0 0.0
        %1459 = vmatpush.xpose.msra.mxu0 0.0
        %1460 = vmatpush.xpose.msra.mxu0 0.0
        %1461 = vmatpush.xpose.msra.mxu0 0.0
        %1462 = vmatpush.xpose.msra.mxu0 0.0
        %1463 = vmatpush.xpose.msra.mxu0 0.0
        %1464 = vmatpush.xpose.msra.mxu0 0.0
        %1465 = vmatpush.xpose.msra.mxu0 0.0
        %1466 = vmatpush.xpose.msra.mxu0 0.0
        %1467 = vmatpush.xpose.msra.mxu0 0.0
        %1468 = vmatpush.xpose.msra.mxu0 %v1451
        %1469 = vmatmul.f32.gmra.mxu0 %v1448
        %v1470 = vpop.f32.mrf.mxu0
        %v1471 = vadd.f32 0.0, %v1470
        %1472 = vdwg.mxu0
        %v1473 = vsel %vm365, %v1393, -inf
        %1474 = vmax.xlane.f32.xlu0 %v1473
        %v1475 = vpop.xlane.xlu0 %1474
        %v1476 = vsel %vm365, %v1419, -inf
        %1477 = vmax.xlane.f32.xlu0 %v1476
        %v1478 = vpop.xlane.xlu0 %1477
        %v1479 = vsel %vm365, %v1445, -inf
        %1480 = vmax.xlane.f32.xlu0 %v1479
        %v1481 = vpop.xlane.xlu0 %1480
        %v1482 = vsel %vm365, %v1471, -inf
        %1483 = vmax.xlane.f32.xlu0 %v1482
        %v1484 = vpop.xlane.xlu0 %1483
        %v1485 = vsub.f32 %v1393, %v1475
        %v1486 = vsub.f32 %v1419, %v1478
        %v1487 = vsub.f32 %v1445, %v1481
        %v1488 = vsub.f32 %v1471, %v1484
        %v1489 = vmul.f32 %v1485, 1.442695
        %v1490 = vpow.pop %v1489
        %v1491 = vmul.f32 %v1486, 1.442695
        %v1492 = vpow.pop %v1491
        %v1493 = vmul.f32 %v1487, 1.442695
        %v1494 = vpow.pop %v1493
        %v1495 = vmul.f32 %v1488, 1.442695
        %v1496 = vpow.pop %v1495
        %v1497 = vsel %vm365, %v1490, 0.0
        %1498 = vadd.xlane.f32.xlu0 %v1497
        %v1499 = vpop.xlane.xlu0 %1498
        %v1500 = vsel %vm365, %v1492, 0.0
        %1501 = vadd.xlane.f32.xlu0 %v1500
        %v1502 = vpop.xlane.xlu0 %1501
        %v1503 = vsel %vm365, %v1494, 0.0
        %1504 = vadd.xlane.f32.xlu0 %v1503
        %v1505 = vpop.xlane.xlu0 %1504
        %v1506 = vsel %vm365, %v1496, 0.0
        %1507 = vadd.xlane.f32.xlu0 %v1506
        %v1508 = vpop.xlane.xlu0 %1507
        %v1509 = vrcp.pop %v1499
        %v1510 = vrcp.pop %v1502
        %v1511 = vrcp.pop %v1505
        %v1512 = vrcp.pop %v1508
        %v1513 = vmul.f32 %v1490, %v1509
        %v1514 = vmul.f32 %v1492, %v1510
        %v1515 = vmul.f32 %v1494, %v1511
        %v1516 = vmul.f32 %v1496, %v1512
        %v1518 = vsel %vm365, %v1513, 0
        %1520 = vmatpush.msra.mxu0 0.0
        %1521 = vmatpush.msra.mxu0 0.0
        %1522 = vmatpush.msra.mxu0 0.0
        %1523 = vmatpush.msra.mxu0 0.0
        %1524 = vmatpush.msra.mxu0 0.0
        %1525 = vmatpush.msra.mxu0 0.0
        %1526 = vmatpush.msra.mxu0 0.0
        %1527 = vmatpush.msra.mxu0 0.0
        %1528 = vmatpush.msra.mxu0 0.0
        %1529 = vmatpush.msra.mxu0 0.0
        %1530 = vmatpush.msra.mxu0 0.0
        %1531 = vmatpush.msra.mxu0 0.0
        %1532 = vmatpush.msra.mxu0 0.0
        %1533 = vmatpush.msra.mxu0 0.0
        %1534 = vmatpush.msra.mxu0 0.0
        %1535 = vmatpush.msra.mxu0 %v1358
        %1536 = vmatmul.f32.gmra.mxu0 %v1518
        %v1537 = vpop.f32.mrf.mxu0
        %v1538 = vadd.f32 0.0, %v1537
        %1539 = vdwg.mxu0
        %v1541 = vsel %vm365, %v1514, 0
        %1543 = vmatpush.msra.mxu0 0.0
        %1544 = vmatpush.msra.mxu0 0.0
        %1545 = vmatpush.msra.mxu0 0.0
        %1546 = vmatpush.msra.mxu0 0.0
        %1547 = vmatpush.msra.mxu0 0.0
        %1548 = vmatpush.msra.mxu0 0.0
        %1549 = vmatpush.msra.mxu0 0.0
        %1550 = vmatpush.msra.mxu0 0.0
        %1551 = vmatpush.msra.mxu0 0.0
        %1552 = vmatpush.msra.mxu0 0.0
        %1553 = vmatpush.msra.mxu0 0.0
        %1554 = vmatpush.msra.mxu0 0.0
        %1555 = vmatpush.msra.mxu0 0.0
        %1556 = vmatpush.msra.mxu0 0.0
        %1557 = vmatpush.msra.mxu0 0.0
        %1558 = vmatpush.msra.mxu0 %v1361
        %1559 = vmatmul.f32.gmra.mxu0 %v1541
        %v1560 = vpop.f32.mrf.mxu0
        %v1561 = vadd.f32 0.0, %v1560
        %1562 = vdwg.mxu0
        %v1564 = vsel %vm365, %v1515, 0
        %1566 = vmatpush.msra.mxu0 0.0
        %1567 = vmatpush.msra.mxu0 0.0
        %1568 = vmatpush.msra.mxu0 0.0
        %1569 = vmatpush.msra.mxu0 0.0
        %1570 = vmatpush.msra.mxu0 0.0
        %1571 = vmatpush.msra.mxu0 0.0
        %1572 = vmatpush.msra.mxu0 0.0
        %1573 = vmatpush.msra.mxu0 0.0
        %1574 = vmatpush.msra.mxu0 0.0
        %1575 = vmatpush.msra.mxu0 0.0
        %1576 = vmatpush.msra.mxu0 0.0
        %1577 = vmatpush.msra.mxu0 0.0
        %1578 = vmatpush.msra.mxu0 0.0
        %1579 = vmatpush.msra.mxu0 0.0
        %1580 = vmatpush.msra.mxu0 0.0
        %1581 = vmatpush.msra.mxu0 %v1364
        %1582 = vmatmul.f32.gmra.mxu0 %v1564
        %v1583 = vpop.f32.mrf.mxu0
        %v1584 = vadd.f32 0.0, %v1583
        %1585 = vdwg.mxu0
        %v1587 = vsel %vm365, %v1516, 0
        %1589 = vmatpush.msra.mxu0 0.0
        %1590 = vmatpush.msra.mxu0 0.0
        %1591 = vmatpush.msra.mxu0 0.0
        %1592 = vmatpush.msra.mxu0 0.0
        %1593 = vmatpush.msra.mxu0 0.0
        %1594 = vmatpush.msra.mxu0 0.0
        %1595 = vmatpush.msra.mxu0 0.0
        %1596 = vmatpush.msra.mxu0 0.0
        %1597 = vmatpush.msra.mxu0 0.0
        %1598 = vmatpush.msra.mxu0 0.0
        %1599 = vmatpush.msra.mxu0 0.0
        %1600 = vmatpush.msra.mxu0 0.0
        %1601 = vmatpush.msra.mxu0 0.0
        %1602 = vmatpush.msra.mxu0 0.0
        %1603 = vmatpush.msra.mxu0 0.0
        %1604 = vmatpush.msra.mxu0 %v1367
        %1605 = vmatmul.f32.gmra.mxu0 %v1587
        %v1606 = vpop.f32.mrf.mxu0
        %v1607 = vadd.f32 0.0, %v1606
        %1608 = vdwg.mxu0
        %v1609 = vadd.f32 %v1190, %v1538
        %v1610 = vadd.f32 %v1213, %v1561
        %v1611 = vadd.f32 %v1236, %v1584
        %v1612 = vadd.f32 %v1259, %v1607
        %s1613 = scalar_lea.vmem %s4, 120
        %v1614 = vld [vmem:[%s1613] sm:$0xff]
        %v1615 = vld [vmem:[%s1613 + $0x8] sm:$0xff]
        %v1616 = vld [vmem:[%s1613 + $0x10] sm:$0xff]
        %v1617 = vld [vmem:[%s1613 + $0x18] sm:$0xff]
        %v1618 = vld [vmem:[%s1613 + $0x20] sm:$0xff]
        %s1619 = scalar_lea.vmem %s5, 120
        %v1620 = vld [vmem:[%s1619] sm:$0xff]
        %v1621 = vld [vmem:[%s1619 + $0x8] sm:$0xff]
        %v1622 = vld [vmem:[%s1619 + $0x10] sm:$0xff]
        %v1623 = vld [vmem:[%s1619 + $0x18] sm:$0xff]
        %v1624 = vld [vmem:[%s1619 + $0x20] sm:$0xff]
        %s1625 = scalar_lea.vmem %s6, 120
        %v1626 = vld [vmem:[%s1625] sm:$0xff]
        %v1627 = vld [vmem:[%s1625 + $0x8] sm:$0xff]
        %v1628 = vld [vmem:[%s1625 + $0x10] sm:$0xff]
        %v1629 = vld [vmem:[%s1625 + $0x18] sm:$0xff]
        %v1630 = vld [vmem:[%s1625 + $0x20] sm:$0xff]
        %v1631 = vperm.slane %v1618, 0
        %1632 = vmatpush.msra.mxu0 0.0
        %1633 = vmatpush.msra.mxu0 0.0
        %1634 = vmatpush.msra.mxu0 0.0
        %1635 = vmatpush.msra.mxu0 0.0
        %1636 = vmatpush.msra.mxu0 0.0
        %1637 = vmatpush.msra.mxu0 0.0
        %1638 = vmatpush.msra.mxu0 0.0
        %1639 = vmatpush.msra.mxu0 0.0
        %1640 = vmatpush.msra.mxu0 0.0
        %1641 = vmatpush.msra.mxu0 0.0
        %1642 = vmatpush.msra.mxu0 0.0
        %1643 = vmatpush.msra.mxu0 0.0
        %1644 = vmatpush.msra.mxu0 %v1617
        %1645 = vmatpush.msra.mxu0 %v1616
        %1646 = vmatpush.msra.mxu0 %v1615
        %1647 = vmatpush.msra.mxu0 %v1614
        %1648 = vmatmul.f32.gmra.mxu0 %v573
        %v1649 = vpop.f32.mrf.mxu0
        %v1650 = vadd.f32 %v1631, %v1649
        %1651 = vmatmul.f32.gmra.mxu0 %v576
        %v1652 = vpop.f32.mrf.mxu0
        %v1653 = vadd.f32 %v1631, %v1652
        %1654 = vmatmul.f32.gmra.mxu0 %v579
        %v1655 = vpop.f32.mrf.mxu0
        %v1656 = vadd.f32 %v1631, %v1655
        %1657 = vmatmul.f32.gmra.mxu0 %v582
        %v1658 = vpop.f32.mrf.mxu0
        %v1659 = vadd.f32 %v1631, %v1658
        %1660 = vdwg.mxu0
        %v1661 = vperm.slane %v1624, 0
        %1662 = vmatpush.msra.mxu0 0.0
        %1663 = vmatpush.msra.mxu0 0.0
        %1664 = vmatpush.msra.mxu0 0.0
        %1665 = vmatpush.msra.mxu0 0.0
        %1666 = vmatpush.msra.mxu0 0.0
        %1667 = vmatpush.msra.mxu0 0.0
        %1668 = vmatpush.msra.mxu0 0.0
        %1669 = vmatpush.msra.mxu0 0.0
        %1670 = vmatpush.msra.mxu0 0.0
        %1671 = vmatpush.msra.mxu0 0.0
        %1672 = vmatpush.msra.mxu0 0.0
        %1673 = vmatpush.msra.mxu0 0.0
        %1674 = vmatpush.msra.mxu0 %v1623
        %1675 = vmatpush.msra.mxu0 %v1622
        %1676 = vmatpush.msra.mxu0 %v1621
        %1677 = vmatpush.msra.mxu0 %v1620
        %1678 = vmatmul.f32.gmra.mxu0 %v573
        %v1679 = vpop.f32.mrf.mxu0
        %v1680 = vadd.f32 %v1661, %v1679
        %1681 = vmatmul.f32.gmra.mxu0 %v576
        %v1682 = vpop.f32.mrf.mxu0
        %v1683 = vadd.f32 %v1661, %v1682
        %1684 = vmatmul.f32.gmra.mxu0 %v579
        %v1685 = vpop.f32.mrf.mxu0
        %v1686 = vadd.f32 %v1661, %v1685
        %1687 = vmatmul.f32.gmra.mxu0 %v582
        %v1688 = vpop.f32.mrf.mxu0
        %v1689 = vadd.f32 %v1661, %v1688
        %1690 = vdwg.mxu0
        %v1691 = vperm.slane %v1630, 0
        %1692 = vmatpush.msra.mxu0 0.0
        %1693 = vmatpush.msra.mxu0 0.0
        %1694 = vmatpush.msra.mxu0 0.0
        %1695 = vmatpush.msra.mxu0 0.0
        %1696 = vmatpush.msra.mxu0 0.0
        %1697 = vmatpush.msra.mxu0 0.0
        %1698 = vmatpush.msra.mxu0 0.0
        %1699 = vmatpush.msra.mxu0 0.0
        %1700 = vmatpush.msra.mxu0 0.0
        %1701 = vmatpush.msra.mxu0 0.0
        %1702 = vmatpush.msra.mxu0 0.0
        %1703 = vmatpush.msra.mxu0 0.0
        %1704 = vmatpush.msra.mxu0 %v1629
        %1705 = vmatpush.msra.mxu0 %v1628
        %1706 = vmatpush.msra.mxu0 %v1627
        %1707 = vmatpush.msra.mxu0 %v1626
        %1708 = vmatmul.f32.gmra.mxu0 %v573
        %v1709 = vpop.f32.mrf.mxu0
        %v1710 = vadd.f32 %v1691, %v1709
        %1711 = vmatmul.f32.gmra.mxu0 %v576
        %v1712 = vpop.f32.mrf.mxu0
        %v1713 = vadd.f32 %v1691, %v1712
        %1714 = vmatmul.f32.gmra.mxu0 %v579
        %v1715 = vpop.f32.mrf.mxu0
        %v1716 = vadd.f32 %v1691, %v1715
        %1717 = vmatmul.f32.gmra.mxu0 %v582
        %v1718 = vpop.f32.mrf.mxu0
        %v1719 = vadd.f32 %v1691, %v1718
        %1720 = vdwg.mxu0
        %v1722 = vsel %vm365, %v1650, 0
        %v1725 = vsel %vm365, %v1680, 0
        %1727 = vmatpush.xpose.msra.mxu0 0.0
        %1728 = vmatpush.xpose.msra.mxu0 0.0
        %1729 = vmatpush.xpose.msra.mxu0 0.0
        %1730 = vmatpush.xpose.msra.mxu0 0.0
        %1731 = vmatpush.xpose.msra.mxu0 0.0
        %1732 = vmatpush.xpose.msra.mxu0 0.0
        %1733 = vmatpush.xpose.msra.mxu0 0.0
        %1734 = vmatpush.xpose.msra.mxu0 0.0
        %1735 = vmatpush.xpose.msra.mxu0 0.0
        %1736 = vmatpush.xpose.msra.mxu0 0.0
        %1737 = vmatpush.xpose.msra.mxu0 0.0
        %1738 = vmatpush.xpose.msra.mxu0 0.0
        %1739 = vmatpush.xpose.msra.mxu0 0.0
        %1740 = vmatpush.xpose.msra.mxu0 0.0
        %1741 = vmatpush.xpose.msra.mxu0 0.0
        %1742 = vmatpush.xpose.msra.mxu0 %v1725
        %1743 = vmatmul.f32.gmra.mxu0 %v1722
        %v1744 = vpop.f32.mrf.mxu0
        %v1745 = vadd.f32 0.0, %v1744
        %1746 = vdwg.mxu0
        %v1748 = vsel %vm365, %v1653, 0
        %v1751 = vsel %vm365, %v1683, 0
        %1753 = vmatpush.xpose.msra.mxu0 0.0
        %1754 = vmatpush.xpose.msra.mxu0 0.0
        %1755 = vmatpush.xpose.msra.mxu0 0.0
        %1756 = vmatpush.xpose.msra.mxu0 0.0
        %1757 = vmatpush.xpose.msra.mxu0 0.0
        %1758 = vmatpush.xpose.msra.mxu0 0.0
        %1759 = vmatpush.xpose.msra.mxu0 0.0
        %1760 = vmatpush.xpose.msra.mxu0 0.0
        %1761 = vmatpush.xpose.msra.mxu0 0.0
        %1762 = vmatpush.xpose.msra.mxu0 0.0
        %1763 = vmatpush.xpose.msra.mxu0 0.0
        %1764 = vmatpush.xpose.msra.mxu0 0.0
        %1765 = vmatpush.xpose.msra.mxu0 0.0
        %1766 = vmatpush.xpose.msra.mxu0 0.0
        %1767 = vmatpush.xpose.msra.mxu0 0.0
        %1768 = vmatpush.xpose.msra.mxu0 %v1751
        %1769 = vmatmul.f32.gmra.mxu0 %v1748
        %v1770 = vpop.f32.mrf.mxu0
        %v1771 = vadd.f32 0.0, %v1770
        %1772 = vdwg.mxu0
        %v1774 = vsel %vm365, %v1656, 0
        %v1777 = vsel %vm365, %v1686, 0
        %1779 = vmatpush.xpose.msra.mxu0 0.0
        %1780 = vmatpush.xpose.msra.mxu0 0.0
        %1781 = vmatpush.xpose.msra.mxu0 0.0
        %1782 = vmatpush.xpose.msra.mxu0 0.0
        %1783 = vmatpush.xpose.msra.mxu0 0.0
        %1784 = vmatpush.xpose.msra.mxu0 0.0
        %1785 = vmatpush.xpose.msra.mxu0 0.0
        %1786 = vmatpush.xpose.msra.mxu0 0.0
        %1787 = vmatpush.xpose.msra.mxu0 0.0
        %1788 = vmatpush.xpose.msra.mxu0 0.0
        %1789 = vmatpush.xpose.msra.mxu0 0.0
        %1790 = vmatpush.xpose.msra.mxu0 0.0
        %1791 = vmatpush.xpose.msra.mxu0 0.0
        %1792 = vmatpush.xpose.msra.mxu0 0.0
        %1793 = vmatpush.xpose.msra.mxu0 0.0
        %1794 = vmatpush.xpose.msra.mxu0 %v1777
        %1795 = vmatmul.f32.gmra.mxu0 %v1774
        %v1796 = vpop.f32.mrf.mxu0
        %v1797 = vadd.f32 0.0, %v1796
        %1798 = vdwg.mxu0
        %v1800 = vsel %vm365, %v1659, 0
        %v1803 = vsel %vm365, %v1689, 0
        %1805 = vmatpush.xpose.msra.mxu0 0.0
        %1806 = vmatpush.xpose.msra.mxu0 0.0
        %1807 = vmatpush.xpose.msra.mxu0 0.0
        %1808 = vmatpush.xpose.msra.mxu0 0.0
        %1809 = vmatpush.xpose.msra.mxu0 0.0
        %1810 = vmatpush.xpose.msra.mxu0 0.0
        %1811 = vmatpush.xpose.msra.mxu0 0.0
        %1812 = vmatpush.xpose.msra.mxu0 0.0
        %1813 = vmatpush.xpose.msra.mxu0 0.0
        %1814 = vmatpush.xpose.msra.mxu0 0.0
        %1815 = vmatpush.xpose.msra.mxu0 0.0
        %1816 = vmatpush.xpose.msra.mxu0 0.0
        %1817 = vmatpush.xpose.msra.mxu0 0.0
        %1818 = vmatpush.xpose.msra.mxu0 0.0
        %1819 = vmatpush.xpose.msra.mxu0 0.0
        %1820 = vmatpush.xpose.msra.mxu0 %v1803
        %1821 = vmatmul.f32.gmra.mxu0 %v1800
        %v1822 = vpop.f32.mrf.mxu0
        %v1823 = vadd.f32 0.0, %v1822
        %1824 = vdwg.mxu0
        %v1825 = vsel %vm365, %v1745, -inf
        %1826 = vmax.xlane.f32.xlu0 %v1825
        %v1827 = vpop.xlane.xlu0 %1826
        %v1828 = vsel %vm365, %v1771, -inf
        %1829 = vmax.xlane.f32.xlu0 %v1828
        %v1830 = vpop.xlane.xlu0 %1829
        %v1831 = vsel %vm365, %v1797, -inf
        %1832 = vmax.xlane.f32.xlu0 %v1831
        %v1833 = vpop.xlane.xlu0 %1832
        %v1834 = vsel %vm365, %v1823, -inf
        %1835 = vmax.xlane.f32.xlu0 %v1834
        %v1836 = vpop.xlane.xlu0 %1835
        %v1837 = vsub.f32 %v1745, %v1827
        %v1838 = vsub.f32 %v1771, %v1830
        %v1839 = vsub.f32 %v1797, %v1833
        %v1840 = vsub.f32 %v1823, %v1836
        %v1841 = vmul.f32 %v1837, 1.442695
        %v1842 = vpow.pop %v1841
        %v1843 = vmul.f32 %v1838, 1.442695
        %v1844 = vpow.pop %v1843
        %v1845 = vmul.f32 %v1839, 1.442695
        %v1846 = vpow.pop %v1845
        %v1847 = vmul.f32 %v1840, 1.442695
        %v1848 = vpow.pop %v1847
        %v1849 = vsel %vm365, %v1842, 0.0
        %1850 = vadd.xlane.f32.xlu0 %v1849
        %v1851 = vpop.xlane.xlu0 %1850
        %v1852 = vsel %vm365, %v1844, 0.0
        %1853 = vadd.xlane.f32.xlu0 %v1852
        %v1854 = vpop.xlane.xlu0 %1853
        %v1855 = vsel %vm365, %v1846, 0.0
        %1856 = vadd.xlane.f32.xlu0 %v1855
        %v1857 = vpop.xlane.xlu0 %1856
        %v1858 = vsel %vm365, %v1848, 0.0
        %1859 = vadd.xlane.f32.xlu0 %v1858
        %v1860 = vpop.xlane.xlu0 %1859
        %v1861 = vrcp.pop %v1851
        %v1862 = vrcp.pop %v1854
        %v1863 = vrcp.pop %v1857
        %v1864 = vrcp.pop %v1860
        %v1865 = vmul.f32 %v1842, %v1861
        %v1866 = vmul.f32 %v1844, %v1862
        %v1867 = vmul.f32 %v1846, %v1863
        %v1868 = vmul.f32 %v1848, %v1864
        %v1870 = vsel %vm365, %v1865, 0
        %1872 = vmatpush.msra.mxu0 0.0
        %1873 = vmatpush.msra.mxu0 0.0
        %1874 = vmatpush.msra.mxu0 0.0
        %1875 = vmatpush.msra.mxu0 0.0
        %1876 = vmatpush.msra.mxu0 0.0
        %1877 = vmatpush.msra.mxu0 0.0
        %1878 = vmatpush.msra.mxu0 0.0
        %1879 = vmatpush.msra.mxu0 0.0
        %1880 = vmatpush.msra.mxu0 0.0
        %1881 = vmatpush.msra.mxu0 0.0
        %1882 = vmatpush.msra.mxu0 0.0
        %1883 = vmatpush.msra.mxu0 0.0
        %1884 = vmatpush.msra.mxu0 0.0
        %1885 = vmatpush.msra.mxu0 0.0
        %1886 = vmatpush.msra.mxu0 0.0
        %1887 = vmatpush.msra.mxu0 %v1710
        %1888 = vmatmul.f32.gmra.mxu0 %v1870
        %v1889 = vpop.f32.mrf.mxu0
        %v1890 = vadd.f32 0.0, %v1889
        %1891 = vdwg.mxu0
        %v1893 = vsel %vm365, %v1866, 0
        %1895 = vmatpush.msra.mxu0 0.0
        %1896 = vmatpush.msra.mxu0 0.0
        %1897 = vmatpush.msra.mxu0 0.0
        %1898 = vmatpush.msra.mxu0 0.0
        %1899 = vmatpush.msra.mxu0 0.0
        %1900 = vmatpush.msra.mxu0 0.0
        %1901 = vmatpush.msra.mxu0 0.0
        %1902 = vmatpush.msra.mxu0 0.0
        %1903 = vmatpush.msra.mxu0 0.0
        %1904 = vmatpush.msra.mxu0 0.0
        %1905 = vmatpush.msra.mxu0 0.0
        %1906 = vmatpush.msra.mxu0 0.0
        %1907 = vmatpush.msra.mxu0 0.0
        %1908 = vmatpush.msra.mxu0 0.0
        %1909 = vmatpush.msra.mxu0 0.0
        %1910 = vmatpush.msra.mxu0 %v1713
        %1911 = vmatmul.f32.gmra.mxu0 %v1893
        %v1912 = vpop.f32.mrf.mxu0
        %v1913 = vadd.f32 0.0, %v1912
        %1914 = vdwg.mxu0
        %v1916 = vsel %vm365, %v1867, 0
        %1918 = vmatpush.msra.mxu0 0.0
        %1919 = vmatpush.msra.mxu0 0.0
        %1920 = vmatpush.msra.mxu0 0.0
        %1921 = vmatpush.msra.mxu0 0.0
        %1922 = vmatpush.msra.mxu0 0.0
        %1923 = vmatpush.msra.mxu0 0.0
        %1924 = vmatpush.msra.mxu0 0.0
        %1925 = vmatpush.msra.mxu0 0.0
        %1926 = vmatpush.msra.mxu0 0.0
        %1927 = vmatpush.msra.mxu0 0.0
        %1928 = vmatpush.msra.mxu0 0.0
        %1929 = vmatpush.msra.mxu0 0.0
        %1930 = vmatpush.msra.mxu0 0.0
        %1931 = vmatpush.msra.mxu0 0.0
        %1932 = vmatpush.msra.mxu0 0.0
        %1933 = vmatpush.msra.mxu0 %v1716
        %1934 = vmatmul.f32.gmra.mxu0 %v1916
        %v1935 = vpop.f32.mrf.mxu0
        %v1936 = vadd.f32 0.0, %v1935
        %1937 = vdwg.mxu0
        %v1939 = vsel %vm365, %v1868, 0
        %1941 = vmatpush.msra.mxu0 0.0
        %1942 = vmatpush.msra.mxu0 0.0
        %1943 = vmatpush.msra.mxu0 0.0
        %1944 = vmatpush.msra.mxu0 0.0
        %1945 = vmatpush.msra.mxu0 0.0
        %1946 = vmatpush.msra.mxu0 0.0
        %1947 = vmatpush.msra.mxu0 0.0
        %1948 = vmatpush.msra.mxu0 0.0
        %1949 = vmatpush.msra.mxu0 0.0
        %1950 = vmatpush.msra.mxu0 0.0
        %1951 = vmatpush.msra.mxu0 0.0
        %1952 = vmatpush.msra.mxu0 0.0
        %1953 = vmatpush.msra.mxu0 0.0
        %1954 = vmatpush.msra.mxu0 0.0
        %1955 = vmatpush.msra.mxu0 0.0
        %1956 = vmatpush.msra.mxu0 %v1719
        %1957 = vmatmul.f32.gmra.mxu0 %v1939
        %v1958 = vpop.f32.mrf.mxu0
        %v1959 = vadd.f32 0.0, %v1958
        %1960 = vdwg.mxu0
        %v1961 = vadd.f32 %v1609, %v1890
        %v1962 = vadd.f32 %v1610, %v1913
        %v1963 = vadd.f32 %v1611, %v1936
        %v1964 = vadd.f32 %v1612, %v1959
        %v1965 = vperm.slane %v555, 4
        %v1966 = vadd.f32 %v1961, %v1965
        %v1967 = vadd.f32 %v1962, %v1965
        %v1968 = vadd.f32 %v1963, %v1965
        %v1969 = vadd.f32 %v1964, %v1965
        %v1970 = vadd.f32 %v1966, %v551
        %v1971 = vadd.f32 %v1967, %v552
        %v1972 = vadd.f32 %v1968, %v553
        %v1973 = vadd.f32 %v1969, %v554
        %v1974 = vsel %vm409, %v1970, 0.0
        %1975 = vadd.xlane.f32.xlu0 %v1974
        %v1976 = vpop.xlane.xlu0 %1975
        %v1977 = vsel %vm409, %v1971, 0.0
        %1978 = vadd.xlane.f32.xlu0 %v1977
        %v1979 = vpop.xlane.xlu0 %1978
        %v1980 = vsel %vm409, %v1972, 0.0
        %1981 = vadd.xlane.f32.xlu0 %v1980
        %v1982 = vpop.xlane.xlu0 %1981
        %v1983 = vsel %vm409, %v1973, 0.0
        %1984 = vadd.xlane.f32.xlu0 %v1983
        %v1985 = vpop.xlane.xlu0 %1984
        %v1986 = vrcp.pop 32.0
        %v1987 = vmul.f32 32.0, %v1986
        %v1988 = vsub.f32 1.0, %v1987
        %v1989 = vmul.f32 %v1986, %v1988
        %v1990 = vadd.f32 %v1986, %v1989
        %vm1991 = vweird.f32 %v1986
        %v1992 = vsel %vm1991, %v1986, %v1990
        %v1993 = vmul.f32 %v1976, %v1992
        %v1994 = vmul.f32 %v1979, %v1992
        %v1995 = vmul.f32 %v1982, %v1992
        %v1996 = vmul.f32 %v1985, %v1992
        %v1997 = vsub.f32 %v1970, %v1993
        %v1998 = vsub.f32 %v1971, %v1994
        %v1999 = vsub.f32 %v1972, %v1995
        %v2000 = vsub.f32 %v1973, %v1996
        %v2001 = vmul.f32 %v1997, %v1997
        %v2002 = vmul.f32 %v1998, %v1998
        %v2003 = vmul.f32 %v1999, %v1999
        %v2004 = vmul.f32 %v2000, %v2000
        %v2005 = vsel %vm409, %v2001, 0.0
        %2006 = vadd.xlane.f32.xlu0 %v2005
        %v2007 = vpop.xlane.xlu0 %2006
        %v2008 = vsel %vm409, %v2002, 0.0
        %2009 = vadd.xlane.f32.xlu0 %v2008
        %v2010 = vpop.xlane.xlu0 %2009
        %v2011 = vsel %vm409, %v2003, 0.0
        %2012 = vadd.xlane.f32.xlu0 %v2011
        %v2013 = vpop.xlane.xlu0 %2012
        %v2014 = vsel %vm409, %v2004, 0.0
        %2015 = vadd.xlane.f32.xlu0 %v2014
        %v2016 = vpop.xlane.xlu0 %2015
        %v2017 = vmul.f32 %v2007, %v1992
        %v2018 = vmul.f32 %v2010, %v1992
        %v2019 = vmul.f32 %v2013, %v1992
        %v2020 = vmul.f32 %v2016, %v1992
        %v2021 = vadd.f32 %v2017, 1e-05
        %v2022 = vadd.f32 %v2018, 1e-05
        %v2023 = vadd.f32 %v2019, 1e-05
        %v2024 = vadd.f32 %v2020, 1e-05
        %v2025 = vrsqrt.pop %v2021
        %v2026 = vmul.f32 %v2025, %v2021
        %v2027 = vmul.f32 %v2026, %v2025
        %v2028 = vmul.f32 0.5, %v2027
        %v2029 = vsub.f32 1.5, %v2028
        %v2030 = vmul.f32 %v2025, %v2029
        %vm2031 = vweird.f32 %v2021
        %vm2032 = vweird.f32 %v2025
        %vm2033 = vmor %vm2031, %vm2032
        %v2034 = vsel %vm2033, %v2025, %v2030
        %v2035 = vrsqrt.pop %v2022
        %v2036 = vmul.f32 %v2035, %v2022
        %v2037 = vmul.f32 %v2036, %v2035
        %v2038 = vmul.f32 0.5, %v2037
        %v2039 = vsub.f32 1.5, %v2038
        %v2040 = vmul.f32 %v2035, %v2039
        %vm2041 = vweird.f32 %v2022
        %vm2042 = vweird.f32 %v2035
        %vm2043 = vmor %vm2041, %vm2042
        %v2044 = vsel %vm2043, %v2035, %v2040
        %v2045 = vrsqrt.pop %v2023
        %v2046 = vmul.f32 %v2045, %v2023
        %v2047 = vmul.f32 %v2046, %v2045
        %v2048 = vmul.f32 0.5, %v2047
        %v2049 = vsub.f32 1.5, %v2048
        %v2050 = vmul.f32 %v2045, %v2049
        %vm2051 = vweird.f32 %v2023
        %vm2052 = vweird.f32 %v2045
        %vm2053 = vmor %vm2051, %vm2052
        %v2054 = vsel %vm2053, %v2045, %v2050
        %v2055 = vrsqrt.pop %v2024
        %v2056 = vmul.f32 %v2055, %v2024
        %v2057 = vmul.f32 %v2056, %v2055
        %v2058 = vmul.f32 0.5, %v2057
        %v2059 = vsub.f32 1.5, %v2058
        %v2060 = vmul.f32 %v2055, %v2059
        %vm2061 = vweird.f32 %v2024
        %vm2062 = vweird.f32 %v2055
        %vm2063 = vmor %vm2061, %vm2062
        %v2064 = vsel %vm2063, %v2055, %v2060
        %v2065 = vmul.f32 %v1997, %v2034
        %v2066 = vmul.f32 %v1998, %v2044
        %v2067 = vmul.f32 %v1999, %v2054
        %v2068 = vmul.f32 %v2000, %v2064
        %v2069 = vperm.slane %v555, 0
        %v2070 = vmul.f32 %v2065, %v2069
        %v2071 = vmul.f32 %v2066, %v2069
        %v2072 = vmul.f32 %v2067, %v2069
        %v2073 = vmul.f32 %v2068, %v2069
        %v2074 = vperm.slane %v555, 1
        %v2075 = vadd.f32 %v2070, %v2074
        %v2076 = vadd.f32 %v2071, %v2074
        %v2077 = vadd.f32 %v2072, %v2074
        %v2078 = vadd.f32 %v2073, %v2074
        %v2079 = vld [vmem:[%s7] sm:$0xff]
        %v2080 = vld [vmem:[%s7 + $0x8] sm:$0xff]
        %v2081 = vld [vmem:[%s7 + $0x10] sm:$0xff]
        %v2082 = vld [vmem:[%s7 + $0x18] sm:$0xff]
        %v2083 = vld [vmem:[%s7 + $0x20] sm:$0xff]
        %s2084 = scalar_lea.vmem %s7, 40
        %v2085 = vld [vmem:[%s2084] sm:$0xff]
        %v2086 = vld [vmem:[%s2084 + $0x8] sm:$0xff]
        %v2087 = vld [vmem:[%s2084 + $0x10] sm:$0xff]
        %v2088 = vld [vmem:[%s2084 + $0x18] sm:$0xff]
        %v2089 = vld [vmem:[%s2084 + $0x20] sm:$0xff]
        %v2090 = vperm.slane %v2083, 0
        %v2092 = vsel %vm409, %v2075, 0
        %v2095 = vsel %vm409, %v2076, 0
        %v2098 = vsel %vm409, %v2077, 0
        %v2101 = vsel %vm409, %v2078, 0
        %2103 = vmatpush.msra.mxu0 0.0
        %2104 = vmatpush.msra.mxu0 0.0
        %2105 = vmatpush.msra.mxu0 0.0
        %2106 = vmatpush.msra.mxu0 0.0
        %2107 = vmatpush.msra.mxu0 0.0
        %2108 = vmatpush.msra.mxu0 0.0
        %2109 = vmatpush.msra.mxu0 0.0
        %2110 = vmatpush.msra.mxu0 0.0
        %2111 = vmatpush.msra.mxu0 0.0
        %2112 = vmatpush.msra.mxu0 0.0
        %2113 = vmatpush.msra.mxu0 0.0
        %2114 = vmatpush.msra.mxu0 0.0
        %2115 = vmatpush.msra.mxu0 %v2082
        %2116 = vmatpush.msra.mxu0 %v2081
        %2117 = vmatpush.msra.mxu0 %v2080
        %2118 = vmatpush.msra.mxu0 %v2079
        %2119 = vmatmul.f32.gmra.mxu0 %v2092
        %v2120 = vpop.f32.mrf.mxu0
        %v2121 = vadd.f32 %v2090, %v2120
        %2122 = vmatmul.f32.gmra.mxu0 %v2095
        %v2123 = vpop.f32.mrf.mxu0
        %v2124 = vadd.f32 %v2090, %v2123
        %2125 = vmatmul.f32.gmra.mxu0 %v2098
        %v2126 = vpop.f32.mrf.mxu0
        %v2127 = vadd.f32 %v2090, %v2126
        %2128 = vmatmul.f32.gmra.mxu0 %v2101
        %v2129 = vpop.f32.mrf.mxu0
        %v2130 = vadd.f32 %v2090, %v2129
        %2131 = vdwg.mxu0
        %v2132 = vmax.f32 %v2121, 0.0
        %v2133 = vmax.f32 %v2124, 0.0
        %v2134 = vmax.f32 %v2127, 0.0
        %v2135 = vmax.f32 %v2130, 0.0
        %v2136 = vperm.slane %v2089, 0
        %v2138 = vsel %vm409, %v2132, 0
        %v2141 = vsel %vm409, %v2133, 0
        %v2144 = vsel %vm409, %v2134, 0
        %v2147 = vsel %vm409, %v2135, 0
        %2149 = vmatpush.msra.mxu0 0.0
        %2150 = vmatpush.msra.mxu0 0.0
        %2151 = vmatpush.msra.mxu0 0.0
        %2152 = vmatpush.msra.mxu0 0.0
        %2153 = vmatpush.msra.mxu0 0.0
        %2154 = vmatpush.msra.mxu0 0.0
        %2155 = vmatpush.msra.mxu0 0.0
        %2156 = vmatpush.msra.mxu0 0.0
        %2157 = vmatpush.msra.mxu0 0.0
        %2158 = vmatpush.msra.mxu0 0.0
        %2159 = vmatpush.msra.mxu0 0.0
        %2160 = vmatpush.msra.mxu0 0.0
        %2161 = vmatpush.msra.mxu0 %v2088
        %2162 = vmatpush.msra.mxu0 %v2087
        %2163 = vmatpush.msra.mxu0 %v2086
        %2164 = vmatpush.msra.mxu0 %v2085
        %2165 = vmatmul.f32.gmra.mxu0 %v2138
        %v2166 = vpop.f32.mrf.mxu0
        %v2167 = vadd.f32 %v2136, %v2166
        %2168 = vmatmul.f32.gmra.mxu0 %v2141
        %v2169 = vpop.f32.mrf.mxu0
        %v2170 = vadd.f32 %v2136, %v2169
        %2171 = vmatmul.f32.gmra.mxu0 %v2144
        %v2172 = vpop.f32.mrf.mxu0
        %v2173 = vadd.f32 %v2136, %v2172
        %2174 = vmatmul.f32.gmra.mxu0 %v2147
        %v2175 = vpop.f32.mrf.mxu0
        %v2176 = vadd.f32 %v2136, %v2175
        %2177 = vdwg.mxu0
        %v2178 = vadd.f32 %v2167, %v2075
        %v2179 = vadd.f32 %v2170, %v2076
        %v2180 = vadd.f32 %v2173, %v2077
        %v2181 = vadd.f32 %v2176, %v2078
        %v2182 = vsel %vm409, %v2178, 0.0
        %2183 = vadd.xlane.f32.xlu0 %v2182
        %v2184 = vpop.xlane.xlu0 %2183
        %v2185 = vsel %vm409, %v2179, 0.0
        %2186 = vadd.xlane.f32.xlu0 %v2185
        %v2187 = vpop.xlane.xlu0 %2186
        %v2188 = vsel %vm409, %v2180, 0.0
        %2189 = vadd.xlane.f32.xlu0 %v2188
        %v2190 = vpop.xlane.xlu0 %2189
        %v2191 = vsel %vm409, %v2181, 0.0
        %2192 = vadd.xlane.f32.xlu0 %v2191
        %v2193 = vpop.xlane.xlu0 %2192
        %v2194 = vmul.f32 %v2184, %v1992
        %v2195 = vmul.f32 %v2187, %v1992
        %v2196 = vmul.f32 %v2190, %v1992
        %v2197 = vmul.f32 %v2193, %v1992
        %v2198 = vsub.f32 %v2178, %v2194
        %v2199 = vsub.f32 %v2179, %v2195
        %v2200 = vsub.f32 %v2180, %v2196
        %v2201 = vsub.f32 %v2181, %v2197
        %v2202 = vmul.f32 %v2198, %v2198
        %v2203 = vmul.f32 %v2199, %v2199
        %v2204 = vmul.f32 %v2200, %v2200
        %v2205 = vmul.f32 %v2201, %v2201
        %v2206 = vsel %vm409, %v2202, 0.0
        %2207 = vadd.xlane.f32.xlu0 %v2206
        %v2208 = vpop.xlane.xlu0 %2207
        %v2209 = vsel %vm409, %v2203, 0.0
        %2210 = vadd.xlane.f32.xlu0 %v2209
        %v2211 = vpop.xlane.xlu0 %2210
        %v2212 = vsel %vm409, %v2204, 0.0
        %2213 = vadd.xlane.f32.xlu0 %v2212
        %v2214 = vpop.xlane.xlu0 %2213
        %v2215 = vsel %vm409, %v2205, 0.0
        %2216 = vadd.xlane.f32.xlu0 %v2215
        %v2217 = vpop.xlane.xlu0 %2216
        %v2218 = vmul.f32 %v2208, %v1992
        %v2219 = vmul.f32 %v2211, %v1992
        %v2220 = vmul.f32 %v2214, %v1992
        %v2221 = vmul.f32 %v2217, %v1992
        %v2222 = vadd.f32 %v2218, 1e-05
        %v2223 = vadd.f32 %v2219, 1e-05
        %v2224 = vadd.f32 %v2220, 1e-05
        %v2225 = vadd.f32 %v2221, 1e-05
        %v2226 = vrsqrt.pop %v2222
        %v2227 = vmul.f32 %v2226, %v2222
        %v2228 = vmul.f32 %v2227, %v2226
        %v2229 = vmul.f32 0.5, %v2228
        %v2230 = vsub.f32 1.5, %v2229
        %v2231 = vmul.f32 %v2226, %v2230
        %vm2232 = vweird.f32 %v2222
        %vm2233 = vweird.f32 %v2226
        %vm2234 = vmor %vm2232, %vm2233
        %v2235 = vsel %vm2234, %v2226, %v2231
        %v2236 = vrsqrt.pop %v2223
        %v2237 = vmul.f32 %v2236, %v2223
        %v2238 = vmul.f32 %v2237, %v2236
        %v2239 = vmul.f32 0.5, %v2238
        %v2240 = vsub.f32 1.5, %v2239
        %v2241 = vmul.f32 %v2236, %v2240
        %vm2242 = vweird.f32 %v2223
        %vm2243 = vweird.f32 %v2236
        %vm2244 = vmor %vm2242, %vm2243
        %v2245 = vsel %vm2244, %v2236, %v2241
        %v2246 = vrsqrt.pop %v2224
        %v2247 = vmul.f32 %v2246, %v2224
        %v2248 = vmul.f32 %v2247, %v2246
        %v2249 = vmul.f32 0.5, %v2248
        %v2250 = vsub.f32 1.5, %v2249
        %v2251 = vmul.f32 %v2246, %v2250
        %vm2252 = vweird.f32 %v2224
        %vm2253 = vweird.f32 %v2246
        %vm2254 = vmor %vm2252, %vm2253
        %v2255 = vsel %vm2254, %v2246, %v2251
        %v2256 = vrsqrt.pop %v2225
        %v2257 = vmul.f32 %v2256, %v2225
        %v2258 = vmul.f32 %v2257, %v2256
        %v2259 = vmul.f32 0.5, %v2258
        %v2260 = vsub.f32 1.5, %v2259
        %v2261 = vmul.f32 %v2256, %v2260
        %vm2262 = vweird.f32 %v2225
        %vm2263 = vweird.f32 %v2256
        %vm2264 = vmor %vm2262, %vm2263
        %v2265 = vsel %vm2264, %v2256, %v2261
        %v2266 = vmul.f32 %v2198, %v2235
        %v2267 = vmul.f32 %v2199, %v2245
        %v2268 = vmul.f32 %v2200, %v2255
        %v2269 = vmul.f32 %v2201, %v2265
        %v2270 = vperm.slane %v555, 2
        %v2271 = vmul.f32 %v2266, %v2270
        %v2272 = vmul.f32 %v2267, %v2270
        %v2273 = vmul.f32 %v2268, %v2270
        %v2274 = vmul.f32 %v2269, %v2270
        %v2275 = vperm.slane %v555, 3
        %v2276 = vadd.f32 %v2271, %v2275
        %v2277 = vadd.f32 %v2272, %v2275
        %v2278 = vadd.f32 %v2273, %v2275
        %v2279 = vadd.f32 %v2274, %v2275
        %s2280 = scalar_lea.vmem %s8, 8
        %v2281 = vld [vmem:[%s2280] sm:$0xff]
        %s2282 = scalar_lea.vmem %s4, 160
        %v2283 = vld [vmem:[%s2282] sm:$0xff]
        %v2284 = vld [vmem:[%s2282 + $0x8] sm:$0xff]
        %v2285 = vld [vmem:[%s2282 + $0x10] sm:$0xff]
        %v2286 = vld [vmem:[%s2282 + $0x18] sm:$0xff]
        %v2287 = vld [vmem:[%s2282 + $0x20] sm:$0xff]
        %s2288 = scalar_lea.vmem %s5, 160
        %v2289 = vld [vmem:[%s2288] sm:$0xff]
        %v2290 = vld [vmem:[%s2288 + $0x8] sm:$0xff]
        %v2291 = vld [vmem:[%s2288 + $0x10] sm:$0xff]
        %v2292 = vld [vmem:[%s2288 + $0x18] sm:$0xff]
        %v2293 = vld [vmem:[%s2288 + $0x20] sm:$0xff]
        %s2294 = scalar_lea.vmem %s6, 160
        %v2295 = vld [vmem:[%s2294] sm:$0xff]
        %v2296 = vld [vmem:[%s2294 + $0x8] sm:$0xff]
        %v2297 = vld [vmem:[%s2294 + $0x10] sm:$0xff]
        %v2298 = vld [vmem:[%s2294 + $0x18] sm:$0xff]
        %v2299 = vld [vmem:[%s2294 + $0x20] sm:$0xff]
        %v2300 = vperm.slane %v2287, 0
        %v2302 = vsel %vm409, %v2276, 0
        %v2305 = vsel %vm409, %v2277, 0
        %v2308 = vsel %vm409, %v2278, 0
        %v2311 = vsel %vm409, %v2279, 0
        %2313 = vmatpush.msra.mxu0 0.0
        %2314 = vmatpush.msra.mxu0 0.0
        %2315 = vmatpush.msra.mxu0 0.0
        %2316 = vmatpush.msra.mxu0 0.0
        %2317 = vmatpush.msra.mxu0 0.0
        %2318 = vmatpush.msra.mxu0 0.0
        %2319 = vmatpush.msra.mxu0 0.0
        %2320 = vmatpush.msra.mxu0 0.0
        %2321 = vmatpush.msra.mxu0 0.0
        %2322 = vmatpush.msra.mxu0 0.0
        %2323 = vmatpush.msra.mxu0 0.0
        %2324 = vmatpush.msra.mxu0 0.0
        %2325 = vmatpush.msra.mxu0 %v2286
        %2326 = vmatpush.msra.mxu0 %v2285
        %2327 = vmatpush.msra.mxu0 %v2284
        %2328 = vmatpush.msra.mxu0 %v2283
        %2329 = vmatmul.f32.gmra.mxu0 %v2302
        %v2330 = vpop.f32.mrf.mxu0
        %v2331 = vadd.f32 %v2300, %v2330
        %2332 = vmatmul.f32.gmra.mxu0 %v2305
        %v2333 = vpop.f32.mrf.mxu0
        %v2334 = vadd.f32 %v2300, %v2333
        %2335 = vmatmul.f32.gmra.mxu0 %v2308
        %v2336 = vpop.f32.mrf.mxu0
        %v2337 = vadd.f32 %v2300, %v2336
        %2338 = vmatmul.f32.gmra.mxu0 %v2311
        %v2339 = vpop.f32.mrf.mxu0
        %v2340 = vadd.f32 %v2300, %v2339
        %2341 = vdwg.mxu0
        %v2342 = vperm.slane %v2293, 0
        %2343 = vmatpush.msra.mxu0 0.0
        %2344 = vmatpush.msra.mxu0 0.0
        %2345 = vmatpush.msra.mxu0 0.0
        %2346 = vmatpush.msra.mxu0 0.0
        %2347 = vmatpush.msra.mxu0 0.0
        %2348 = vmatpush.msra.mxu0 0.0
        %2349 = vmatpush.msra.mxu0 0.0
        %2350 = vmatpush.msra.mxu0 0.0
        %2351 = vmatpush.msra.mxu0 0.0
        %2352 = vmatpush.msra.mxu0 0.0
        %2353 = vmatpush.msra.mxu0 0.0
        %2354 = vmatpush.msra.mxu0 0.0
        %2355 = vmatpush.msra.mxu0 %v2292
        %2356 = vmatpush.msra.mxu0 %v2291
        %2357 = vmatpush.msra.mxu0 %v2290
        %2358 = vmatpush.msra.mxu0 %v2289
        %2359 = vmatmul.f32.gmra.mxu0 %v2302
        %v2360 = vpop.f32.mrf.mxu0
        %v2361 = vadd.f32 %v2342, %v2360
        %2362 = vmatmul.f32.gmra.mxu0 %v2305
        %v2363 = vpop.f32.mrf.mxu0
        %v2364 = vadd.f32 %v2342, %v2363
        %2365 = vmatmul.f32.gmra.mxu0 %v2308
        %v2366 = vpop.f32.mrf.mxu0
        %v2367 = vadd.f32 %v2342, %v2366
        %2368 = vmatmul.f32.gmra.mxu0 %v2311
        %v2369 = vpop.f32.mrf.mxu0
        %v2370 = vadd.f32 %v2342, %v2369
        %2371 = vdwg.mxu0
        %v2372 = vperm.slane %v2299, 0
        %2373 = vmatpush.msra.mxu0 0.0
        %2374 = vmatpush.msra.mxu0 0.0
        %2375 = vmatpush.msra.mxu0 0.0
        %2376 = vmatpush.msra.mxu0 0.0
        %2377 = vmatpush.msra.mxu0 0.0
        %2378 = vmatpush.msra.mxu0 0.0
        %2379 = vmatpush.msra.mxu0 0.0
        %2380 = vmatpush.msra.mxu0 0.0
        %2381 = vmatpush.msra.mxu0 0.0
        %2382 = vmatpush.msra.mxu0 0.0
        %2383 = vmatpush.msra.mxu0 0.0
        %2384 = vmatpush.msra.mxu0 0.0
        %2385 = vmatpush.msra.mxu0 %v2298
        %2386 = vmatpush.msra.mxu0 %v2297
        %2387 = vmatpush.msra.mxu0 %v2296
        %2388 = vmatpush.msra.mxu0 %v2295
        %2389 = vmatmul.f32.gmra.mxu0 %v2302
        %v2390 = vpop.f32.mrf.mxu0
        %v2391 = vadd.f32 %v2372, %v2390
        %2392 = vmatmul.f32.gmra.mxu0 %v2305
        %v2393 = vpop.f32.mrf.mxu0
        %v2394 = vadd.f32 %v2372, %v2393
        %2395 = vmatmul.f32.gmra.mxu0 %v2308
        %v2396 = vpop.f32.mrf.mxu0
        %v2397 = vadd.f32 %v2372, %v2396
        %2398 = vmatmul.f32.gmra.mxu0 %v2311
        %v2399 = vpop.f32.mrf.mxu0
        %v2400 = vadd.f32 %v2372, %v2399
        %2401 = vdwg.mxu0
        %v2403 = vsel %vm365, %v2331, 0
        %v2406 = vsel %vm365, %v2361, 0
        %2408 = vmatpush.xpose.msra.mxu0 0.0
        %2409 = vmatpush.xpose.msra.mxu0 0.0
        %2410 = vmatpush.xpose.msra.mxu0 0.0
        %2411 = vmatpush.xpose.msra.mxu0 0.0
        %2412 = vmatpush.xpose.msra.mxu0 0.0
        %2413 = vmatpush.xpose.msra.mxu0 0.0
        %2414 = vmatpush.xpose.msra.mxu0 0.0
        %2415 = vmatpush.xpose.msra.mxu0 0.0
        %2416 = vmatpush.xpose.msra.mxu0 0.0
        %2417 = vmatpush.xpose.msra.mxu0 0.0
        %2418 = vmatpush.xpose.msra.mxu0 0.0
        %2419 = vmatpush.xpose.msra.mxu0 0.0
        %2420 = vmatpush.xpose.msra.mxu0 0.0
        %2421 = vmatpush.xpose.msra.mxu0 0.0
        %2422 = vmatpush.xpose.msra.mxu0 0.0
        %2423 = vmatpush.xpose.msra.mxu0 %v2406
        %2424 = vmatmul.f32.gmra.mxu0 %v2403
        %v2425 = vpop.f32.mrf.mxu0
        %v2426 = vadd.f32 0.0, %v2425
        %2427 = vdwg.mxu0
        %v2429 = vsel %vm365, %v2334, 0
        %v2432 = vsel %vm365, %v2364, 0
        %2434 = vmatpush.xpose.msra.mxu0 0.0
        %2435 = vmatpush.xpose.msra.mxu0 0.0
        %2436 = vmatpush.xpose.msra.mxu0 0.0
        %2437 = vmatpush.xpose.msra.mxu0 0.0
        %2438 = vmatpush.xpose.msra.mxu0 0.0
        %2439 = vmatpush.xpose.msra.mxu0 0.0
        %2440 = vmatpush.xpose.msra.mxu0 0.0
        %2441 = vmatpush.xpose.msra.mxu0 0.0
        %2442 = vmatpush.xpose.msra.mxu0 0.0
        %2443 = vmatpush.xpose.msra.mxu0 0.0
        %2444 = vmatpush.xpose.msra.mxu0 0.0
        %2445 = vmatpush.xpose.msra.mxu0 0.0
        %2446 = vmatpush.xpose.msra.mxu0 0.0
        %2447 = vmatpush.xpose.msra.mxu0 0.0
        %2448 = vmatpush.xpose.msra.mxu0 0.0
        %2449 = vmatpush.xpose.msra.mxu0 %v2432
        %2450 = vmatmul.f32.gmra.mxu0 %v2429
        %v2451 = vpop.f32.mrf.mxu0
        %v2452 = vadd.f32 0.0, %v2451
        %2453 = vdwg.mxu0
        %v2455 = vsel %vm365, %v2337, 0
        %v2458 = vsel %vm365, %v2367, 0
        %2460 = vmatpush.xpose.msra.mxu0 0.0
        %2461 = vmatpush.xpose.msra.mxu0 0.0
        %2462 = vmatpush.xpose.msra.mxu0 0.0
        %2463 = vmatpush.xpose.msra.mxu0 0.0
        %2464 = vmatpush.xpose.msra.mxu0 0.0
        %2465 = vmatpush.xpose.msra.mxu0 0.0
        %2466 = vmatpush.xpose.msra.mxu0 0.0
        %2467 = vmatpush.xpose.msra.mxu0 0.0
        %2468 = vmatpush.xpose.msra.mxu0 0.0
        %2469 = vmatpush.xpose.msra.mxu0 0.0
        %2470 = vmatpush.xpose.msra.mxu0 0.0
        %2471 = vmatpush.xpose.msra.mxu0 0.0
        %2472 = vmatpush.xpose.msra.mxu0 0.0
        %2473 = vmatpush.xpose.msra.mxu0 0.0
        %2474 = vmatpush.xpose.msra.mxu0 0.0
        %2475 = vmatpush.xpose.msra.mxu0 %v2458
        %2476 = vmatmul.f32.gmra.mxu0 %v2455
        %v2477 = vpop.f32.mrf.mxu0
        %v2478 = vadd.f32 0.0, %v2477
        %2479 = vdwg.mxu0
        %v2481 = vsel %vm365, %v2340, 0
        %v2484 = vsel %vm365, %v2370, 0
        %2486 = vmatpush.xpose.msra.mxu0 0.0
        %2487 = vmatpush.xpose.msra.mxu0 0.0
        %2488 = vmatpush.xpose.msra.mxu0 0.0
        %2489 = vmatpush.xpose.msra.mxu0 0.0
        %2490 = vmatpush.xpose.msra.mxu0 0.0
        %2491 = vmatpush.xpose.msra.mxu0 0.0
        %2492 = vmatpush.xpose.msra.mxu0 0.0
        %2493 = vmatpush.xpose.msra.mxu0 0.0
        %2494 = vmatpush.xpose.msra.mxu0 0.0
        %2495 = vmatpush.xpose.msra.mxu0 0.0
        %2496 = vmatpush.xpose.msra.mxu0 0.0
        %2497 = vmatpush.xpose.msra.mxu0 0.0
        %2498 = vmatpush.xpose.msra.mxu0 0.0
        %2499 = vmatpush.xpose.msra.mxu0 0.0
        %2500 = vmatpush.xpose.msra.mxu0 0.0
        %2501 = vmatpush.xpose.msra.mxu0 %v2484
        %2502 = vmatmul.f32.gmra.mxu0 %v2481
        %v2503 = vpop.f32.mrf.mxu0
        %v2504 = vadd.f32 0.0, %v2503
        %2505 = vdwg.mxu0
        %v2506 = vsel %vm365, %v2426, -inf
        %2507 = vmax.xlane.f32.xlu0 %v2506
        %v2508 = vpop.xlane.xlu0 %2507
        %v2509 = vsel %vm365, %v2452, -inf
        %2510 = vmax.xlane.f32.xlu0 %v2509
        %v2511 = vpop.xlane.xlu0 %2510
        %v2512 = vsel %vm365, %v2478, -inf
        %2513 = vmax.xlane.f32.xlu0 %v2512
        %v2514 = vpop.xlane.xlu0 %2513
        %v2515 = vsel %vm365, %v2504, -inf
        %2516 = vmax.xlane.f32.xlu0 %v2515
        %v2517 = vpop.xlane.xlu0 %2516
        %v2518 = vsub.f32 %v2426, %v2508
        %v2519 = vsub.f32 %v2452, %v2511
        %v2520 = vsub.f32 %v2478, %v2514
        %v2521 = vsub.f32 %v2504, %v2517
        %v2522 = vmul.f32 %v2518, 1.442695
        %v2523 = vpow.pop %v2522
        %v2524 = vmul.f32 %v2519, 1.442695
        %v2525 = vpow.pop %v2524
        %v2526 = vmul.f32 %v2520, 1.442695
        %v2527 = vpow.pop %v2526
        %v2528 = vmul.f32 %v2521, 1.442695
        %v2529 = vpow.pop %v2528
        %v2530 = vsel %vm365, %v2523, 0.0
        %2531 = vadd.xlane.f32.xlu0 %v2530
        %v2532 = vpop.xlane.xlu0 %2531
        %v2533 = vsel %vm365, %v2525, 0.0
        %2534 = vadd.xlane.f32.xlu0 %v2533
        %v2535 = vpop.xlane.xlu0 %2534
        %v2536 = vsel %vm365, %v2527, 0.0
        %2537 = vadd.xlane.f32.xlu0 %v2536
        %v2538 = vpop.xlane.xlu0 %2537
        %v2539 = vsel %vm365, %v2529, 0.0
        %2540 = vadd.xlane.f32.xlu0 %v2539
        %v2541 = vpop.xlane.xlu0 %2540
        %v2542 = vrcp.pop %v2532
        %v2543 = vrcp.pop %v2535
        %v2544 = vrcp.pop %v2538
        %v2545 = vrcp.pop %v2541
        %v2546 = vmul.f32 %v2523, %v2542
        %v2547 = vmul.f32 %v2525, %v2543
        %v2548 = vmul.f32 %v2527, %v2544
        %v2549 = vmul.f32 %v2529, %v2545
        %s2550 = scalar_lea.vmem %s4, 200
        %v2551 = vld [vmem:[%s2550] sm:$0xff]
        %v2552 = vld [vmem:[%s2550 + $0x8] sm:$0xff]
        %v2553 = vld [vmem:[%s2550 + $0x10] sm:$0xff]
        %v2554 = vld [vmem:[%s2550 + $0x18] sm:$0xff]
        %v2555 = vld [vmem:[%s2550 + $0x20] sm:$0xff]
        %s2556 = scalar_lea.vmem %s5, 200
        %v2557 = vld [vmem:[%s2556] sm:$0xff]
        %v2558 = vld [vmem:[%s2556 + $0x8] sm:$0xff]
        %v2559 = vld [vmem:[%s2556 + $0x10] sm:$0xff]
        %v2560 = vld [vmem:[%s2556 + $0x18] sm:$0xff]
        %v2561 = vld [vmem:[%s2556 + $0x20] sm:$0xff]
        %s2562 = scalar_lea.vmem %s6, 200
        %v2563 = vld [vmem:[%s2562] sm:$0xff]
        %v2564 = vld [vmem:[%s2562 + $0x8] sm:$0xff]
        %v2565 = vld [vmem:[%s2562 + $0x10] sm:$0xff]
        %v2566 = vld [vmem:[%s2562 + $0x18] sm:$0xff]
        %v2567 = vld [vmem:[%s2562 + $0x20] sm:$0xff]
        %v2568 = vperm.slane %v2555, 0
        %2569 = vmatpush.msra.mxu0 0.0
        %2570 = vmatpush.msra.mxu0 0.0
        %2571 = vmatpush.msra.mxu0 0.0
        %2572 = vmatpush.msra.mxu0 0.0
        %2573 = vmatpush.msra.mxu0 0.0
        %2574 = vmatpush.msra.mxu0 0.0
        %2575 = vmatpush.msra.mxu0 0.0
        %2576 = vmatpush.msra.mxu0 0.0
        %2577 = vmatpush.msra.mxu0 0.0
        %2578 = vmatpush.msra.mxu0 0.0
        %2579 = vmatpush.msra.mxu0 0.0
        %2580 = vmatpush.msra.mxu0 0.0
        %2581 = vmatpush.msra.mxu0 %v2554
        %2582 = vmatpush.msra.mxu0 %v2553
        %2583 = vmatpush.msra.mxu0 %v2552
        %2584 = vmatpush.msra.mxu0 %v2551
        %2585 = vmatmul.f32.gmra.mxu0 %v2302
        %v2586 = vpop.f32.mrf.mxu0
        %v2587 = vadd.f32 %v2568, %v2586
        %2588 = vmatmul.f32.gmra.mxu0 %v2305
        %v2589 = vpop.f32.mrf.mxu0
        %v2590 = vadd.f32 %v2568, %v2589
        %2591 = vmatmul.f32.gmra.mxu0 %v2308
        %v2592 = vpop.f32.mrf.mxu0
        %v2593 = vadd.f32 %v2568, %v2592
        %2594 = vmatmul.f32.gmra.mxu0 %v2311
        %v2595 = vpop.f32.mrf.mxu0
        %v2596 = vadd.f32 %v2568, %v2595
        %2597 = vdwg.mxu0
        %v2598 = vperm.slane %v2561, 0
        %2599 = vmatpush.msra.mxu0 0.0
        %2600 = vmatpush.msra.mxu0 0.0
        %2601 = vmatpush.msra.mxu0 0.0
        %2602 = vmatpush.msra.mxu0 0.0
        %2603 = vmatpush.msra.mxu0 0.0
        %2604 = vmatpush.msra.mxu0 0.0
        %2605 = vmatpush.msra.mxu0 0.0
        %2606 = vmatpush.msra.mxu0 0.0
        %2607 = vmatpush.msra.mxu0 0.0
        %2608 = vmatpush.msra.mxu0 0.0
        %2609 = vmatpush.msra.mxu0 0.0
        %2610 = vmatpush.msra.mxu0 0.0
        %2611 = vmatpush.msra.mxu0 %v2560
        %2612 = vmatpush.msra.mxu0 %v2559
        %2613 = vmatpush.msra.mxu0 %v2558
        %2614 = vmatpush.msra.mxu0 %v2557
        %2615 = vmatmul.f32.gmra.mxu0 %v2302
        %v2616 = vpop.f32.mrf.mxu0
        %v2617 = vadd.f32 %v2598, %v2616
        %2618 = vmatmul.f32.gmra.mxu0 %v2305
        %v2619 = vpop.f32.mrf.mxu0
        %v2620 = vadd.f32 %v2598, %v2619
        %2621 = vmatmul.f32.gmra.mxu0 %v2308
        %v2622 = vpop.f32.mrf.mxu0
        %v2623 = vadd.f32 %v2598, %v2622
        %2624 = vmatmul.f32.gmra.mxu0 %v2311
        %v2625 = vpop.f32.mrf.mxu0
        %v2626 = vadd.f32 %v2598, %v2625
        %2627 = vdwg.mxu0
        %v2628 = vperm.slane %v2567, 0
        %2629 = vmatpush.msra.mxu0 0.0
        %2630 = vmatpush.msra.mxu0 0.0
        %2631 = vmatpush.msra.mxu0 0.0
        %2632 = vmatpush.msra.mxu0 0.0
        %2633 = vmatpush.msra.mxu0 0.0
        %2634 = vmatpush.msra.mxu0 0.0
        %2635 = vmatpush.msra.mxu0 0.0
        %2636 = vmatpush.msra.mxu0 0.0
        %2637 = vmatpush.msra.mxu0 0.0
        %2638 = vmatpush.msra.mxu0 0.0
        %2639 = vmatpush.msra.mxu0 0.0
        %2640 = vmatpush.msra.mxu0 0.0
        %2641 = vmatpush.msra.mxu0 %v2566
        %2642 = vmatpush.msra.mxu0 %v2565
        %2643 = vmatpush.msra.mxu0 %v2564
        %2644 = vmatpush.msra.mxu0 %v2563
        %2645 = vmatmul.f32.gmra.mxu0 %v2302
        %v2646 = vpop.f32.mrf.mxu0
        %v2647 = vadd.f32 %v2628, %v2646
        %2648 = vmatmul.f32.gmra.mxu0 %v2305
        %v2649 = vpop.f32.mrf.mxu0
        %v2650 = vadd.f32 %v2628, %v2649
        %2651 = vmatmul.f32.gmra.mxu0 %v2308
        %v2652 = vpop.f32.mrf.mxu0
        %v2653 = vadd.f32 %v2628, %v2652
        %2654 = vmatmul.f32.gmra.mxu0 %v2311
        %v2655 = vpop.f32.mrf.mxu0
        %v2656 = vadd.f32 %v2628, %v2655
        %2657 = vdwg.mxu0
        %v2659 = vsel %vm365, %v2587, 0
        %v2662 = vsel %vm365, %v2617, 0
        %2664 = vmatpush.xpose.msra.mxu0 0.0
        %2665 = vmatpush.xpose.msra.mxu0 0.0
        %2666 = vmatpush.xpose.msra.mxu0 0.0
        %2667 = vmatpush.xpose.msra.mxu0 0.0
        %2668 = vmatpush.xpose.msra.mxu0 0.0
        %2669 = vmatpush.xpose.msra.mxu0 0.0
        %2670 = vmatpush.xpose.msra.mxu0 0.0
        %2671 = vmatpush.xpose.msra.mxu0 0.0
        %2672 = vmatpush.xpose.msra.mxu0 0.0
        %2673 = vmatpush.xpose.msra.mxu0 0.0
        %2674 = vmatpush.xpose.msra.mxu0 0.0
        %2675 = vmatpush.xpose.msra.mxu0 0.0
        %2676 = vmatpush.xpose.msra.mxu0 0.0
        %2677 = vmatpush.xpose.msra.mxu0 0.0
        %2678 = vmatpush.xpose.msra.mxu0 0.0
        %2679 = vmatpush.xpose.msra.mxu0 %v2662
        %2680 = vmatmul.f32.gmra.mxu0 %v2659
        %v2681 = vpop.f32.mrf.mxu0
        %v2682 = vadd.f32 0.0, %v2681
        %2683 = vdwg.mxu0
        %v2685 = vsel %vm365, %v2590, 0
        %v2688 = vsel %vm365, %v2620, 0
        %2690 = vmatpush.xpose.msra.mxu0 0.0
        %2691 = vmatpush.xpose.msra.mxu0 0.0
        %2692 = vmatpush.xpose.msra.mxu0 0.0
        %2693 = vmatpush.xpose.msra.mxu0 0.0
        %2694 = vmatpush.xpose.msra.mxu0 0.0
        %2695 = vmatpush.xpose.msra.mxu0 0.0
        %2696 = vmatpush.xpose.msra.mxu0 0.0
        %2697 = vmatpush.xpose.msra.mxu0 0.0
        %2698 = vmatpush.xpose.msra.mxu0 0.0
        %2699 = vmatpush.xpose.msra.mxu0 0.0
        %2700 = vmatpush.xpose.msra.mxu0 0.0
        %2701 = vmatpush.xpose.msra.mxu0 0.0
        %2702 = vmatpush.xpose.msra.mxu0 0.0
        %2703 = vmatpush.xpose.msra.mxu0 0.0
        %2704 = vmatpush.xpose.msra.mxu0 0.0
        %2705 = vmatpush.xpose.msra.mxu0 %v2688
        %2706 = vmatmul.f32.gmra.mxu0 %v2685
        %v2707 = vpop.f32.mrf.mxu0
        %v2708 = vadd.f32 0.0, %v2707
        %2709 = vdwg.mxu0
        %v2711 = vsel %vm365, %v2593, 0
        %v2714 = vsel %vm365, %v2623, 0
        %2716 = vmatpush.xpose.msra.mxu0 0.0
        %2717 = vmatpush.xpose.msra.mxu0 0.0
        %2718 = vmatpush.xpose.msra.mxu0 0.0
        %2719 = vmatpush.xpose.msra.mxu0 0.0
        %2720 = vmatpush.xpose.msra.mxu0 0.0
        %2721 = vmatpush.xpose.msra.mxu0 0.0
        %2722 = vmatpush.xpose.msra.mxu0 0.0
        %2723 = vmatpush.xpose.msra.mxu0 0.0
        %2724 = vmatpush.xpose.msra.mxu0 0.0
        %2725 = vmatpush.xpose.msra.mxu0 0.0
        %2726 = vmatpush.xpose.msra.mxu0 0.0
        %2727 = vmatpush.xpose.msra.mxu0 0.0
        %2728 = vmatpush.xpose.msra.mxu0 0.0
        %2729 = vmatpush.xpose.msra.mxu0 0.0
        %2730 = vmatpush.xpose.msra.mxu0 0.0
        %2731 = vmatpush.xpose.msra.mxu0 %v2714
        %2732 = vmatmul.f32.gmra.mxu0 %v2711
        %v2733 = vpop.f32.mrf.mxu0
        %v2734 = vadd.f32 0.0, %v2733
        %2735 = vdwg.mxu0
        %v2737 = vsel %vm365, %v2596, 0
        %v2740 = vsel %vm365, %v2626, 0
        %2742 = vmatpush.xpose.msra.mxu0 0.0
        %2743 = vmatpush.xpose.msra.mxu0 0.0
        %2744 = vmatpush.xpose.msra.mxu0 0.0
        %2745 = vmatpush.xpose.msra.mxu0 0.0
        %2746 = vmatpush.xpose.msra.mxu0 0.0
        %2747 = vmatpush.xpose.msra.mxu0 0.0
        %2748 = vmatpush.xpose.msra.mxu0 0.0
        %2749 = vmatpush.xpose.msra.mxu0 0.0
        %2750 = vmatpush.xpose.msra.mxu0 0.0
        %2751 = vmatpush.xpose.msra.mxu0 0.0
        %2752 = vmatpush.xpose.msra.mxu0 0.0
        %2753 = vmatpush.xpose.msra.mxu0 0.0
        %2754 = vmatpush.xpose.msra.mxu0 0.0
        %2755 = vmatpush.xpose.msra.mxu0 0.0
        %2756 = vmatpush.xpose.msra.mxu0 0.0
        %2757 = vmatpush.xpose.msra.mxu0 %v2740
        %2758 = vmatmul.f32.gmra.mxu0 %v2737
        %v2759 = vpop.f32.mrf.mxu0
        %v2760 = vadd.f32 0.0, %v2759
        %2761 = vdwg.mxu0
        %v2762 = vsel %vm365, %v2682, -inf
        %2763 = vmax.xlane.f32.xlu0 %v2762
        %v2764 = vpop.xlane.xlu0 %2763
        %v2765 = vsel %vm365, %v2708, -inf
        %2766 = vmax.xlane.f32.xlu0 %v2765
        %v2767 = vpop.xlane.xlu0 %2766
        %v2768 = vsel %vm365, %v2734, -inf
        %2769 = vmax.xlane.f32.xlu0 %v2768
        %v2770 = vpop.xlane.xlu0 %2769
        %v2771 = vsel %vm365, %v2760, -inf
        %2772 = vmax.xlane.f32.xlu0 %v2771
        %v2773 = vpop.xlane.xlu0 %2772
        %v2774 = vsub.f32 %v2682, %v2764
        %v2775 = vsub.f32 %v2708, %v2767
        %v2776 = vsub.f32 %v2734, %v2770
        %v2777 = vsub.f32 %v2760, %v2773
        %v2778 = vmul.f32 %v2774, 1.442695
        %v2779 = vpow.pop %v2778
        %v2780 = vmul.f32 %v2775, 1.442695
        %v2781 = vpow.pop %v2780
        %v2782 = vmul.f32 %v2776, 1.442695
        %v2783 = vpow.pop %v2782
        %v2784 = vmul.f32 %v2777, 1.442695
        %v2785 = vpow.pop %v2784
        %v2786 = vsel %vm365, %v2779, 0.0
        %2787 = vadd.xlane.f32.xlu0 %v2786
        %v2788 = vpop.xlane.xlu0 %2787
        %v2789 = vsel %vm365, %v2781, 0.0
        %2790 = vadd.xlane.f32.xlu0 %v2789
        %v2791 = vpop.xlane.xlu0 %2790
        %v2792 = vsel %vm365, %v2783, 0.0
        %2793 = vadd.xlane.f32.xlu0 %v2792
        %v2794 = vpop.xlane.xlu0 %2793
        %v2795 = vsel %vm365, %v2785, 0.0
        %2796 = vadd.xlane.f32.xlu0 %v2795
        %v2797 = vpop.xlane.xlu0 %2796
        %v2798 = vrcp.pop %v2788
        %v2799 = vrcp.pop %v2791
        %v2800 = vrcp.pop %v2794
        %v2801 = vrcp.pop %v2797
        %v2802 = vmul.f32 %v2779, %v2798
        %v2803 = vmul.f32 %v2781, %v2799
        %v2804 = vmul.f32 %v2783, %v2800
        %v2805 = vmul.f32 %v2785, %v2801
        %v2807 = vsel %vm365, %v2802, 0
        %2809 = vmatpush.msra.mxu0 0.0
        %2810 = vmatpush.msra.mxu0 0.0
        %2811 = vmatpush.msra.mxu0 0.0
        %2812 = vmatpush.msra.mxu0 0.0
        %2813 = vmatpush.msra.mxu0 0.0
        %2814 = vmatpush.msra.mxu0 0.0
        %2815 = vmatpush.msra.mxu0 0.0
        %2816 = vmatpush.msra.mxu0 0.0
        %2817 = vmatpush.msra.mxu0 0.0
        %2818 = vmatpush.msra.mxu0 0.0
        %2819 = vmatpush.msra.mxu0 0.0
        %2820 = vmatpush.msra.mxu0 0.0
        %2821 = vmatpush.msra.mxu0 0.0
        %2822 = vmatpush.msra.mxu0 0.0
        %2823 = vmatpush.msra.mxu0 0.0
        %2824 = vmatpush.msra.mxu0 %v2647
        %2825 = vmatmul.f32.gmra.mxu0 %v2807
        %v2826 = vpop.f32.mrf.mxu0
        %v2827 = vadd.f32 0.0, %v2826
        %2828 = vdwg.mxu0
        %v2830 = vsel %vm365, %v2803, 0
        %2832 = vmatpush.msra.mxu0 0.0
        %2833 = vmatpush.msra.mxu0 0.0
        %2834 = vmatpush.msra.mxu0 0.0
        %2835 = vmatpush.msra.mxu0 0.0
        %2836 = vmatpush.msra.mxu0 0.0
        %2837 = vmatpush.msra.mxu0 0.0
        %2838 = vmatpush.msra.mxu0 0.0
        %2839 = vmatpush.msra.mxu0 0.0
        %2840 = vmatpush.msra.mxu0 0.0
        %2841 = vmatpush.msra.mxu0 0.0
        %2842 = vmatpush.msra.mxu0 0.0
        %2843 = vmatpush.msra.mxu0 0.0
        %2844 = vmatpush.msra.mxu0 0.0
        %2845 = vmatpush.msra.mxu0 0.0
        %2846 = vmatpush.msra.mxu0 0.0
        %2847 = vmatpush.msra.mxu0 %v2650
        %2848 = vmatmul.f32.gmra.mxu0 %v2830
        %v2849 = vpop.f32.mrf.mxu0
        %v2850 = vadd.f32 0.0, %v2849
        %2851 = vdwg.mxu0
        %v2853 = vsel %vm365, %v2804, 0
        %2855 = vmatpush.msra.mxu0 0.0
        %2856 = vmatpush.msra.mxu0 0.0
        %2857 = vmatpush.msra.mxu0 0.0
        %2858 = vmatpush.msra.mxu0 0.0
        %2859 = vmatpush.msra.mxu0 0.0
        %2860 = vmatpush.msra.mxu0 0.0
        %2861 = vmatpush.msra.mxu0 0.0
        %2862 = vmatpush.msra.mxu0 0.0
        %2863 = vmatpush.msra.mxu0 0.0
        %2864 = vmatpush.msra.mxu0 0.0
        %2865 = vmatpush.msra.mxu0 0.0
        %2866 = vmatpush.msra.mxu0 0.0
        %2867 = vmatpush.msra.mxu0 0.0
        %2868 = vmatpush.msra.mxu0 0.0
        %2869 = vmatpush.msra.mxu0 0.0
        %2870 = vmatpush.msra.mxu0 %v2653
        %2871 = vmatmul.f32.gmra.mxu0 %v2853
        %v2872 = vpop.f32.mrf.mxu0
        %v2873 = vadd.f32 0.0, %v2872
        %2874 = vdwg.mxu0
        %v2876 = vsel %vm365, %v2805, 0
        %2878 = vmatpush.msra.mxu0 0.0
        %2879 = vmatpush.msra.mxu0 0.0
        %2880 = vmatpush.msra.mxu0 0.0
        %2881 = vmatpush.msra.mxu0 0.0
        %2882 = vmatpush.msra.mxu0 0.0
        %2883 = vmatpush.msra.mxu0 0.0
        %2884 = vmatpush.msra.mxu0 0.0
        %2885 = vmatpush.msra.mxu0 0.0
        %2886 = vmatpush.msra.mxu0 0.0
        %2887 = vmatpush.msra.mxu0 0.0
        %2888 = vmatpush.msra.mxu0 0.0
        %2889 = vmatpush.msra.mxu0 0.0
        %2890 = vmatpush.msra.mxu0 0.0
        %2891 = vmatpush.msra.mxu0 0.0
        %2892 = vmatpush.msra.mxu0 0.0
        %2893 = vmatpush.msra.mxu0 %v2656
        %2894 = vmatmul.f32.gmra.mxu0 %v2876
        %v2895 = vpop.f32.mrf.mxu0
        %v2896 = vadd.f32 0.0, %v2895
        %2897 = vdwg.mxu0
        %v2899 = vsel %vm365, %v2546, 0
        %2901 = vmatpush.msra.mxu0 0.0
        %2902 = vmatpush.msra.mxu0 0.0
        %2903 = vmatpush.msra.mxu0 0.0
        %2904 = vmatpush.msra.mxu0 0.0
        %2905 = vmatpush.msra.mxu0 0.0
        %2906 = vmatpush.msra.mxu0 0.0
        %2907 = vmatpush.msra.mxu0 0.0
        %2908 = vmatpush.msra.mxu0 0.0
        %2909 = vmatpush.msra.mxu0 0.0
        %2910 = vmatpush.msra.mxu0 0.0
        %2911 = vmatpush.msra.mxu0 0.0
        %2912 = vmatpush.msra.mxu0 0.0
        %2913 = vmatpush.msra.mxu0 0.0
        %2914 = vmatpush.msra.mxu0 0.0
        %2915 = vmatpush.msra.mxu0 0.0
        %2916 = vmatpush.msra.mxu0 %v2391
        %2917 = vmatmul.f32.gmra.mxu0 %v2899
        %v2918 = vpop.f32.mrf.mxu0
        %v2919 = vadd.f32 %v2827, %v2918
        %2920 = vdwg.mxu0
        %v2922 = vsel %vm365, %v2547, 0
        %2924 = vmatpush.msra.mxu0 0.0
        %2925 = vmatpush.msra.mxu0 0.0
        %2926 = vmatpush.msra.mxu0 0.0
        %2927 = vmatpush.msra.mxu0 0.0
        %2928 = vmatpush.msra.mxu0 0.0
        %2929 = vmatpush.msra.mxu0 0.0
        %2930 = vmatpush.msra.mxu0 0.0
        %2931 = vmatpush.msra.mxu0 0.0
        %2932 = vmatpush.msra.mxu0 0.0
        %2933 = vmatpush.msra.mxu0 0.0
        %2934 = vmatpush.msra.mxu0 0.0
        %2935 = vmatpush.msra.mxu0 0.0
        %2936 = vmatpush.msra.mxu0 0.0
        %2937 = vmatpush.msra.mxu0 0.0
        %2938 = vmatpush.msra.mxu0 0.0
        %2939 = vmatpush.msra.mxu0 %v2394
        %2940 = vmatmul.f32.gmra.mxu0 %v2922
        %v2941 = vpop.f32.mrf.mxu0
        %v2942 = vadd.f32 %v2850, %v2941
        %2943 = vdwg.mxu0
        %v2945 = vsel %vm365, %v2548, 0
        %2947 = vmatpush.msra.mxu0 0.0
        %2948 = vmatpush.msra.mxu0 0.0
        %2949 = vmatpush.msra.mxu0 0.0
        %2950 = vmatpush.msra.mxu0 0.0
        %2951 = vmatpush.msra.mxu0 0.0
        %2952 = vmatpush.msra.mxu0 0.0
        %2953 = vmatpush.msra.mxu0 0.0
        %2954 = vmatpush.msra.mxu0 0.0
        %2955 = vmatpush.msra.mxu0 0.0
        %2956 = vmatpush.msra.mxu0 0.0
        %2957 = vmatpush.msra.mxu0 0.0
        %2958 = vmatpush.msra.mxu0 0.0
        %2959 = vmatpush.msra.mxu0 0.0
        %2960 = vmatpush.msra.mxu0 0.0
        %2961 = vmatpush.msra.mxu0 0.0
        %2962 = vmatpush.msra.mxu0 %v2397
        %2963 = vmatmul.f32.gmra.mxu0 %v2945
        %v2964 = vpop.f32.mrf.mxu0
        %v2965 = vadd.f32 %v2873, %v2964
        %2966 = vdwg.mxu0
        %v2968 = vsel %vm365, %v2549, 0
        %2970 = vmatpush.msra.mxu0 0.0
        %2971 = vmatpush.msra.mxu0 0.0
        %2972 = vmatpush.msra.mxu0 0.0
        %2973 = vmatpush.msra.mxu0 0.0
        %2974 = vmatpush.msra.mxu0 0.0
        %2975 = vmatpush.msra.mxu0 0.0
        %2976 = vmatpush.msra.mxu0 0.0
        %2977 = vmatpush.msra.mxu0 0.0
        %2978 = vmatpush.msra.mxu0 0.0
        %2979 = vmatpush.msra.mxu0 0.0
        %2980 = vmatpush.msra.mxu0 0.0
        %2981 = vmatpush.msra.mxu0 0.0
        %2982 = vmatpush.msra.mxu0 0.0
        %2983 = vmatpush.msra.mxu0 0.0
        %2984 = vmatpush.msra.mxu0 0.0
        %2985 = vmatpush.msra.mxu0 %v2400
        %2986 = vmatmul.f32.gmra.mxu0 %v2968
        %v2987 = vpop.f32.mrf.mxu0
        %v2988 = vadd.f32 %v2896, %v2987
        %2989 = vdwg.mxu0
        %s2990 = scalar_lea.vmem %s4, 240
        %v2991 = vld [vmem:[%s2990] sm:$0xff]
        %v2992 = vld [vmem:[%s2990 + $0x8] sm:$0xff]
        %v2993 = vld [vmem:[%s2990 + $0x10] sm:$0xff]
        %v2994 = vld [vmem:[%s2990 + $0x18] sm:$0xff]
        %v2995 = vld [vmem:[%s2990 + $0x20] sm:$0xff]
        %s2996 = scalar_lea.vmem %s5, 240
        %v2997 = vld [vmem:[%s2996] sm:$0xff]
        %v2998 = vld [vmem:[%s2996 + $0x8] sm:$0xff]
        %v2999 = vld [vmem:[%s2996 + $0x10] sm:$0xff]
        %v3000 = vld [vmem:[%s2996 + $0x18] sm:$0xff]
        %v3001 = vld [vmem:[%s2996 + $0x20] sm:$0xff]
        %s3002 = scalar_lea.vmem %s6, 240
        %v3003 = vld [vmem:[%s3002] sm:$0xff]
        %v3004 = vld [vmem:[%s3002 + $0x8] sm:$0xff]
        %v3005 = vld [vmem:[%s3002 + $0x10] sm:$0xff]
        %v3006 = vld [vmem:[%s3002 + $0x18] sm:$0xff]
        %v3007 = vld [vmem:[%s3002 + $0x20] sm:$0xff]
        %v3008 = vperm.slane %v2995, 0
        %3009 = vmatpush.msra.mxu0 0.0
        %3010 = vmatpush.msra.mxu0 0.0
        %3011 = vmatpush.msra.mxu0 0.0
        %3012 = vmatpush.msra.mxu0 0.0
        %3013 = vmatpush.msra.mxu0 0.0
        %3014 = vmatpush.msra.mxu0 0.0
        %3015 = vmatpush.msra.mxu0 0.0
        %3016 = vmatpush.msra.mxu0 0.0
        %3017 = vmatpush.msra.mxu0 0.0
        %3018 = vmatpush.msra.mxu0 0.0
        %3019 = vmatpush.msra.mxu0 0.0
        %3020 = vmatpush.msra.mxu0 0.0
        %3021 = vmatpush.msra.mxu0 %v2994
        %3022 = vmatpush.msra.mxu0 %v2993
        %3023 = vmatpush.msra.mxu0 %v2992
        %3024 = vmatpush.msra.mxu0 %v2991
        %3025 = vmatmul.f32.gmra.mxu0 %v2302
        %v3026 = vpop.f32.mrf.mxu0
        %v3027 = vadd.f32 %v3008, %v3026
        %3028 = vmatmul.f32.gmra.mxu0 %v2305
        %v3029 = vpop.f32.mrf.mxu0
        %v3030 = vadd.f32 %v3008, %v3029
        %3031 = vmatmul.f32.gmra.mxu0 %v2308
        %v3032 = vpop.f32.mrf.mxu0
        %v3033 = vadd.f32 %v3008, %v3032
        %3034 = vmatmul.f32.gmra.mxu0 %v2311
        %v3035 = vpop.f32.mrf.mxu0
        %v3036 = vadd.f32 %v3008, %v3035
        %3037 = vdwg.mxu0
        %v3038 = vperm.slane %v3001, 0
        %3039 = vmatpush.msra.mxu0 0.0
        %3040 = vmatpush.msra.mxu0 0.0
        %3041 = vmatpush.msra.mxu0 0.0
        %3042 = vmatpush.msra.mxu0 0.0
        %3043 = vmatpush.msra.mxu0 0.0
        %3044 = vmatpush.msra.mxu0 0.0
        %3045 = vmatpush.msra.mxu0 0.0
        %3046 = vmatpush.msra.mxu0 0.0
        %3047 = vmatpush.msra.mxu0 0.0
        %3048 = vmatpush.msra.mxu0 0.0
        %3049 = vmatpush.msra.mxu0 0.0
        %3050 = vmatpush.msra.mxu0 0.0
        %3051 = vmatpush.msra.mxu0 %v3000
        %3052 = vmatpush.msra.mxu0 %v2999
        %3053 = vmatpush.msra.mxu0 %v2998
        %3054 = vmatpush.msra.mxu0 %v2997
        %3055 = vmatmul.f32.gmra.mxu0 %v2302
        %v3056 = vpop.f32.mrf.mxu0
        %v3057 = vadd.f32 %v3038, %v3056
        %3058 = vmatmul.f32.gmra.mxu0 %v2305
        %v3059 = vpop.f32.mrf.mxu0
        %v3060 = vadd.f32 %v3038, %v3059
        %3061 = vmatmul.f32.gmra.mxu0 %v2308
        %v3062 = vpop.f32.mrf.mxu0
        %v3063 = vadd.f32 %v3038, %v3062
        %3064 = vmatmul.f32.gmra.mxu0 %v2311
        %v3065 = vpop.f32.mrf.mxu0
        %v3066 = vadd.f32 %v3038, %v3065
        %3067 = vdwg.mxu0
        %v3068 = vperm.slane %v3007, 0
        %3069 = vmatpush.msra.mxu0 0.0
        %3070 = vmatpush.msra.mxu0 0.0
        %3071 = vmatpush.msra.mxu0 0.0
        %3072 = vmatpush.msra.mxu0 0.0
        %3073 = vmatpush.msra.mxu0 0.0
        %3074 = vmatpush.msra.mxu0 0.0
        %3075 = vmatpush.msra.mxu0 0.0
        %3076 = vmatpush.msra.mxu0 0.0
        %3077 = vmatpush.msra.mxu0 0.0
        %3078 = vmatpush.msra.mxu0 0.0
        %3079 = vmatpush.msra.mxu0 0.0
        %3080 = vmatpush.msra.mxu0 0.0
        %3081 = vmatpush.msra.mxu0 %v3006
        %3082 = vmatpush.msra.mxu0 %v3005
        %3083 = vmatpush.msra.mxu0 %v3004
        %3084 = vmatpush.msra.mxu0 %v3003
        %3085 = vmatmul.f32.gmra.mxu0 %v2302
        %v3086 = vpop.f32.mrf.mxu0
        %v3087 = vadd.f32 %v3068, %v3086
        %3088 = vmatmul.f32.gmra.mxu0 %v2305
        %v3089 = vpop.f32.mrf.mxu0
        %v3090 = vadd.f32 %v3068, %v3089
        %3091 = vmatmul.f32.gmra.mxu0 %v2308
        %v3092 = vpop.f32.mrf.mxu0
        %v3093 = vadd.f32 %v3068, %v3092
        %3094 = vmatmul.f32.gmra.mxu0 %v2311
        %v3095 = vpop.f32.mrf.mxu0
        %v3096 = vadd.f32 %v3068, %v3095
        %3097 = vdwg.mxu0
        %v3099 = vsel %vm365, %v3027, 0
        %v3102 = vsel %vm365, %v3057, 0
        %3104 = vmatpush.xpose.msra.mxu0 0.0
        %3105 = vmatpush.xpose.msra.mxu0 0.0
        %3106 = vmatpush.xpose.msra.mxu0 0.0
        %3107 = vmatpush.xpose.msra.mxu0 0.0
        %3108 = vmatpush.xpose.msra.mxu0 0.0
        %3109 = vmatpush.xpose.msra.mxu0 0.0
        %3110 = vmatpush.xpose.msra.mxu0 0.0
        %3111 = vmatpush.xpose.msra.mxu0 0.0
        %3112 = vmatpush.xpose.msra.mxu0 0.0
        %3113 = vmatpush.xpose.msra.mxu0 0.0
        %3114 = vmatpush.xpose.msra.mxu0 0.0
        %3115 = vmatpush.xpose.msra.mxu0 0.0
        %3116 = vmatpush.xpose.msra.mxu0 0.0
        %3117 = vmatpush.xpose.msra.mxu0 0.0
        %3118 = vmatpush.xpose.msra.mxu0 0.0
        %3119 = vmatpush.xpose.msra.mxu0 %v3102
        %3120 = vmatmul.f32.gmra.mxu0 %v3099
        %v3121 = vpop.f32.mrf.mxu0
        %v3122 = vadd.f32 0.0, %v3121
        %3123 = vdwg.mxu0
        %v3125 = vsel %vm365, %v3030, 0
        %v3128 = vsel %vm365, %v3060, 0
        %3130 = vmatpush.xpose.msra.mxu0 0.0
        %3131 = vmatpush.xpose.msra.mxu0 0.0
        %3132 = vmatpush.xpose.msra.mxu0 0.0
        %3133 = vmatpush.xpose.msra.mxu0 0.0
        %3134 = vmatpush.xpose.msra.mxu0 0.0
        %3135 = vmatpush.xpose.msra.mxu0 0.0
        %3136 = vmatpush.xpose.msra.mxu0 0.0
        %3137 = vmatpush.xpose.msra.mxu0 0.0
        %3138 = vmatpush.xpose.msra.mxu0 0.0
        %3139 = vmatpush.xpose.msra.mxu0 0.0
        %3140 = vmatpush.xpose.msra.mxu0 0.0
        %3141 = vmatpush.xpose.msra.mxu0 0.0
        %3142 = vmatpush.xpose.msra.mxu0 0.0
        %3143 = vmatpush.xpose.msra.mxu0 0.0
        %3144 = vmatpush.xpose.msra.mxu0 0.0
        %3145 = vmatpush.xpose.msra.mxu0 %v3128
        %3146 = vmatmul.f32.gmra.mxu0 %v3125
        %v3147 = vpop.f32.mrf.mxu0
        %v3148 = vadd.f32 0.0, %v3147
        %3149 = vdwg.mxu0
        %v3151 = vsel %vm365, %v3033, 0
        %v3154 = vsel %vm365, %v3063, 0
        %3156 = vmatpush.xpose.msra.mxu0 0.0
        %3157 = vmatpush.xpose.msra.mxu0 0.0
        %3158 = vmatpush.xpose.msra.mxu0 0.0
        %3159 = vmatpush.xpose.msra.mxu0 0.0
        %3160 = vmatpush.xpose.msra.mxu0 0.0
        %3161 = vmatpush.xpose.msra.mxu0 0.0
        %3162 = vmatpush.xpose.msra.mxu0 0.0
        %3163 = vmatpush.xpose.msra.mxu0 0.0
        %3164 = vmatpush.xpose.msra.mxu0 0.0
        %3165 = vmatpush.xpose.msra.mxu0 0.0
        %3166 = vmatpush.xpose.msra.mxu0 0.0
        %3167 = vmatpush.xpose.msra.mxu0 0.0
        %3168 = vmatpush.xpose.msra.mxu0 0.0
        %3169 = vmatpush.xpose.msra.mxu0 0.0
        %3170 = vmatpush.xpose.msra.mxu0 0.0
        %3171 = vmatpush.xpose.msra.mxu0 %v3154
        %3172 = vmatmul.f32.gmra.mxu0 %v3151
        %v3173 = vpop.f32.mrf.mxu0
        %v3174 = vadd.f32 0.0, %v3173
        %3175 = vdwg.mxu0
        %v3177 = vsel %vm365, %v3036, 0
        %v3180 = vsel %vm365, %v3066, 0
        %3182 = vmatpush.xpose.msra.mxu0 0.0
        %3183 = vmatpush.xpose.msra.mxu0 0.0
        %3184 = vmatpush.xpose.msra.mxu0 0.0
        %3185 = vmatpush.xpose.msra.mxu0 0.0
        %3186 = vmatpush.xpose.msra.mxu0 0.0
        %3187 = vmatpush.xpose.msra.mxu0 0.0
        %3188 = vmatpush.xpose.msra.mxu0 0.0
        %3189 = vmatpush.xpose.msra.mxu0 0.0
        %3190 = vmatpush.xpose.msra.mxu0 0.0
        %3191 = vmatpush.xpose.msra.mxu0 0.0
        %3192 = vmatpush.xpose.msra.mxu0 0.0
        %3193 = vmatpush.xpose.msra.mxu0 0.0
        %3194 = vmatpush.xpose.msra.mxu0 0.0
        %3195 = vmatpush.xpose.msra.mxu0 0.0
        %3196 = vmatpush.xpose.msra.mxu0 0.0
        %3197 = vmatpush.xpose.msra.mxu0 %v3180
        %3198 = vmatmul.f32.gmra.mxu0 %v3177
        %v3199 = vpop.f32.mrf.mxu0
        %v3200 = vadd.f32 0.0, %v3199
        %3201 = vdwg.mxu0
        %v3202 = vsel %vm365, %v3122, -inf
        %3203 = vmax.xlane.f32.xlu0 %v3202
        %v3204 = vpop.xlane.xlu0 %3203
        %v3205 = vsel %vm365, %v3148, -inf
        %3206 = vmax.xlane.f32.xlu0 %v3205
        %v3207 = vpop.xlane.xlu0 %3206
        %v3208 = vsel %vm365, %v3174, -inf
        %3209 = vmax.xlane.f32.xlu0 %v3208
        %v3210 = vpop.xlane.xlu0 %3209
        %v3211 = vsel %vm365, %v3200, -inf
        %3212 = vmax.xlane.f32.xlu0 %v3211
        %v3213 = vpop.xlane.xlu0 %3212
        %v3214 = vsub.f32 %v3122, %v3204
        %v3215 = vsub.f32 %v3148, %v3207
        %v3216 = vsub.f32 %v3174, %v3210
        %v3217 = vsub.f32 %v3200, %v3213
        %v3218 = vmul.f32 %v3214, 1.442695
        %v3219 = vpow.pop %v3218
        %v3220 = vmul.f32 %v3215, 1.442695
        %v3221 = vpow.pop %v3220
        %v3222 = vmul.f32 %v3216, 1.442695
        %v3223 = vpow.pop %v3222
        %v3224 = vmul.f32 %v3217, 1.442695
        %v3225 = vpow.pop %v3224
        %v3226 = vsel %vm365, %v3219, 0.0
        %3227 = vadd.xlane.f32.xlu0 %v3226
        %v3228 = vpop.xlane.xlu0 %3227
        %v3229 = vsel %vm365, %v3221, 0.0
        %3230 = vadd.xlane.f32.xlu0 %v3229
        %v3231 = vpop.xlane.xlu0 %3230
        %v3232 = vsel %vm365, %v3223, 0.0
        %3233 = vadd.xlane.f32.xlu0 %v3232
        %v3234 = vpop.xlane.xlu0 %3233
        %v3235 = vsel %vm365, %v3225, 0.0
        %3236 = vadd.xlane.f32.xlu0 %v3235
        %v3237 = vpop.xlane.xlu0 %3236
        %v3238 = vrcp.pop %v3228
        %v3239 = vrcp.pop %v3231
        %v3240 = vrcp.pop %v3234
        %v3241 = vrcp.pop %v3237
        %v3242 = vmul.f32 %v3219, %v3238
        %v3243 = vmul.f32 %v3221, %v3239
        %v3244 = vmul.f32 %v3223, %v3240
        %v3245 = vmul.f32 %v3225, %v3241
        %v3247 = vsel %vm365, %v3242, 0
        %3249 = vmatpush.msra.mxu0 0.0
        %3250 = vmatpush.msra.mxu0 0.0
        %3251 = vmatpush.msra.mxu0 0.0
        %3252 = vmatpush.msra.mxu0 0.0
        %3253 = vmatpush.msra.mxu0 0.0
        %3254 = vmatpush.msra.mxu0 0.0
        %3255 = vmatpush.msra.mxu0 0.0
        %3256 = vmatpush.msra.mxu0 0.0
        %3257 = vmatpush.msra.mxu0 0.0
        %3258 = vmatpush.msra.mxu0 0.0
        %3259 = vmatpush.msra.mxu0 0.0
        %3260 = vmatpush.msra.mxu0 0.0
        %3261 = vmatpush.msra.mxu0 0.0
        %3262 = vmatpush.msra.mxu0 0.0
        %3263 = vmatpush.msra.mxu0 0.0
        %3264 = vmatpush.msra.mxu0 %v3087
        %3265 = vmatmul.f32.gmra.mxu0 %v3247
        %v3266 = vpop.f32.mrf.mxu0
        %v3267 = vadd.f32 0.0, %v3266
        %3268 = vdwg.mxu0
        %v3270 = vsel %vm365, %v3243, 0
        %3272 = vmatpush.msra.mxu0 0.0
        %3273 = vmatpush.msra.mxu0 0.0
        %3274 = vmatpush.msra.mxu0 0.0
        %3275 = vmatpush.msra.mxu0 0.0
        %3276 = vmatpush.msra.mxu0 0.0
        %3277 = vmatpush.msra.mxu0 0.0
        %3278 = vmatpush.msra.mxu0 0.0
        %3279 = vmatpush.msra.mxu0 0.0
        %3280 = vmatpush.msra.mxu0 0.0
        %3281 = vmatpush.msra.mxu0 0.0
        %3282 = vmatpush.msra.mxu0 0.0
        %3283 = vmatpush.msra.mxu0 0.0
        %3284 = vmatpush.msra.mxu0 0.0
        %3285 = vmatpush.msra.mxu0 0.0
        %3286 = vmatpush.msra.mxu0 0.0
        %3287 = vmatpush.msra.mxu0 %v3090
        %3288 = vmatmul.f32.gmra.mxu0 %v3270
        %v3289 = vpop.f32.mrf.mxu0
        %v3290 = vadd.f32 0.0, %v3289
        %3291 = vdwg.mxu0
        %v3293 = vsel %vm365, %v3244, 0
        %3295 = vmatpush.msra.mxu0 0.0
        %3296 = vmatpush.msra.mxu0 0.0
        %3297 = vmatpush.msra.mxu0 0.0
        %3298 = vmatpush.msra.mxu0 0.0
        %3299 = vmatpush.msra.mxu0 0.0
        %3300 = vmatpush.msra.mxu0 0.0
        %3301 = vmatpush.msra.mxu0 0.0
        %3302 = vmatpush.msra.mxu0 0.0
        %3303 = vmatpush.msra.mxu0 0.0
        %3304 = vmatpush.msra.mxu0 0.0
        %3305 = vmatpush.msra.mxu0 0.0
        %3306 = vmatpush.msra.mxu0 0.0
        %3307 = vmatpush.msra.mxu0 0.0
        %3308 = vmatpush.msra.mxu0 0.0
        %3309 = vmatpush.msra.mxu0 0.0
        %3310 = vmatpush.msra.mxu0 %v3093
        %3311 = vmatmul.f32.gmra.mxu0 %v3293
        %v3312 = vpop.f32.mrf.mxu0
        %v3313 = vadd.f32 0.0, %v3312
        %3314 = vdwg.mxu0
        %v3316 = vsel %vm365, %v3245, 0
        %3318 = vmatpush.msra.mxu0 0.0
        %3319 = vmatpush.msra.mxu0 0.0
        %3320 = vmatpush.msra.mxu0 0.0
        %3321 = vmatpush.msra.mxu0 0.0
        %3322 = vmatpush.msra.mxu0 0.0
        %3323 = vmatpush.msra.mxu0 0.0
        %3324 = vmatpush.msra.mxu0 0.0
        %3325 = vmatpush.msra.mxu0 0.0
        %3326 = vmatpush.msra.mxu0 0.0
        %3327 = vmatpush.msra.mxu0 0.0
        %3328 = vmatpush.msra.mxu0 0.0
        %3329 = vmatpush.msra.mxu0 0.0
        %3330 = vmatpush.msra.mxu0 0.0
        %3331 = vmatpush.msra.mxu0 0.0
        %3332 = vmatpush.msra.mxu0 0.0
        %3333 = vmatpush.msra.mxu0 %v3096
        %3334 = vmatmul.f32.gmra.mxu0 %v3316
        %v3335 = vpop.f32.mrf.mxu0
        %v3336 = vadd.f32 0.0, %v3335
        %3337 = vdwg.mxu0
        %v3338 = vadd.f32 %v2919, %v3267
        %v3339 = vadd.f32 %v2942, %v3290
        %v3340 = vadd.f32 %v2965, %v3313
        %v3341 = vadd.f32 %v2988, %v3336
        %s3342 = scalar_lea.vmem %s4, 280
        %v3343 = vld [vmem:[%s3342] sm:$0xff]
        %v3344 = vld [vmem:[%s3342 + $0x8] sm:$0xff]
        %v3345 = vld [vmem:[%s3342 + $0x10] sm:$0xff]
        %v3346 = vld [vmem:[%s3342 + $0x18] sm:$0xff]
        %v3347 = vld [vmem:[%s3342 + $0x20] sm:$0xff]
        %s3348 = scalar_lea.vmem %s5, 280
        %v3349 = vld [vmem:[%s3348] sm:$0xff]
        %v3350 = vld [vmem:[%s3348 + $0x8] sm:$0xff]
        %v3351 = vld [vmem:[%s3348 + $0x10] sm:$0xff]
        %v3352 = vld [vmem:[%s3348 + $0x18] sm:$0xff]
        %v3353 = vld [vmem:[%s3348 + $0x20] sm:$0xff]
        %s3354 = scalar_lea.vmem %s6, 280
        %v3355 = vld [vmem:[%s3354] sm:$0xff]
        %v3356 = vld [vmem:[%s3354 + $0x8] sm:$0xff]
        %v3357 = vld [vmem:[%s3354 + $0x10] sm:$0xff]
        %v3358 = vld [vmem:[%s3354 + $0x18] sm:$0xff]
        %v3359 = vld [vmem:[%s3354 + $0x20] sm:$0xff]
        %v3360 = vperm.slane %v3347, 0
        %3361 = vmatpush.msra.mxu0 0.0
        %3362 = vmatpush.msra.mxu0 0.0
        %3363 = vmatpush.msra.mxu0 0.0
        %3364 = vmatpush.msra.mxu0 0.0
        %3365 = vmatpush.msra.mxu0 0.0
        %3366 = vmatpush.msra.mxu0 0.0
        %3367 = vmatpush.msra.mxu0 0.0
        %3368 = vmatpush.msra.mxu0 0.0
        %3369 = vmatpush.msra.mxu0 0.0
        %3370 = vmatpush.msra.mxu0 0.0
        %3371 = vmatpush.msra.mxu0 0.0
        %3372 = vmatpush.msra.mxu0 0.0
        %3373 = vmatpush.msra.mxu0 %v3346
        %3374 = vmatpush.msra.mxu0 %v3345
        %3375 = vmatpush.msra.mxu0 %v3344
        %3376 = vmatpush.msra.mxu0 %v3343
        %3377 = vmatmul.f32.gmra.mxu0 %v2302
        %v3378 = vpop.f32.mrf.mxu0
        %v3379 = vadd.f32 %v3360, %v3378
        %3380 = vmatmul.f32.gmra.mxu0 %v2305
        %v3381 = vpop.f32.mrf.mxu0
        %v3382 = vadd.f32 %v3360, %v3381
        %3383 = vmatmul.f32.gmra.mxu0 %v2308
        %v3384 = vpop.f32.mrf.mxu0
        %v3385 = vadd.f32 %v3360, %v3384
        %3386 = vmatmul.f32.gmra.mxu0 %v2311
        %v3387 = vpop.f32.mrf.mxu0
        %v3388 = vadd.f32 %v3360, %v3387
        %3389 = vdwg.mxu0
        %v3390 = vperm.slane %v3353, 0
        %3391 = vmatpush.msra.mxu0 0.0
        %3392 = vmatpush.msra.mxu0 0.0
        %3393 = vmatpush.msra.mxu0 0.0
        %3394 = vmatpush.msra.mxu0 0.0
        %3395 = vmatpush.msra.mxu0 0.0
        %3396 = vmatpush.msra.mxu0 0.0
        %3397 = vmatpush.msra.mxu0 0.0
        %3398 = vmatpush.msra.mxu0 0.0
        %3399 = vmatpush.msra.mxu0 0.0
        %3400 = vmatpush.msra.mxu0 0.0
        %3401 = vmatpush.msra.mxu0 0.0
        %3402 = vmatpush.msra.mxu0 0.0
        %3403 = vmatpush.msra.mxu0 %v3352
        %3404 = vmatpush.msra.mxu0 %v3351
        %3405 = vmatpush.msra.mxu0 %v3350
        %3406 = vmatpush.msra.mxu0 %v3349
        %3407 = vmatmul.f32.gmra.mxu0 %v2302
        %v3408 = vpop.f32.mrf.mxu0
        %v3409 = vadd.f32 %v3390, %v3408
        %3410 = vmatmul.f32.gmra.mxu0 %v2305
        %v3411 = vpop.f32.mrf.mxu0
        %v3412 = vadd.f32 %v3390, %v3411
        %3413 = vmatmul.f32.gmra.mxu0 %v2308
        %v3414 = vpop.f32.mrf.mxu0
        %v3415 = vadd.f32 %v3390, %v3414
        %3416 = vmatmul.f32.gmra.mxu0 %v2311
        %v3417 = vpop.f32.mrf.mxu0
        %v3418 = vadd.f32 %v3390, %v3417
        %3419 = vdwg.mxu0
        %v3420 = vperm.slane %v3359, 0
        %3421 = vmatpush.msra.mxu0 0.0
        %3422 = vmatpush.msra.mxu0 0.0
        %3423 = vmatpush.msra.mxu0 0.0
        %3424 = vmatpush.msra.mxu0 0.0
        %3425 = vmatpush.msra.mxu0 0.0
        %3426 = vmatpush.msra.mxu0 0.0
        %3427 = vmatpush.msra.mxu0 0.0
        %3428 = vmatpush.msra.mxu0 0.0
        %3429 = vmatpush.msra.mxu0 0.0
        %3430 = vmatpush.msra.mxu0 0.0
        %3431 = vmatpush.msra.mxu0 0.0
        %3432 = vmatpush.msra.mxu0 0.0
        %3433 = vmatpush.msra.mxu0 %v3358
        %3434 = vmatpush.msra.mxu0 %v3357
        %3435 = vmatpush.msra.mxu0 %v3356
        %3436 = vmatpush.msra.mxu0 %v3355
        %3437 = vmatmul.f32.gmra.mxu0 %v2302
        %v3438 = vpop.f32.mrf.mxu0
        %v3439 = vadd.f32 %v3420, %v3438
        %3440 = vmatmul.f32.gmra.mxu0 %v2305
        %v3441 = vpop.f32.mrf.mxu0
        %v3442 = vadd.f32 %v3420, %v3441
        %3443 = vmatmul.f32.gmra.mxu0 %v2308
        %v3444 = vpop.f32.mrf.mxu0
        %v3445 = vadd.f32 %v3420, %v3444
        %3446 = vmatmul.f32.gmra.mxu0 %v2311
        %v3447 = vpop.f32.mrf.mxu0
        %v3448 = vadd.f32 %v3420, %v3447
        %3449 = vdwg.mxu0
        %v3451 = vsel %vm365, %v3379, 0
        %v3454 = vsel %vm365, %v3409, 0
        %3456 = vmatpush.xpose.msra.mxu0 0.0
        %3457 = vmatpush.xpose.msra.mxu0 0.0
        %3458 = vmatpush.xpose.msra.mxu0 0.0
        %3459 = vmatpush.xpose.msra.mxu0 0.0
        %3460 = vmatpush.xpose.msra.mxu0 0.0
        %3461 = vmatpush.xpose.msra.mxu0 0.0
        %3462 = vmatpush.xpose.msra.mxu0 0.0
        %3463 = vmatpush.xpose.msra.mxu0 0.0
        %3464 = vmatpush.xpose.msra.mxu0 0.0
        %3465 = vmatpush.xpose.msra.mxu0 0.0
        %3466 = vmatpush.xpose.msra.mxu0 0.0
        %3467 = vmatpush.xpose.msra.mxu0 0.0
        %3468 = vmatpush.xpose.msra.mxu0 0.0
        %3469 = vmatpush.xpose.msra.mxu0 0.0
        %3470 = vmatpush.xpose.msra.mxu0 0.0
        %3471 = vmatpush.xpose.msra.mxu0 %v3454
        %3472 = vmatmul.f32.gmra.mxu0 %v3451
        %v3473 = vpop.f32.mrf.mxu0
        %v3474 = vadd.f32 0.0, %v3473
        %3475 = vdwg.mxu0
        %v3477 = vsel %vm365, %v3382, 0
        %v3480 = vsel %vm365, %v3412, 0
        %3482 = vmatpush.xpose.msra.mxu0 0.0
        %3483 = vmatpush.xpose.msra.mxu0 0.0
        %3484 = vmatpush.xpose.msra.mxu0 0.0
        %3485 = vmatpush.xpose.msra.mxu0 0.0
        %3486 = vmatpush.xpose.msra.mxu0 0.0
        %3487 = vmatpush.xpose.msra.mxu0 0.0
        %3488 = vmatpush.xpose.msra.mxu0 0.0
        %3489 = vmatpush.xpose.msra.mxu0 0.0
        %3490 = vmatpush.xpose.msra.mxu0 0.0
        %3491 = vmatpush.xpose.msra.mxu0 0.0
        %3492 = vmatpush.xpose.msra.mxu0 0.0
        %3493 = vmatpush.xpose.msra.mxu0 0.0
        %3494 = vmatpush.xpose.msra.mxu0 0.0
        %3495 = vmatpush.xpose.msra.mxu0 0.0
        %3496 = vmatpush.xpose.msra.mxu0 0.0
        %3497 = vmatpush.xpose.msra.mxu0 %v3480
        %3498 = vmatmul.f32.gmra.mxu0 %v3477
        %v3499 = vpop.f32.mrf.mxu0
        %v3500 = vadd.f32 0.0, %v3499
        %3501 = vdwg.mxu0
        %v3503 = vsel %vm365, %v3385, 0
        %v3506 = vsel %vm365, %v3415, 0
        %3508 = vmatpush.xpose.msra.mxu0 0.0
        %3509 = vmatpush.xpose.msra.mxu0 0.0
        %3510 = vmatpush.xpose.msra.mxu0 0.0
        %3511 = vmatpush.xpose.msra.mxu0 0.0
        %3512 = vmatpush.xpose.msra.mxu0 0.0
        %3513 = vmatpush.xpose.msra.mxu0 0.0
        %3514 = vmatpush.xpose.msra.mxu0 0.0
        %3515 = vmatpush.xpose.msra.mxu0 0.0
        %3516 = vmatpush.xpose.msra.mxu0 0.0
        %3517 = vmatpush.xpose.msra.mxu0 0.0
        %3518 = vmatpush.xpose.msra.mxu0 0.0
        %3519 = vmatpush.xpose.msra.mxu0 0.0
        %3520 = vmatpush.xpose.msra.mxu0 0.0
        %3521 = vmatpush.xpose.msra.mxu0 0.0
        %3522 = vmatpush.xpose.msra.mxu0 0.0
        %3523 = vmatpush.xpose.msra.mxu0 %v3506
        %3524 = vmatmul.f32.gmra.mxu0 %v3503
        %v3525 = vpop.f32.mrf.mxu0
        %v3526 = vadd.f32 0.0, %v3525
        %3527 = vdwg.mxu0
        %v3529 = vsel %vm365, %v3388, 0
        %v3532 = vsel %vm365, %v3418, 0
        %3534 = vmatpush.xpose.msra.mxu0 0.0
        %3535 = vmatpush.xpose.msra.mxu0 0.0
        %3536 = vmatpush.xpose.msra.mxu0 0.0
        %3537 = vmatpush.xpose.msra.mxu0 0.0
        %3538 = vmatpush.xpose.msra.mxu0 0.0
        %3539 = vmatpush.xpose.msra.mxu0 0.0
        %3540 = vmatpush.xpose.msra.mxu0 0.0
        %3541 = vmatpush.xpose.msra.mxu0 0.0
        %3542 = vmatpush.xpose.msra.mxu0 0.0
        %3543 = vmatpush.xpose.msra.mxu0 0.0
        %3544 = vmatpush.xpose.msra.mxu0 0.0
        %3545 = vmatpush.xpose.msra.mxu0 0.0
        %3546 = vmatpush.xpose.msra.mxu0 0.0
        %3547 = vmatpush.xpose.msra.mxu0 0.0
        %3548 = vmatpush.xpose.msra.mxu0 0.0
        %3549 = vmatpush.xpose.msra.mxu0 %v3532
        %3550 = vmatmul.f32.gmra.mxu0 %v3529
        %v3551 = vpop.f32.mrf.mxu0
        %v3552 = vadd.f32 0.0, %v3551
        %3553 = vdwg.mxu0
        %v3554 = vsel %vm365, %v3474, -inf
        %3555 = vmax.xlane.f32.xlu0 %v3554
        %v3556 = vpop.xlane.xlu0 %3555
        %v3557 = vsel %vm365, %v3500, -inf
        %3558 = vmax.xlane.f32.xlu0 %v3557
        %v3559 = vpop.xlane.xlu0 %3558
        %v3560 = vsel %vm365, %v3526, -inf
        %3561 = vmax.xlane.f32.xlu0 %v3560
        %v3562 = vpop.xlane.xlu0 %3561
        %v3563 = vsel %vm365, %v3552, -inf
        %3564 = vmax.xlane.f32.xlu0 %v3563
        %v3565 = vpop.xlane.xlu0 %3564
        %v3566 = vsub.f32 %v3474, %v3556
        %v3567 = vsub.f32 %v3500, %v3559
        %v3568 = vsub.f32 %v3526, %v3562
        %v3569 = vsub.f32 %v3552, %v3565
        %v3570 = vmul.f32 %v3566, 1.442695
        %v3571 = vpow.pop %v3570
        %v3572 = vmul.f32 %v3567, 1.442695
        %v3573 = vpow.pop %v3572
        %v3574 = vmul.f32 %v3568, 1.442695
        %v3575 = vpow.pop %v3574
        %v3576 = vmul.f32 %v3569, 1.442695
        %v3577 = vpow.pop %v3576
        %v3578 = vsel %vm365, %v3571, 0.0
        %3579 = vadd.xlane.f32.xlu0 %v3578
        %v3580 = vpop.xlane.xlu0 %3579
        %v3581 = vsel %vm365, %v3573, 0.0
        %3582 = vadd.xlane.f32.xlu0 %v3581
        %v3583 = vpop.xlane.xlu0 %3582
        %v3584 = vsel %vm365, %v3575, 0.0
        %3585 = vadd.xlane.f32.xlu0 %v3584
        %v3586 = vpop.xlane.xlu0 %3585
        %v3587 = vsel %vm365, %v3577, 0.0
        %3588 = vadd.xlane.f32.xlu0 %v3587
        %v3589 = vpop.xlane.xlu0 %3588
        %v3590 = vrcp.pop %v3580
        %v3591 = vrcp.pop %v3583
        %v3592 = vrcp.pop %v3586
        %v3593 = vrcp.pop %v3589
        %v3594 = vmul.f32 %v3571, %v3590
        %v3595 = vmul.f32 %v3573, %v3591
        %v3596 = vmul.f32 %v3575, %v3592
        %v3597 = vmul.f32 %v3577, %v3593
        %v3599 = vsel %vm365, %v3594, 0
        %3601 = vmatpush.msra.mxu0 0.0
        %3602 = vmatpush.msra.mxu0 0.0
        %3603 = vmatpush.msra.mxu0 0.0
        %3604 = vmatpush.msra.mxu0 0.0
        %3605 = vmatpush.msra.mxu0 0.0
        %3606 = vmatpush.msra.mxu0 0.0
        %3607 = vmatpush.msra.mxu0 0.0
        %3608 = vmatpush.msra.mxu0 0.0
        %3609 = vmatpush.msra.mxu0 0.0
        %3610 = vmatpush.msra.mxu0 0.0
        %3611 = vmatpush.msra.mxu0 0.0
        %3612 = vmatpush.msra.mxu0 0.0
        %3613 = vmatpush.msra.mxu0 0.0
        %3614 = vmatpush.msra.mxu0 0.0
        %3615 = vmatpush.msra.mxu0 0.0
        %3616 = vmatpush.msra.mxu0 %v3439
        %3617 = vmatmul.f32.gmra.mxu0 %v3599
        %v3618 = vpop.f32.mrf.mxu0
        %v3619 = vadd.f32 0.0, %v3618
        %3620 = vdwg.mxu0
        %v3622 = vsel %vm365, %v3595, 0
        %3624 = vmatpush.msra.mxu0 0.0
        %3625 = vmatpush.msra.mxu0 0.0
        %3626 = vmatpush.msra.mxu0 0.0
        %3627 = vmatpush.msra.mxu0 0.0
        %3628 = vmatpush.msra.mxu0 0.0
        %3629 = vmatpush.msra.mxu0 0.0
        %3630 = vmatpush.msra.mxu0 0.0
        %3631 = vmatpush.msra.mxu0 0.0
        %3632 = vmatpush.msra.mxu0 0.0
        %3633 = vmatpush.msra.mxu0 0.0
        %3634 = vmatpush.msra.mxu0 0.0
        %3635 = vmatpush.msra.mxu0 0.0
        %3636 = vmatpush.msra.mxu0 0.0
        %3637 = vmatpush.msra.mxu0 0.0
        %3638 = vmatpush.msra.mxu0 0.0
        %3639 = vmatpush.msra.mxu0 %v3442
        %3640 = vmatmul.f32.gmra.mxu0 %v3622
        %v3641 = vpop.f32.mrf.mxu0
        %v3642 = vadd.f32 0.0, %v3641
        %3643 = vdwg.mxu0
        %v3645 = vsel %vm365, %v3596, 0
        %3647 = vmatpush.msra.mxu0 0.0
        %3648 = vmatpush.msra.mxu0 0.0
        %3649 = vmatpush.msra.mxu0 0.0
        %3650 = vmatpush.msra.mxu0 0.0
        %3651 = vmatpush.msra.mxu0 0.0
        %3652 = vmatpush.msra.mxu0 0.0
        %3653 = vmatpush.msra.mxu0 0.0
        %3654 = vmatpush.msra.mxu0 0.0
        %3655 = vmatpush.msra.mxu0 0.0
        %3656 = vmatpush.msra.mxu0 0.0
        %3657 = vmatpush.msra.mxu0 0.0
        %3658 = vmatpush.msra.mxu0 0.0
        %3659 = vmatpush.msra.mxu0 0.0
        %3660 = vmatpush.msra.mxu0 0.0
        %3661 = vmatpush.msra.mxu0 0.0
        %3662 = vmatpush.msra.mxu0 %v3445
        %3663 = vmatmul.f32.gmra.mxu0 %v3645
        %v3664 = vpop.f32.mrf.mxu0
        %v3665 = vadd.f32 0.0, %v3664
        %3666 = vdwg.mxu0
        %v3668 = vsel %vm365, %v3597, 0
        %3670 = vmatpush.msra.mxu0 0.0
        %3671 = vmatpush.msra.mxu0 0.0
        %3672 = vmatpush.msra.mxu0 0.0
        %3673 = vmatpush.msra.mxu0 0.0
        %3674 = vmatpush.msra.mxu0 0.0
        %3675 = vmatpush.msra.mxu0 0.0
        %3676 = vmatpush.msra.mxu0 0.0
        %3677 = vmatpush.msra.mxu0 0.0
        %3678 = vmatpush.msra.mxu0 0.0
        %3679 = vmatpush.msra.mxu0 0.0
        %3680 = vmatpush.msra.mxu0 0.0
        %3681 = vmatpush.msra.mxu0 0.0
        %3682 = vmatpush.msra.mxu0 0.0
        %3683 = vmatpush.msra.mxu0 0.0
        %3684 = vmatpush.msra.mxu0 0.0
        %3685 = vmatpush.msra.mxu0 %v3448
        %3686 = vmatmul.f32.gmra.mxu0 %v3668
        %v3687 = vpop.f32.mrf.mxu0
        %v3688 = vadd.f32 0.0, %v3687
        %3689 = vdwg.mxu0
        %v3690 = vadd.f32 %v3338, %v3619
        %v3691 = vadd.f32 %v3339, %v3642
        %v3692 = vadd.f32 %v3340, %v3665
        %v3693 = vadd.f32 %v3341, %v3688
        %v3694 = vperm.slane %v2281, 4
        %v3695 = vadd.f32 %v3690, %v3694
        %v3696 = vadd.f32 %v3691, %v3694
        %v3697 = vadd.f32 %v3692, %v3694
        %v3698 = vadd.f32 %v3693, %v3694
        %v3699 = vadd.f32 %v3695, %v2276
        %v3700 = vadd.f32 %v3696, %v2277
        %v3701 = vadd.f32 %v3697, %v2278
        %v3702 = vadd.f32 %v3698, %v2279
        %v3703 = vsel %vm409, %v3699, 0.0
        %3704 = vadd.xlane.f32.xlu0 %v3703
        %v3705 = vpop.xlane.xlu0 %3704
        %v3706 = vsel %vm409, %v3700, 0.0
        %3707 = vadd.xlane.f32.xlu0 %v3706
        %v3708 = vpop.xlane.xlu0 %3707
        %v3709 = vsel %vm409, %v3701, 0.0
        %3710 = vadd.xlane.f32.xlu0 %v3709
        %v3711 = vpop.xlane.xlu0 %3710
        %v3712 = vsel %vm409, %v3702, 0.0
        %3713 = vadd.xlane.f32.xlu0 %v3712
        %v3714 = vpop.xlane.xlu0 %3713
        %v3715 = vmul.f32 %v3705, %v1992
        %v3716 = vmul.f32 %v3708, %v1992
        %v3717 = vmul.f32 %v3711, %v1992
        %v3718 = vmul.f32 %v3714, %v1992
        %v3719 = vsub.f32 %v3699, %v3715
        %v3720 = vsub.f32 %v3700, %v3716
        %v3721 = vsub.f32 %v3701, %v3717
        %v3722 = vsub.f32 %v3702, %v3718
        %v3723 = vmul.f32 %v3719, %v3719
        %v3724 = vmul.f32 %v3720, %v3720
        %v3725 = vmul.f32 %v3721, %v3721
        %v3726 = vmul.f32 %v3722, %v3722
        %v3727 = vsel %vm409, %v3723, 0.0
        %3728 = vadd.xlane.f32.xlu0 %v3727
        %v3729 = vpop.xlane.xlu0 %3728
        %v3730 = vsel %vm409, %v3724, 0.0
        %3731 = vadd.xlane.f32.xlu0 %v3730
        %v3732 = vpop.xlane.xlu0 %3731
        %v3733 = vsel %vm409, %v3725, 0.0
        %3734 = vadd.xlane.f32.xlu0 %v3733
        %v3735 = vpop.xlane.xlu0 %3734
        %v3736 = vsel %vm409, %v3726, 0.0
        %3737 = vadd.xlane.f32.xlu0 %v3736
        %v3738 = vpop.xlane.xlu0 %3737
        %v3739 = vmul.f32 %v3729, %v1992
        %v3740 = vmul.f32 %v3732, %v1992
        %v3741 = vmul.f32 %v3735, %v1992
        %v3742 = vmul.f32 %v3738, %v1992
        %v3743 = vadd.f32 %v3739, 1e-05
        %v3744 = vadd.f32 %v3740, 1e-05
        %v3745 = vadd.f32 %v3741, 1e-05
        %v3746 = vadd.f32 %v3742, 1e-05
        %v3747 = vrsqrt.pop %v3743
        %v3748 = vmul.f32 %v3747, %v3743
        %v3749 = vmul.f32 %v3748, %v3747
        %v3750 = vmul.f32 0.5, %v3749
        %v3751 = vsub.f32 1.5, %v3750
        %v3752 = vmul.f32 %v3747, %v3751
        %vm3753 = vweird.f32 %v3743
        %vm3754 = vweird.f32 %v3747
        %vm3755 = vmor %vm3753, %vm3754
        %v3756 = vsel %vm3755, %v3747, %v3752
        %v3757 = vrsqrt.pop %v3744
        %v3758 = vmul.f32 %v3757, %v3744
        %v3759 = vmul.f32 %v3758, %v3757
        %v3760 = vmul.f32 0.5, %v3759
        %v3761 = vsub.f32 1.5, %v3760
        %v3762 = vmul.f32 %v3757, %v3761
        %vm3763 = vweird.f32 %v3744
        %vm3764 = vweird.f32 %v3757
        %vm3765 = vmor %vm3763, %vm3764
        %v3766 = vsel %vm3765, %v3757, %v3762
        %v3767 = vrsqrt.pop %v3745
        %v3768 = vmul.f32 %v3767, %v3745
        %v3769 = vmul.f32 %v3768, %v3767
        %v3770 = vmul.f32 0.5, %v3769
        %v3771 = vsub.f32 1.5, %v3770
        %v3772 = vmul.f32 %v3767, %v3771
        %vm3773 = vweird.f32 %v3745
        %vm3774 = vweird.f32 %v3767
        %vm3775 = vmor %vm3773, %vm3774
        %v3776 = vsel %vm3775, %v3767, %v3772
        %v3777 = vrsqrt.pop %v3746
        %v3778 = vmul.f32 %v3777, %v3746
        %v3779 = vmul.f32 %v3778, %v3777
        %v3780 = vmul.f32 0.5, %v3779
        %v3781 = vsub.f32 1.5, %v3780
        %v3782 = vmul.f32 %v3777, %v3781
        %vm3783 = vweird.f32 %v3746
        %vm3784 = vweird.f32 %v3777
        %vm3785 = vmor %vm3783, %vm3784
        %v3786 = vsel %vm3785, %v3777, %v3782
        %v3787 = vmul.f32 %v3719, %v3756
        %v3788 = vmul.f32 %v3720, %v3766
        %v3789 = vmul.f32 %v3721, %v3776
        %v3790 = vmul.f32 %v3722, %v3786
        %v3791 = vperm.slane %v2281, 0
        %v3792 = vmul.f32 %v3787, %v3791
        %v3793 = vmul.f32 %v3788, %v3791
        %v3794 = vmul.f32 %v3789, %v3791
        %v3795 = vmul.f32 %v3790, %v3791
        %v3796 = vperm.slane %v2281, 1
        %v3797 = vadd.f32 %v3792, %v3796
        %v3798 = vadd.f32 %v3793, %v3796
        %v3799 = vadd.f32 %v3794, %v3796
        %v3800 = vadd.f32 %v3795, %v3796
        %s3801 = scalar_lea.vmem %s7, 80
        %v3802 = vld [vmem:[%s3801] sm:$0xff]
        %v3803 = vld [vmem:[%s3801 + $0x8] sm:$0xff]
        %v3804 = vld [vmem:[%s3801 + $0x10] sm:$0xff]
        %v3805 = vld [vmem:[%s3801 + $0x18] sm:$0xff]
        %v3806 = vld [vmem:[%s3801 + $0x20] sm:$0xff]
        %s3807 = scalar_lea.vmem %s7, 120
        %v3808 = vld [vmem:[%s3807] sm:$0xff]
        %v3809 = vld [vmem:[%s3807 + $0x8] sm:$0xff]
        %v3810 = vld [vmem:[%s3807 + $0x10] sm:$0xff]
        %v3811 = vld [vmem:[%s3807 + $0x18] sm:$0xff]
        %v3812 = vld [vmem:[%s3807 + $0x20] sm:$0xff]
        %v3813 = vperm.slane %v3806, 0
        %v3815 = vsel %vm409, %v3797, 0
        %v3818 = vsel %vm409, %v3798, 0
        %v3821 = vsel %vm409, %v3799, 0
        %v3824 = vsel %vm409, %v3800, 0
        %3826 = vmatpush.msra.mxu0 0.0
        %3827 = vmatpush.msra.mxu0 0.0
        %3828 = vmatpush.msra.mxu0 0.0
        %3829 = vmatpush.msra.mxu0 0.0
        %3830 = vmatpush.msra.mxu0 0.0
        %3831 = vmatpush.msra.mxu0 0.0
        %3832 = vmatpush.msra.mxu0 0.0
        %3833 = vmatpush.msra.mxu0 0.0
        %3834 = vmatpush.msra.mxu0 0.0
        %3835 = vmatpush.msra.mxu0 0.0
        %3836 = vmatpush.msra.mxu0 0.0
        %3837 = vmatpush.msra.mxu0 0.0
        %3838 = vmatpush.msra.mxu0 %v3805
        %3839 = vmatpush.msra.mxu0 %v3804
        %3840 = vmatpush.msra.mxu0 %v3803
        %3841 = vmatpush.msra.mxu0 %v3802
        %3842 = vmatmul.f32.gmra.mxu0 %v3815
        %v3843 = vpop.f32.mrf.mxu0
        %v3844 = vadd.f32 %v3813, %v3843
        %3845 = vmatmul.f32.gmra.mxu0 %v3818
        %v3846 = vpop.f32.mrf.mxu0
        %v3847 = vadd.f32 %v3813, %v3846
        %3848 = vmatmul.f32.gmra.mxu0 %v3821
        %v3849 = vpop.f32.mrf.mxu0
        %v3850 = vadd.f32 %v3813, %v3849
        %3851 = vmatmul.f32.gmra.mxu0 %v3824
        %v3852 = vpop.f32.mrf.mxu0
        %v3853 = vadd.f32 %v3813, %v3852
        %3854 = vdwg.mxu0
        %v3855 = vmax.f32 %v3844, 0.0
        %v3856 = vmax.f32 %v3847, 0.0
        %v3857 = vmax.f32 %v3850, 0.0
        %v3858 = vmax.f32 %v3853, 0.0
        %v3859 = vperm.slane %v3812, 0
        %v3861 = vsel %vm409, %v3855, 0
        %v3864 = vsel %vm409, %v3856, 0
        %v3867 = vsel %vm409, %v3857, 0
        %v3870 = vsel %vm409, %v3858, 0
        %3872 = vmatpush.msra.mxu0 0.0
        %3873 = vmatpush.msra.mxu0 0.0
        %3874 = vmatpush.msra.mxu0 0.0
        %3875 = vmatpush.msra.mxu0 0.0
        %3876 = vmatpush.msra.mxu0 0.0
        %3877 = vmatpush.msra.mxu0 0.0
        %3878 = vmatpush.msra.mxu0 0.0
        %3879 = vmatpush.msra.mxu0 0.0
        %3880 = vmatpush.msra.mxu0 0.0
        %3881 = vmatpush.msra.mxu0 0.0
        %3882 = vmatpush.msra.mxu0 0.0
        %3883 = vmatpush.msra.mxu0 0.0
        %3884 = vmatpush.msra.mxu0 %v3811
        %3885 = vmatpush.msra.mxu0 %v3810
        %3886 = vmatpush.msra.mxu0 %v3809
        %3887 = vmatpush.msra.mxu0 %v3808
        %3888 = vmatmul.f32.gmra.mxu0 %v3861
        %v3889 = vpop.f32.mrf.mxu0
        %v3890 = vadd.f32 %v3859, %v3889
        %3891 = vmatmul.f32.gmra.mxu0 %v3864
        %v3892 = vpop.f32.mrf.mxu0
        %v3893 = vadd.f32 %v3859, %v3892
        %3894 = vmatmul.f32.gmra.mxu0 %v3867
        %v3895 = vpop.f32.mrf.mxu0
        %v3896 = vadd.f32 %v3859, %v3895
        %3897 = vmatmul.f32.gmra.mxu0 %v3870
        %v3898 = vpop.f32.mrf.mxu0
        %v3899 = vadd.f32 %v3859, %v3898
        %3900 = vdwg.mxu0
        %v3901 = vadd.f32 %v3890, %v3797
        %v3902 = vadd.f32 %v3893, %v3798
        %v3903 = vadd.f32 %v3896, %v3799
        %v3904 = vadd.f32 %v3899, %v3800
        %v3905 = vsel %vm409, %v3901, 0.0
        %3906 = vadd.xlane.f32.xlu0 %v3905
        %v3907 = vpop.xlane.xlu0 %3906
        %v3908 = vsel %vm409, %v3902, 0.0
        %3909 = vadd.xlane.f32.xlu0 %v3908
        %v3910 = vpop.xlane.xlu0 %3909
        %v3911 = vsel %vm409, %v3903, 0.0
        %3912 = vadd.xlane.f32.xlu0 %v3911
        %v3913 = vpop.xlane.xlu0 %3912
        %v3914 = vsel %vm409, %v3904, 0.0
        %3915 = vadd.xlane.f32.xlu0 %v3914
        %v3916 = vpop.xlane.xlu0 %3915
        %v3917 = vmul.f32 %v3907, %v1992
        %v3918 = vmul.f32 %v3910, %v1992
        %v3919 = vmul.f32 %v3913, %v1992
        %v3920 = vmul.f32 %v3916, %v1992
        %v3921 = vsub.f32 %v3901, %v3917
        %v3922 = vsub.f32 %v3902, %v3918
        %v3923 = vsub.f32 %v3903, %v3919
        %v3924 = vsub.f32 %v3904, %v3920
        %v3925 = vmul.f32 %v3921, %v3921
        %v3926 = vmul.f32 %v3922, %v3922
        %v3927 = vmul.f32 %v3923, %v3923
        %v3928 = vmul.f32 %v3924, %v3924
        %v3929 = vsel %vm409, %v3925, 0.0
        %3930 = vadd.xlane.f32.xlu0 %v3929
        %v3931 = vpop.xlane.xlu0 %3930
        %v3932 = vsel %vm409, %v3926, 0.0
        %3933 = vadd.xlane.f32.xlu0 %v3932
        %v3934 = vpop.xlane.xlu0 %3933
        %v3935 = vsel %vm409, %v3927, 0.0
        %3936 = vadd.xlane.f32.xlu0 %v3935
        %v3937 = vpop.xlane.xlu0 %3936
        %v3938 = vsel %vm409, %v3928, 0.0
        %3939 = vadd.xlane.f32.xlu0 %v3938
        %v3940 = vpop.xlane.xlu0 %3939
        %v3941 = vmul.f32 %v3931, %v1992
        %v3942 = vmul.f32 %v3934, %v1992
        %v3943 = vmul.f32 %v3937, %v1992
        %v3944 = vmul.f32 %v3940, %v1992
        %v3945 = vadd.f32 %v3941, 1e-05
        %v3946 = vadd.f32 %v3942, 1e-05
        %v3947 = vadd.f32 %v3943, 1e-05
        %v3948 = vadd.f32 %v3944, 1e-05
        %v3949 = vrsqrt.pop %v3945
        %v3950 = vmul.f32 %v3949, %v3945
        %v3951 = vmul.f32 %v3950, %v3949
        %v3952 = vmul.f32 0.5, %v3951
        %v3953 = vsub.f32 1.5, %v3952
        %v3954 = vmul.f32 %v3949, %v3953
        %vm3955 = vweird.f32 %v3945
        %vm3956 = vweird.f32 %v3949
        %vm3957 = vmor %vm3955, %vm3956
        %v3958 = vsel %vm3957, %v3949, %v3954
        %v3959 = vrsqrt.pop %v3946
        %v3960 = vmul.f32 %v3959, %v3946
        %v3961 = vmul.f32 %v3960, %v3959
        %v3962 = vmul.f32 0.5, %v3961
        %v3963 = vsub.f32 1.5, %v3962
        %v3964 = vmul.f32 %v3959, %v3963
        %vm3965 = vweird.f32 %v3946
        %vm3966 = vweird.f32 %v3959
        %vm3967 = vmor %vm3965, %vm3966
        %v3968 = vsel %vm3967, %v3959, %v3964
        %v3969 = vrsqrt.pop %v3947
        %v3970 = vmul.f32 %v3969, %v3947
        %v3971 = vmul.f32 %v3970, %v3969
        %v3972 = vmul.f32 0.5, %v3971
        %v3973 = vsub.f32 1.5, %v3972
        %v3974 = vmul.f32 %v3969, %v3973
        %vm3975 = vweird.f32 %v3947
        %vm3976 = vweird.f32 %v3969
        %vm3977 = vmor %vm3975, %vm3976
        %v3978 = vsel %vm3977, %v3969, %v3974
        %v3979 = vrsqrt.pop %v3948
        %v3980 = vmul.f32 %v3979, %v3948
        %v3981 = vmul.f32 %v3980, %v3979
        %v3982 = vmul.f32 0.5, %v3981
        %v3983 = vsub.f32 1.5, %v3982
        %v3984 = vmul.f32 %v3979, %v3983
        %vm3985 = vweird.f32 %v3948
        %vm3986 = vweird.f32 %v3979
        %vm3987 = vmor %vm3985, %vm3986
        %v3988 = vsel %vm3987, %v3979, %v3984
        %v3989 = vmul.f32 %v3921, %v3958
        %v3990 = vmul.f32 %v3922, %v3968
        %v3991 = vmul.f32 %v3923, %v3978
        %v3992 = vmul.f32 %v3924, %v3988
        %v3993 = vperm.slane %v2281, 2
        %v3994 = vmul.f32 %v3989, %v3993
        %v3995 = vmul.f32 %v3990, %v3993
        %v3996 = vmul.f32 %v3991, %v3993
        %v3997 = vmul.f32 %v3992, %v3993
        %v3998 = vperm.slane %v2281, 3
        %v3999 = vadd.f32 %v3994, %v3998
        %v4000 = vadd.f32 %v3995, %v3998
        %v4001 = vadd.f32 %v3996, %v3998
        %v4002 = vadd.f32 %v3997, %v3998
        %v4003 = vld [vmem:[%s9] sm:$0xff]
        %v4004 = vld [vmem:[%s9 + $0x8] sm:$0xff]
        %v4005 = vld [vmem:[%s9 + $0x10] sm:$0xff]
        %v4006 = vld [vmem:[%s9 + $0x18] sm:$0xff]
        %v4007 = vld [vmem:[%s9 + $0x20] sm:$0xff]
        %v4008 = vsel %vm409, %v3999, 0.0
        %v4009 = vrot.slane %v4008, 4
        %v4010 = vadd.f32 %v4008, %v4009
        %v4011 = vrot.slane %v4010, 2
        %v4012 = vadd.f32 %v4010, %v4011
        %v4013 = vrot.slane %v4012, 1
        %v4014 = vadd.f32 %v4012, %v4013
        %v4015 = vsel %vm409, %v4000, 0.0
        %v4016 = vrot.slane %v4015, 4
        %v4017 = vadd.f32 %v4015, %v4016
        %v4018 = vrot.slane %v4017, 2
        %v4019 = vadd.f32 %v4017, %v4018
        %v4020 = vrot.slane %v4019, 1
        %v4021 = vadd.f32 %v4019, %v4020
        %v4022 = vsel %vm409, %v4001, 0.0
        %v4023 = vrot.slane %v4022, 4
        %v4024 = vadd.f32 %v4022, %v4023
        %v4025 = vrot.slane %v4024, 2
        %v4026 = vadd.f32 %v4024, %v4025
        %v4027 = vrot.slane %v4026, 1
        %v4028 = vadd.f32 %v4026, %v4027
        %v4029 = vsel %vm409, %v4002, 0.0
        %v4030 = vrot.slane %v4029, 4
        %v4031 = vadd.f32 %v4029, %v4030
        %v4032 = vrot.slane %v4031, 2
        %v4033 = vadd.f32 %v4031, %v4032
        %v4034 = vrot.slane %v4033, 1
        %v4035 = vadd.f32 %v4033, %v4034
        %v4036 = vmul.f32 %v4014, %v444
        %v4037 = vmul.f32 %v4021, %v444
        %v4038 = vmul.f32 %v4028, %v444
        %v4039 = vmul.f32 %v4035, %v444
        %v4040 = vperm.slane %v4007, 0
        %v4045 = vsel %vm458, %v4037, %v4036
        %v4046 = vsel %vm460, %v4038, %v4045
        %v4047 = vsel %vm462, %v4039, %v4046
        %v4048 = vsel %vm409, %v4047, 0
        %4050 = vmatpush.msra.mxu0 0.0
        %4051 = vmatpush.msra.mxu0 0.0
        %4052 = vmatpush.msra.mxu0 0.0
        %4053 = vmatpush.msra.mxu0 0.0
        %4054 = vmatpush.msra.mxu0 0.0
        %4055 = vmatpush.msra.mxu0 0.0
        %4056 = vmatpush.msra.mxu0 0.0
        %4057 = vmatpush.msra.mxu0 0.0
        %4058 = vmatpush.msra.mxu0 0.0
        %4059 = vmatpush.msra.mxu0 0.0
        %4060 = vmatpush.msra.mxu0 0.0
        %4061 = vmatpush.msra.mxu0 0.0
        %4062 = vmatpush.msra.mxu0 %v4006
        %4063 = vmatpush.msra.mxu0 %v4005
        %4064 = vmatpush.msra.mxu0 %v4004
        %4065 = vmatpush.msra.mxu0 %v4003
        %4066 = vmatmul.f32.gmra.mxu0 %v4048
        %v4067 = vpop.f32.mrf.mxu0
        %v4068 = vadd.f32 %v4040, %v4067
        %4069 = vdwg.mxu0
        %4070 = vst [vmem:[%s353] sm:$0xf] %v4068
        %s4071 = sand.u32 %s247, 1
        %s4072 = scalar_lea.sflag [#allocation3], %s4071
        %s4073 = sand.u32 %s247, 1
        %s4074 = smul.addr %s4073, 4
        %s4075 = scalar_lea.vmem [#allocation2], %s4074
        // Predicated region
        $region61: #{forward.1} parent=59 // pred_check
          %p4076 = pneg %p257
        $region62: #{forward.1} parent=59 // pred_check_branch
          %4078 = sbr.rel (%p4076) target = $region64
        $region63: #{forward.1} parent=59 // pred_region
          %4080 = vsyncadd %s4072, 0
          %s4081 = smul.addr %s24, 4
          %s4082 = scalar_lea.hbm %s10, %s4081
          %s4084 = sshll.u32 %s4075, 4
          %s4085 = int_to_ptr.vmem [resolvable:$true] %s4084
          %s4086 = sshll.u32 %s4082, 4
          %s4087 = int_to_ptr.hbm [resolvable:$true] %s4086
          %4089 = dma.vmem_to_hbm [thread:$0]  %s4085, 64, %s4087, %s4072
        $region64: #{forward.1} parent=59 // pred_fallthru
          _
      $region60: #{forward.1} parent=5 // pred_fallthru
        _
      %p4090 = scmp.le.s32.totalorder 2, %s19
      // Predicated region
      $region65: #{forward.1} parent=5 // pred_check
        %p4091 = pneg %p4090
      $region66: #{forward.1} parent=5 // pred_check_branch
        %4093 = sbr.rel (%p4091) target = $region68
      $region67: #{forward.1} parent=5 // pred_region
        %s4094 = ssub.s32 %s19, 2
        // Predicated region
        $region69: #{forward.1} parent=67 // pred_check
          %p4095 = pneg %p263
        $region70: #{forward.1} parent=67 // pred_check_branch
          %4097 = sbr.rel (%p4095) target = $region72
        $region71: #{forward.1} parent=67 // pred_region
          %s4098 = sand.u32 %s248, 1
          %s4099 = scalar_lea.sflag [#allocation3], %s4098
          %s4100 = sand.u32 %s248, 1
          %s4101 = smul.addr %s4100, 4
          %s4102 = scalar_lea.vmem [#allocation2], %s4101
          %4104 = dma.done %s4099, 64
        $region72: #{forward.1} parent=67 // pred_fallthru
          _
      $region68: #{forward.1} parent=5 // pred_fallthru
        _
    $region6: #{forward.1} parent=1 // loop_footer
      %s23 = sadd.s32 1, %s19
    $region7: #{forward.1} parent=1 // loop_footer_branch
      %18 = sbr.rel target = $region3
    $region8: #{forward.1} parent=1 // loop_exit
      _
    %4105 = vsyncpa [#allocation3], 1
    %s4106 = scalar_lea.sflag [#allocation3], 1
    %4107 = vsyncpa %s4106, 1

</llo_original>
